<compile_context>
chip_gen: v6e
topology: v6e:2x2x1
jax: 0.10.0
libtpu: 0.0.40
codegen_flags: <defaults>
</compile_context>

<pallas_src>
import jax
import jax.numpy as jnp
from jax.experimental import pallas as pl
from jax.experimental.pallas import tpu as pltpu

STATE_DIM = 29
HIDDEN = 750            # logical hidden size of the torch module
HIDDEN_PAD = 768        # 6 * 128 — padded hidden size used by the kernel
LATENT = 2 * STATE_DIM  # 58 = cat([state, z])


def _vae_kernel(
    state_ref, noise_ref,
    we1_ref, be1_ref,
    we2_ref, be2_ref,
    wml_ref, bml_ref,        # fused [mean | log_std] head: (768, 58), (1, 58)
    wd1_ref, bd1_ref,        # fused d1 weight over cat([state, z]): (58, 768)
    wd2_ref, bd2_ref,
    wd3_ref, bd3_ref,
    u_ref, mean_ref, std_ref,
):
    x = state_ref[...]                                      # (bb, 29) f32
    xb = x.astype(jnp.bfloat16)

    # ---------------- encoder ----------------
    h = jnp.dot(xb, we1_ref[...], preferred_element_type=jnp.float32) + be1_ref[...]
    h = jnp.maximum(h, 0.0)                                  # relu(e1(state))
    h = jnp.dot(h.astype(jnp.bfloat16), we2_ref[...],
                preferred_element_type=jnp.float32) + be2_ref[...]
    h = jnp.maximum(h, 0.0)                                  # relu(e2(.))

    # fused mean | log_std head: one matmul, then lane-split
    ml = jnp.dot(h.astype(jnp.bfloat16), wml_ref[...],
                 preferred_element_type=jnp.float32) + bml_ref[...]
    mean = ml[:, :STATE_DIM]
    log_std = jnp.clip(ml[:, STATE_DIM:], -4.0, 15.0)
    std = jnp.exp(log_std)

    # reparameterization (f32)
    z = mean + std * noise_ref[...]                          # (bb, 29)

    # ---------------- decoder ----------------
    # d1(cat([state, z], 1)) with a single (58, 768) weight; the concat stays
    # inside one vreg (58 < 128 lanes), so no HBM-level concat is needed.
    cat = jnp.concatenate([x, z], axis=-1).astype(jnp.bfloat16)   # (bb, 58)
    a = jnp.dot(cat, wd1_ref[...], preferred_element_type=jnp.float32) + bd1_ref[...]
    a = jnp.maximum(a, 0.0)
    a = jnp.dot(a.astype(jnp.bfloat16), wd2_ref[...],
                preferred_element_type=jnp.float32) + bd2_ref[...]
    a = jnp.maximum(a, 0.0)
    u = jnp.dot(a.astype(jnp.bfloat16), wd3_ref[...],
                preferred_element_type=jnp.float32) + bd3_ref[...]

    u_ref[...] = u
    mean_ref[...] = mean
    std_ref[...] = std


def vae_forward(state, noise, kp, *, block_b=256):
    """state, noise: (B, 29) f32.  kp: packed kernel params (see pack_params)."""
    B = state.shape[0]
    bb = B if B <= block_b else block_b          # batch tile (== B when small)
    grid = (pl.cdiv(B, bb),)

    weights = (
        kp["we1"], kp["be1"], kp["we2"], kp["be2"],
        kp["wml"], kp["bml"],
        kp["wd1"], kp["bd1"], kp["wd2"], kp["bd2"], kp["wd3"], kp["bd3"],
    )

    def const_spec(arr):
        # weights: full block, constant block index -> stay resident across
        # batch tiles (no re-DMA per grid step).
        return pl.BlockSpec(arr.shape, lambda i: (0,) * arr.ndim)

    def batched_spec(d):
        return pl.BlockSpec((bb, d), lambda i: (i, 0))

    in_specs = ([batched_spec(STATE_DIM), batched_spec(STATE_DIM)]
                + [const_spec(w) for w in weights])
    out_specs = (batched_spec(STATE_DIM),) * 3
    out_shape = tuple(jax.ShapeDtypeStruct((B, STATE_DIM), jnp.float32)
                      for _ in range(3))

    return pl.pallas_call(
        _vae_kernel,
        grid=grid,
        in_specs=in_specs,
        out_specs=out_specs,
        out_shape=out_shape,
        compiler_params=pltpu.CompilerParams(
            dimension_semantics=("parallel",),     # batch tiles shard across TCs on v7x
            vmem_limit_bytes=16 << 20,             # real footprint ~3 MiB bf16 weights
        ),
    )(state, noise, *weights)


def init_params(key):
    """Deterministic init mimicking torch.nn.Linear defaults (U[-1/sqrt(fan_in), ..])."""
    def linear(k, fan_in, fan_out):
        kw, kb = jax.random.split(k)
        bound = 1.0 / jnp.sqrt(fan_in)
        w = jax.random.uniform(kw, (fan_in, fan_out), jnp.float32, -bound, bound)
        b = jax.random.uniform(kb, (1, fan_out), jnp.float32, -bound, bound)
        return w, b

    keys = jax.random.split(key, 7)
    p = {}
    p["we1"], p["be1"] = linear(keys[0], STATE_DIM, HIDDEN)
    p["we2"], p["be2"] = linear(keys[1], HIDDEN, HIDDEN)
    p["wm"], p["bm"] = linear(keys[2], HIDDEN, STATE_DIM)
    p["wl"], p["bl"] = linear(keys[3], HIDDEN, STATE_DIM)
    p["wd1"], p["bd1"] = linear(keys[4], LATENT, HIDDEN)    # input = cat([state, z])
    p["wd2"], p["bd2"] = linear(keys[5], HIDDEN, HIDDEN)
    p["wd3"], p["bd3"] = linear(keys[6], HIDDEN, STATE_DIM)
    return p


def pack_params(p):
    """Fuse the mean/log_std heads, zero-pad hidden 750->768, cast weights to bf16."""
    def pad_cols(w, n):
        return jnp.pad(w, ((0, 0), (0, n - w.shape[1])))

    def pad_rows(w, n):
        return jnp.pad(w, ((0, n - w.shape[0]), (0, 0)))

    wml = jnp.concatenate([p["wm"], p["wl"]], axis=1)        # (750, 58)
    bml = jnp.concatenate([p["bm"], p["bl"]], axis=1)        # (1, 58)

    kp = {
        "we1": pad_cols(p["we1"], HIDDEN_PAD),                         # (29, 768)
        "be1": pad_cols(p["be1"], HIDDEN_PAD),                         # (1, 768)
        "we2": pad_cols(pad_rows(p["we2"], HIDDEN_PAD), HIDDEN_PAD),   # (768, 768)
        "be2": pad_cols(p["be2"], HIDDEN_PAD),
        "wml": pad_rows(wml, HIDDEN_PAD),                              # (768, 58)
        "bml": bml,
        "wd1": pad_cols(p["wd1"], HIDDEN_PAD),                         # (58, 768)
        "bd1": pad_cols(p["bd1"], HIDDEN_PAD),
        "wd2": pad_cols(pad_rows(p["wd2"], HIDDEN_PAD), HIDDEN_PAD),
        "bd2": pad_cols(p["bd2"], HIDDEN_PAD),
        "wd3": pad_rows(p["wd3"], HIDDEN_PAD),                         # (768, 29)
        "bd3": p["bd3"],
    }
    # Weights in bf16 (halves HBM weight bytes); biases stay f32.
    for k in ("we1", "we2", "wml", "wd1", "wd2", "wd3"):
        kp[k] = kp[k].astype(jnp.bfloat16)
    return kp


def vae_forward_ref(state, noise, kp):
    """Pure-JAX reference mirroring the kernel's mixed-precision policy."""
    f32 = lambda a: a.astype(jnp.float32)
    bf = lambda a: a.astype(jnp.bfloat16).astype(jnp.float32)

    h = jax.nn.relu(bf(state) @ f32(kp["we1"]) + kp["be1"])
    h = jax.nn.relu(bf(h) @ f32(kp["we2"]) + kp["be2"])
    ml = bf(h) @ f32(kp["wml"]) + kp["bml"]
    mean = ml[:, :STATE_DIM]
    std = jnp.exp(jnp.clip(ml[:, STATE_DIM:], -4.0, 15.0))
    z = mean + std * noise
    cat = bf(jnp.concatenate([state, z], axis=1))
    a = jax.nn.relu(cat @ f32(kp["wd1"]) + kp["bd1"])
    a = jax.nn.relu(bf(a) @ f32(kp["wd2"]) + kp["bd2"])
    u = bf(a) @ f32(kp["wd3"]) + kp["bd3"]
    return u, mean, std


if __name__ == "__main__":
    key = jax.random.PRNGKey(0)
    k_params, k_state, k_noise = jax.random.split(key, 3)

    B = 8  # small batch
    params = init_params(k_params)
    kparams = pack_params(params)
    state = jax.random.normal(k_state, (B, STATE_DIM), jnp.float32)
    noise = jax.random.normal(k_noise, (B, STATE_DIM), jnp.float32)

    u, mean, std = jax.block_until_ready(vae_forward(state, noise, kparams))

    u_r, mean_r, std_r = vae_forward_ref(state, noise, kparams)
    assert jnp.allclose(u, u_r, atol=2e-3, rtol=2e-3)
    assert jnp.allclose(mean, mean_r, atol=2e-3, rtol=2e-3)
    assert jnp.allclose(std, std_r, atol=2e-3, rtol=2e-3)

    print("KERNEL_OK")
</pallas_src>

<mosaic_0001>
module attributes {stable_mosaic.version = 11 : i64} {
  func.func @_vae_kernel(%arg0: i32, %arg1: memref<8x29xf32, #tpu.memory_space<vmem>>, %arg2: memref<8x29xf32, #tpu.memory_space<vmem>>, %arg3: memref<29x768xbf16, #tpu.memory_space<vmem>>, %arg4: memref<1x768xf32, #tpu.memory_space<vmem>>, %arg5: memref<768x768xbf16, #tpu.memory_space<vmem>>, %arg6: memref<1x768xf32, #tpu.memory_space<vmem>>, %arg7: memref<768x58xbf16, #tpu.memory_space<vmem>>, %arg8: memref<1x58xf32, #tpu.memory_space<vmem>>, %arg9: memref<58x768xbf16, #tpu.memory_space<vmem>>, %arg10: memref<1x768xf32, #tpu.memory_space<vmem>>, %arg11: memref<768x768xbf16, #tpu.memory_space<vmem>>, %arg12: memref<1x768xf32, #tpu.memory_space<vmem>>, %arg13: memref<768x29xbf16, #tpu.memory_space<vmem>>, %arg14: memref<1x29xf32, #tpu.memory_space<vmem>>, %arg15: memref<8x29xf32, #tpu.memory_space<vmem>>, %arg16: memref<8x29xf32, #tpu.memory_space<vmem>>, %arg17: memref<8x29xf32, #tpu.memory_space<vmem>>) attributes {dimension_semantics = [#tpu.dimension_semantics<parallel>], iteration_bounds = array<i64: 1>, scalar_prefetch = 0 : i64, scratch_operands = 0 : i64, tpu.core_type = #tpu.core_type<tc>, window_params = [{transform_indices = @transform_0, window_bounds = array<i64: 8, 29>}, {transform_indices = @transform_1, window_bounds = array<i64: 8, 29>}, {pipeline_mode = #tpu.pipeline_mode<synchronous>, transform_indices = @transform_2, window_bounds = array<i64: 29, 768>}, {pipeline_mode = #tpu.pipeline_mode<synchronous>, transform_indices = @transform_3, window_bounds = array<i64: 1, 768>}, {pipeline_mode = #tpu.pipeline_mode<synchronous>, transform_indices = @transform_4, window_bounds = array<i64: 768, 768>}, {pipeline_mode = #tpu.pipeline_mode<synchronous>, transform_indices = @transform_5, window_bounds = array<i64: 1, 768>}, {pipeline_mode = #tpu.pipeline_mode<synchronous>, transform_indices = @transform_6, window_bounds = array<i64: 768, 58>}, {pipeline_mode = #tpu.pipeline_mode<synchronous>, transform_indices = @transform_7, window_bounds = array<i64: 1, 58>}, {pipeline_mode = #tpu.pipeline_mode<synchronous>, transform_indices = @transform_8, window_bounds = array<i64: 58, 768>}, {pipeline_mode = #tpu.pipeline_mode<synchronous>, transform_indices = @transform_9, window_bounds = array<i64: 1, 768>}, {pipeline_mode = #tpu.pipeline_mode<synchronous>, transform_indices = @transform_10, window_bounds = array<i64: 768, 768>}, {pipeline_mode = #tpu.pipeline_mode<synchronous>, transform_indices = @transform_11, window_bounds = array<i64: 1, 768>}, {pipeline_mode = #tpu.pipeline_mode<synchronous>, transform_indices = @transform_12, window_bounds = array<i64: 768, 29>}, {pipeline_mode = #tpu.pipeline_mode<synchronous>, transform_indices = @transform_13, window_bounds = array<i64: 1, 29>}, {transform_indices = @transform_14, window_bounds = array<i64: 8, 29>}, {transform_indices = @transform_15, window_bounds = array<i64: 8, 29>}, {transform_indices = @transform_16, window_bounds = array<i64: 8, 29>}]} {
    %c0 = arith.constant 0 : index
    %c0_0 = arith.constant 0 : index
    %0 = vector.load %arg1[%c0, %c0_0] : memref<8x29xf32, #tpu.memory_space<vmem>>, vector<8x29xf32>
    %1 = arith.truncf %0 : vector<8x29xf32> to vector<8x29xbf16>
    %c0_1 = arith.constant 0 : index
    %c0_2 = arith.constant 0 : index
    %2 = vector.load %arg3[%c0_1, %c0_2] : memref<29x768xbf16, #tpu.memory_space<vmem>>, vector<29x768xbf16>
    %cst = arith.constant dense<0.000000e+00> : vector<8x768xf32>
    %3 = tpu.matmul %1, %2, %cst {dimension_numbers = #tpu.dot_dimension_numbers<[1], [0], [0], [1], [0, 0, 1, 1], [], []>} : vector<8x29xbf16>, vector<29x768xbf16>, vector<8x768xf32> -> vector<8x768xf32>
    %c0_3 = arith.constant 0 : index
    %c0_4 = arith.constant 0 : index
    %4 = vector.load %arg4[%c0_3, %c0_4] : memref<1x768xf32, #tpu.memory_space<vmem>>, vector<1x768xf32>
    %5 = vector.broadcast %4 : vector<1x768xf32> to vector<8x768xf32>
    %6 = arith.addf %3, %5 : vector<8x768xf32>
    %cst_5 = arith.constant 0.000000e+00 : f32
    %7 = vector.broadcast %cst_5 : f32 to vector<8x768xf32>
    %8 = arith.maximumf %6, %7 : vector<8x768xf32>
    %9 = arith.truncf %8 : vector<8x768xf32> to vector<8x768xbf16>
    %c0_6 = arith.constant 0 : index
    %c0_7 = arith.constant 0 : index
    %10 = vector.load %arg5[%c0_6, %c0_7] : memref<768x768xbf16, #tpu.memory_space<vmem>>, vector<768x768xbf16>
    %cst_8 = arith.constant dense<0.000000e+00> : vector<8x768xf32>
    %11 = tpu.matmul %9, %10, %cst_8 {dimension_numbers = #tpu.dot_dimension_numbers<[1], [0], [0], [1], [0, 0, 1, 1], [], []>} : vector<8x768xbf16>, vector<768x768xbf16>, vector<8x768xf32> -> vector<8x768xf32>
    %c0_9 = arith.constant 0 : index
    %c0_10 = arith.constant 0 : index
    %12 = vector.load %arg6[%c0_9, %c0_10] : memref<1x768xf32, #tpu.memory_space<vmem>>, vector<1x768xf32>
    %13 = vector.broadcast %12 : vector<1x768xf32> to vector<8x768xf32>
    %14 = arith.addf %11, %13 : vector<8x768xf32>
    %cst_11 = arith.constant 0.000000e+00 : f32
    %15 = vector.broadcast %cst_11 : f32 to vector<8x768xf32>
    %16 = arith.maximumf %14, %15 : vector<8x768xf32>
    %17 = arith.truncf %16 : vector<8x768xf32> to vector<8x768xbf16>
    %c0_12 = arith.constant 0 : index
    %c0_13 = arith.constant 0 : index
    %18 = vector.load %arg7[%c0_12, %c0_13] : memref<768x58xbf16, #tpu.memory_space<vmem>>, vector<768x58xbf16>
    %cst_14 = arith.constant dense<0.000000e+00> : vector<8x58xf32>
    %19 = tpu.matmul %17, %18, %cst_14 {dimension_numbers = #tpu.dot_dimension_numbers<[1], [0], [0], [1], [0, 0, 1, 1], [], []>} : vector<8x768xbf16>, vector<768x58xbf16>, vector<8x58xf32> -> vector<8x58xf32>
    %c0_15 = arith.constant 0 : index
    %c0_16 = arith.constant 0 : index
    %20 = vector.load %arg8[%c0_15, %c0_16] : memref<1x58xf32, #tpu.memory_space<vmem>>, vector<1x58xf32>
    %21 = vector.broadcast %20 : vector<1x58xf32> to vector<8x58xf32>
    %22 = arith.addf %19, %21 : vector<8x58xf32>
    %23 = vector.extract_strided_slice %22 {offsets = [0, 0], sizes = [8, 29], strides = [1, 1]} : vector<8x58xf32> to vector<8x29xf32>
    %24 = vector.extract_strided_slice %22 {offsets = [0, 29], sizes = [8, 29], strides = [1, 1]} : vector<8x58xf32> to vector<8x29xf32>
    %cst_17 = arith.constant -4.000000e+00 : f32
    %cst_18 = arith.constant 1.500000e+01 : f32
    %25 = vector.broadcast %cst_17 : f32 to vector<8x29xf32>
    %26 = arith.maximumf %25, %24 : vector<8x29xf32>
    %27 = vector.broadcast %cst_18 : f32 to vector<8x29xf32>
    %28 = arith.minimumf %27, %26 : vector<8x29xf32>
    %29 = math.exp %28 : vector<8x29xf32>
    %c0_19 = arith.constant 0 : index
    %c0_20 = arith.constant 0 : index
    %30 = vector.load %arg2[%c0_19, %c0_20] : memref<8x29xf32, #tpu.memory_space<vmem>>, vector<8x29xf32>
    %31 = arith.mulf %29, %30 : vector<8x29xf32>
    %32 = arith.addf %23, %31 : vector<8x29xf32>
    %33 = tpu.concatenate %0, %32 in 1 : vector<8x29xf32>, vector<8x29xf32> -> vector<8x58xf32>
    %34 = arith.truncf %33 : vector<8x58xf32> to vector<8x58xbf16>
    %c0_21 = arith.constant 0 : index
    %c0_22 = arith.constant 0 : index
    %35 = vector.load %arg9[%c0_21, %c0_22] : memref<58x768xbf16, #tpu.memory_space<vmem>>, vector<58x768xbf16>
    %cst_23 = arith.constant dense<0.000000e+00> : vector<8x768xf32>
    %36 = tpu.matmul %34, %35, %cst_23 {dimension_numbers = #tpu.dot_dimension_numbers<[1], [0], [0], [1], [0, 0, 1, 1], [], []>} : vector<8x58xbf16>, vector<58x768xbf16>, vector<8x768xf32> -> vector<8x768xf32>
    %c0_24 = arith.constant 0 : index
    %c0_25 = arith.constant 0 : index
    %37 = vector.load %arg10[%c0_24, %c0_25] : memref<1x768xf32, #tpu.memory_space<vmem>>, vector<1x768xf32>
    %38 = vector.broadcast %37 : vector<1x768xf32> to vector<8x768xf32>
    %39 = arith.addf %36, %38 : vector<8x768xf32>
    %cst_26 = arith.constant 0.000000e+00 : f32
    %40 = vector.broadcast %cst_26 : f32 to vector<8x768xf32>
    %41 = arith.maximumf %39, %40 : vector<8x768xf32>
    %42 = arith.truncf %41 : vector<8x768xf32> to vector<8x768xbf16>
    %c0_27 = arith.constant 0 : index
    %c0_28 = arith.constant 0 : index
    %43 = vector.load %arg11[%c0_27, %c0_28] : memref<768x768xbf16, #tpu.memory_space<vmem>>, vector<768x768xbf16>
    %cst_29 = arith.constant dense<0.000000e+00> : vector<8x768xf32>
    %44 = tpu.matmul %42, %43, %cst_29 {dimension_numbers = #tpu.dot_dimension_numbers<[1], [0], [0], [1], [0, 0, 1, 1], [], []>} : vector<8x768xbf16>, vector<768x768xbf16>, vector<8x768xf32> -> vector<8x768xf32>
    %c0_30 = arith.constant 0 : index
    %c0_31 = arith.constant 0 : index
    %45 = vector.load %arg12[%c0_30, %c0_31] : memref<1x768xf32, #tpu.memory_space<vmem>>, vector<1x768xf32>
    %46 = vector.broadcast %45 : vector<1x768xf32> to vector<8x768xf32>
    %47 = arith.addf %44, %46 : vector<8x768xf32>
    %cst_32 = arith.constant 0.000000e+00 : f32
    %48 = vector.broadcast %cst_32 : f32 to vector<8x768xf32>
    %49 = arith.maximumf %47, %48 : vector<8x768xf32>
    %50 = arith.truncf %49 : vector<8x768xf32> to vector<8x768xbf16>
    %c0_33 = arith.constant 0 : index
    %c0_34 = arith.constant 0 : index
    %51 = vector.load %arg13[%c0_33, %c0_34] : memref<768x29xbf16, #tpu.memory_space<vmem>>, vector<768x29xbf16>
    %cst_35 = arith.constant dense<0.000000e+00> : vector<8x29xf32>
    %52 = tpu.matmul %50, %51, %cst_35 {dimension_numbers = #tpu.dot_dimension_numbers<[1], [0], [0], [1], [0, 0, 1, 1], [], []>} : vector<8x768xbf16>, vector<768x29xbf16>, vector<8x29xf32> -> vector<8x29xf32>
    %c0_36 = arith.constant 0 : index
    %c0_37 = arith.constant 0 : index
    %53 = vector.load %arg14[%c0_36, %c0_37] : memref<1x29xf32, #tpu.memory_space<vmem>>, vector<1x29xf32>
    %54 = vector.broadcast %53 : vector<1x29xf32> to vector<8x29xf32>
    %55 = arith.addf %52, %54 : vector<8x29xf32>
    %c0_38 = arith.constant 0 : index
    %c0_39 = arith.constant 0 : index
    %56 = vector.load %arg15[%c0_38, %c0_39] : memref<8x29xf32, #tpu.memory_space<vmem>>, vector<8x29xf32>
    tpu.vector_store %arg15[%c0_38, %c0_39], %55 {strides = array<i32>} : memref<8x29xf32, #tpu.memory_space<vmem>>, vector<8x29xf32>,
    %c0_40 = arith.constant 0 : index
    %c0_41 = arith.constant 0 : index
    %57 = vector.load %arg16[%c0_40, %c0_41] : memref<8x29xf32, #tpu.memory_space<vmem>>, vector<8x29xf32>
    tpu.vector_store %arg16[%c0_40, %c0_41], %23 {strides = array<i32>} : memref<8x29xf32, #tpu.memory_space<vmem>>, vector<8x29xf32>,
    %c0_42 = arith.constant 0 : index
    %c0_43 = arith.constant 0 : index
    %58 = vector.load %arg17[%c0_42, %c0_43] : memref<8x29xf32, #tpu.memory_space<vmem>>, vector<8x29xf32>
    tpu.vector_store %arg17[%c0_42, %c0_43], %29 {strides = array<i32>} : memref<8x29xf32, #tpu.memory_space<vmem>>, vector<8x29xf32>,
    return
  }
  func.func @transform_0(%arg0: i32) -> (i32, i32) {
    %c0_i32 = arith.constant 0 : i32
    %c0_i32_0 = arith.constant 0 : i32
    return %arg0, %c0_i32 : i32, i32
  }
  func.func @transform_1(%arg0: i32) -> (i32, i32) {
    %c0_i32 = arith.constant 0 : i32
    %c0_i32_0 = arith.constant 0 : i32
    return %arg0, %c0_i32 : i32, i32
  }
  func.func @transform_2(%arg0: i32) -> (i32, i32) {
    %c0_i32 = arith.constant 0 : i32
    %c0_i32_0 = arith.constant 0 : i32
    %c0_i32_1 = arith.constant 0 : i32
    return %c0_i32, %c0_i32_0 : i32, i32
  }
  func.func @transform_3(%arg0: i32) -> (i32, i32) {
    %c0_i32 = arith.constant 0 : i32
    %c0_i32_0 = arith.constant 0 : i32
    %c0_i32_1 = arith.constant 0 : i32
    return %c0_i32, %c0_i32_0 : i32, i32
  }
  func.func @transform_4(%arg0: i32) -> (i32, i32) {
    %c0_i32 = arith.constant 0 : i32
    %c0_i32_0 = arith.constant 0 : i32
    %c0_i32_1 = arith.constant 0 : i32
    return %c0_i32, %c0_i32_0 : i32, i32
  }
  func.func @transform_5(%arg0: i32) -> (i32, i32) {
    %c0_i32 = arith.constant 0 : i32
    %c0_i32_0 = arith.constant 0 : i32
    %c0_i32_1 = arith.constant 0 : i32
    return %c0_i32, %c0_i32_0 : i32, i32
  }
  func.func @transform_6(%arg0: i32) -> (i32, i32) {
    %c0_i32 = arith.constant 0 : i32
    %c0_i32_0 = arith.constant 0 : i32
    %c0_i32_1 = arith.constant 0 : i32
    return %c0_i32, %c0_i32_0 : i32, i32
  }
  func.func @transform_7(%arg0: i32) -> (i32, i32) {
    %c0_i32 = arith.constant 0 : i32
    %c0_i32_0 = arith.constant 0 : i32
    %c0_i32_1 = arith.constant 0 : i32
    return %c0_i32, %c0_i32_0 : i32, i32
  }
  func.func @transform_8(%arg0: i32) -> (i32, i32) {
    %c0_i32 = arith.constant 0 : i32
    %c0_i32_0 = arith.constant 0 : i32
    %c0_i32_1 = arith.constant 0 : i32
    return %c0_i32, %c0_i32_0 : i32, i32
  }
  func.func @transform_9(%arg0: i32) -> (i32, i32) {
    %c0_i32 = arith.constant 0 : i32
    %c0_i32_0 = arith.constant 0 : i32
    %c0_i32_1 = arith.constant 0 : i32
    return %c0_i32, %c0_i32_0 : i32, i32
  }
  func.func @transform_10(%arg0: i32) -> (i32, i32) {
    %c0_i32 = arith.constant 0 : i32
    %c0_i32_0 = arith.constant 0 : i32
    %c0_i32_1 = arith.constant 0 : i32
    return %c0_i32, %c0_i32_0 : i32, i32
  }
  func.func @transform_11(%arg0: i32) -> (i32, i32) {
    %c0_i32 = arith.constant 0 : i32
    %c0_i32_0 = arith.constant 0 : i32
    %c0_i32_1 = arith.constant 0 : i32
    return %c0_i32, %c0_i32_0 : i32, i32
  }
  func.func @transform_12(%arg0: i32) -> (i32, i32) {
    %c0_i32 = arith.constant 0 : i32
    %c0_i32_0 = arith.constant 0 : i32
    %c0_i32_1 = arith.constant 0 : i32
    return %c0_i32, %c0_i32_0 : i32, i32
  }
  func.func @transform_13(%arg0: i32) -> (i32, i32) {
    %c0_i32 = arith.constant 0 : i32
    %c0_i32_0 = arith.constant 0 : i32
    %c0_i32_1 = arith.constant 0 : i32
    return %c0_i32, %c0_i32_0 : i32, i32
  }
  func.func @transform_14(%arg0: i32) -> (i32, i32) {
    %c0_i32 = arith.constant 0 : i32
    %c0_i32_0 = arith.constant 0 : i32
    return %arg0, %c0_i32 : i32, i32
  }
  func.func @transform_15(%arg0: i32) -> (i32, i32) {
    %c0_i32 = arith.constant 0 : i32
    %c0_i32_0 = arith.constant 0 : i32
    return %arg0, %c0_i32 : i32, i32
  }
  func.func @transform_16(%arg0: i32) -> (i32, i32) {
    %c0_i32 = arith.constant 0 : i32
    %c0_i32_0 = arith.constant 0 : i32
    return %arg0, %c0_i32 : i32, i32
  }
}

</mosaic_0001>

<llo_original>
// kernel: tpu_custom_call.1
$region0: #{tpu_custom_call.1}
  #allocation0 [shape = 'u32[]', space=smem, size = 0x4, offset = 0x4, fixed_abs, tag = 'smem constant byte address 0x4 - core index']
  #allocation1 [shape = 'u32[144,128]{1,0:T(1,128)}', space=vmem, size = 0x12000, scoped, tag = 'internal scratch']
  %s0 = inlined_call_operand.hbm [shape: f32[8,29], index: 0, kind: input, shape index: {}]
  %s1 = inlined_call_operand.hbm [shape: f32[8,29], index: 1, kind: input, shape index: {}]
  %s2 = inlined_call_operand.hbm [shape: bf16[29,768], index: 2, kind: input, shape index: {}]
  %s3 = inlined_call_operand.hbm [shape: f32[1,768], index: 3, kind: input, shape index: {}]
  %s4 = inlined_call_operand.hbm [shape: bf16[768,768], index: 4, kind: input, shape index: {}]
  %s5 = inlined_call_operand.hbm [shape: f32[1,768], index: 5, kind: input, shape index: {}]
  %s6 = inlined_call_operand.vmem [shape: bf16[768,58], index: 6, kind: input, shape index: {}]
  %s7 = inlined_call_operand.hbm [shape: f32[1,58], index: 7, kind: input, shape index: {}]
  %s8 = inlined_call_operand.hbm [shape: bf16[58,768], index: 8, kind: input, shape index: {}]
  %s9 = inlined_call_operand.hbm [shape: f32[1,768], index: 9, kind: input, shape index: {}]
  %s10 = inlined_call_operand.hbm [shape: bf16[768,768], index: 10, kind: input, shape index: {}]
  %s11 = inlined_call_operand.hbm [shape: f32[1,768], index: 11, kind: input, shape index: {}]
  %s12 = inlined_call_operand.vmem [shape: bf16[768,29], index: 12, kind: input, shape index: {}]
  %s13 = inlined_call_operand.hbm [shape: f32[1,29], index: 13, kind: input, shape index: {}]
  %s14 = inlined_call_operand.hbm [shape: f32[8,29], index: 14, kind: output, shape index: {0}]
  %s15 = inlined_call_operand.hbm [shape: f32[8,29], index: 15, kind: output, shape index: {1}]
  %s16 = inlined_call_operand.hbm [shape: f32[8,29], index: 16, kind: output, shape index: {2}]
  %17 = xla_tuple %s14, %s15, %s16
  %s18 = sld [smem:[#allocation0]]
  $region130: #{tpu_custom_call.1} parent=0
    _
  %s20 = ssub.s32 1, %s18
  %s21 = scalar_select 0, %s20, %s18
  $region1: #{tpu_custom_call.1} parent=0
    #allocation2 [shape = 'u8[4096]{0}', space=vmem, size = 0x1000, scoped, tag = 'input window, operand 0, single buffered']
    #allocation3 [shape = 's32[1]{0}', space=sflag, size = 0x4, scoped, tag = 'scoped memory for tpu_custom_call.1']
    #allocation4 [shape = 's32[1]{0}', space=sflag, size = 0x4, scoped, tag = 'scoped memory for tpu_custom_call.1']
    #allocation5 [shape = 'u8[4096]{0}', space=vmem, size = 0x1000, scoped, tag = 'input window, operand 1, single buffered']
    #allocation6 [shape = 's32[1]{0}', space=sflag, size = 0x4, scoped, tag = 'scoped memory for tpu_custom_call.1']
    #allocation7 [shape = 'u8[49152]{0}', space=vmem, size = 0xc000, scoped, tag = 'input window, operand 2, single buffered']
    #allocation8 [shape = 'u8[3072]{0}', space=vmem, size = 0xc00, scoped, tag = 'input window, operand 3, single buffered']
    #allocation9 [shape = 's32[1]{0}', space=sflag, size = 0x4, scoped, tag = 'scoped memory for tpu_custom_call.1']
    #allocation10 [shape = 'u8[1179648]{0}', space=vmem, size = 0x120000, scoped, tag = 'input window, operand 4, single buffered']
    #allocation11 [shape = 'u8[3072]{0}', space=vmem, size = 0xc00, scoped, tag = 'input window, operand 5, single buffered']
    #allocation12 [shape = 's32[1]{0}', space=sflag, size = 0x4, scoped, tag = 'scoped memory for tpu_custom_call.1']
    #allocation13 [shape = 'u8[512]{0}', space=vmem, size = 0x400, scoped, tag = 'input window, operand 7, single buffered']
    #allocation14 [shape = 'u8[98304]{0}', space=vmem, size = 0x18000, scoped, tag = 'input window, operand 8, single buffered']
    #allocation15 [shape = 's32[1]{0}', space=sflag, size = 0x4, scoped, tag = 'scoped memory for tpu_custom_call.1']
    #allocation16 [shape = 'u8[3072]{0}', space=vmem, size = 0xc00, scoped, tag = 'input window, operand 9, single buffered']
    #allocation17 [shape = 'u8[1179648]{0}', space=vmem, size = 0x120000, scoped, tag = 'input window, operand 10, single buffered']
    #allocation18 [shape = 's32[1]{0}', space=sflag, size = 0x4, scoped, tag = 'scoped memory for tpu_custom_call.1']
    #allocation19 [shape = 'u8[3072]{0}', space=vmem, size = 0xc00, scoped, tag = 'input window, operand 11, single buffered']
    #allocation20 [shape = 'u8[512]{0}', space=vmem, size = 0x400, scoped, tag = 'input window, operand 13, single buffered']
    #allocation21 [shape = 's32[1]{0}', space=sflag, size = 0x4, scoped, tag = 'scoped memory for tpu_custom_call.1']
    #allocation22 [shape = 'u8[4096]{0}', space=vmem, size = 0x1000, scoped, tag = 'output window, operand 0, single buffered']
    #allocation23 [shape = 'u8[4096]{0}', space=vmem, size = 0x1000, scoped, tag = 'output window, operand 1, single buffered']
    #allocation24 [shape = 's32[1]{0}', space=sflag, size = 0x4, scoped, tag = 'scoped memory for tpu_custom_call.1']
    #allocation25 [shape = 'u8[4096]{0}', space=vmem, size = 0x1000, scoped, tag = 'output window, operand 2, single buffered']
    %22 = vsyncpa [#allocation3], 0
    %23 = vsyncpa [#allocation6], 0
    %24 = vsyncpa [#allocation9], 0
    %25 = vsyncpa [#allocation12], 0
    %26 = vsyncpa [#allocation15], 0
    %27 = vsyncpa [#allocation18], 0
    %28 = vsyncpa [#allocation21], 0
    %29 = vsyncpa [#allocation4], 0
    %30 = vsyncpa [#allocation24], 0
    // Predicated region
    $region2: #{tpu_custom_call.1} parent=1 // pred_check
      _
    $region3: #{tpu_custom_call.1} parent=1 // pred_check_branch
      %32 = sbr.rel (0) target = $region5
    $region4: #{tpu_custom_call.1} parent=1 // pred_region
      %s34 = ssub.s32 128, 128
      %35 = vsyncadd [#allocation3], %s34
      %s37 = sshll.u32 [#allocation2], 4
      %s38 = int_to_ptr.vmem [resolvable:$true] %s37
      %40 = dma.hbm_to_vmem [thread:$0]  %s0, 128, %s38, [#allocation3]
    $region5: #{tpu_custom_call.1} parent=1 // pred_fallthru
      _
    // Predicated region
    $region6: #{tpu_custom_call.1} parent=1 // pred_check
      _
    $region7: #{tpu_custom_call.1} parent=1 // pred_check_branch
      %42 = sbr.rel (0) target = $region9
    $region8: #{tpu_custom_call.1} parent=1 // pred_region
      %s44 = ssub.s32 128, 128
      %45 = vsyncadd [#allocation6], %s44
      %s47 = sshll.u32 [#allocation5], 4
      %s48 = int_to_ptr.vmem [resolvable:$true] %s47
      %50 = dma.hbm_to_vmem [thread:$0]  %s1, 128, %s48, [#allocation6]
    $region9: #{tpu_custom_call.1} parent=1 // pred_fallthru
      _
    // Predicated region
    $region10: #{tpu_custom_call.1} parent=1 // pred_check
      _
    $region11: #{tpu_custom_call.1} parent=1 // pred_check_branch
      %52 = sbr.rel (0) target = $region13
    $region12: #{tpu_custom_call.1} parent=1 // pred_region
      %s54 = ssub.s32 1536, 1536
      %55 = vsyncadd [#allocation6], %s54
      %s56 = sshll.u32 [#allocation7], 4
      %s57 = int_to_ptr.vmem [resolvable:$true] %s56
      %62 = dma.hbm_to_vmem [thread:$0]  %s2, 1536, %s57, [#allocation6], 384, 384, 24
    $region13: #{tpu_custom_call.1} parent=1 // pred_fallthru
      _
    // Predicated region
    $region14: #{tpu_custom_call.1} parent=1 // pred_check
      _
    $region15: #{tpu_custom_call.1} parent=1 // pred_check_branch
      %64 = sbr.rel (0) target = $region17
    $region16: #{tpu_custom_call.1} parent=1 // pred_region
      %s66 = ssub.s32 96, 96
      %67 = vsyncadd [#allocation9], %s66
      %s69 = sshll.u32 [#allocation8], 4
      %s70 = int_to_ptr.vmem [resolvable:$true] %s69
      %72 = dma.hbm_to_vmem [thread:$0]  %s3, 96, %s70, [#allocation9]
    $region17: #{tpu_custom_call.1} parent=1 // pred_fallthru
      _
    // Predicated region
    $region18: #{tpu_custom_call.1} parent=1 // pred_check
      _
    $region19: #{tpu_custom_call.1} parent=1 // pred_check_branch
      %74 = sbr.rel (0) target = $region21
    $region20: #{tpu_custom_call.1} parent=1 // pred_region
      %s76 = ssub.s32 36864, 36864
      %77 = vsyncadd [#allocation9], %s76
      %s78 = sshll.u32 [#allocation10], 4
      %s79 = int_to_ptr.vmem [resolvable:$true] %s78
      %84 = dma.hbm_to_vmem [thread:$0]  %s4, 36864, %s79, [#allocation9], 384, 384, 24
    $region21: #{tpu_custom_call.1} parent=1 // pred_fallthru
      _
    // Predicated region
    $region22: #{tpu_custom_call.1} parent=1 // pred_check
      _
    $region23: #{tpu_custom_call.1} parent=1 // pred_check_branch
      %86 = sbr.rel (0) target = $region25
    $region24: #{tpu_custom_call.1} parent=1 // pred_region
      %s88 = ssub.s32 96, 96
      %89 = vsyncadd [#allocation12], %s88
      %s91 = sshll.u32 [#allocation11], 4
      %s92 = int_to_ptr.vmem [resolvable:$true] %s91
      %94 = dma.hbm_to_vmem [thread:$0]  %s5, 96, %s92, [#allocation12]
    $region25: #{tpu_custom_call.1} parent=1 // pred_fallthru
      _
    // Predicated region
    $region26: #{tpu_custom_call.1} parent=1 // pred_check
      _
    $region27: #{tpu_custom_call.1} parent=1 // pred_check_branch
      %96 = sbr.rel (0) target = $region29
    $region28: #{tpu_custom_call.1} parent=1 // pred_region
      _
    $region29: #{tpu_custom_call.1} parent=1 // pred_fallthru
      _
    // Predicated region
    $region30: #{tpu_custom_call.1} parent=1 // pred_check
      _
    $region31: #{tpu_custom_call.1} parent=1 // pred_check_branch
      %98 = sbr.rel (0) target = $region33
    $region32: #{tpu_custom_call.1} parent=1 // pred_region
      %s100 = ssub.s32 16, 16
      %101 = vsyncadd [#allocation12], %s100
      %s103 = sshll.u32 [#allocation13], 4
      %s104 = int_to_ptr.vmem [resolvable:$true] %s103
      %106 = dma.hbm_to_vmem [thread:$0]  %s7, 16, %s104, [#allocation12]
    $region33: #{tpu_custom_call.1} parent=1 // pred_fallthru
      _
    // Predicated region
    $region34: #{tpu_custom_call.1} parent=1 // pred_check
      _
    $region35: #{tpu_custom_call.1} parent=1 // pred_check_branch
      %108 = sbr.rel (0) target = $region37
    $region36: #{tpu_custom_call.1} parent=1 // pred_region
      %s110 = ssub.s32 3072, 3072
      %111 = vsyncadd [#allocation15], %s110
      %s112 = sshll.u32 [#allocation14], 4
      %s113 = int_to_ptr.vmem [resolvable:$true] %s112
      %118 = dma.hbm_to_vmem [thread:$0]  %s8, 3072, %s113, [#allocation15], 384, 384, 24
    $region37: #{tpu_custom_call.1} parent=1 // pred_fallthru
      _
    // Predicated region
    $region38: #{tpu_custom_call.1} parent=1 // pred_check
      _
    $region39: #{tpu_custom_call.1} parent=1 // pred_check_branch
      %120 = sbr.rel (0) target = $region41
    $region40: #{tpu_custom_call.1} parent=1 // pred_region
      %s122 = ssub.s32 96, 96
      %123 = vsyncadd [#allocation15], %s122
      %s125 = sshll.u32 [#allocation16], 4
      %s126 = int_to_ptr.vmem [resolvable:$true] %s125
      %128 = dma.hbm_to_vmem [thread:$0]  %s9, 96, %s126, [#allocation15]
    $region41: #{tpu_custom_call.1} parent=1 // pred_fallthru
      _
    // Predicated region
    $region42: #{tpu_custom_call.1} parent=1 // pred_check
      _
    $region43: #{tpu_custom_call.1} parent=1 // pred_check_branch
      %130 = sbr.rel (0) target = $region45
    $region44: #{tpu_custom_call.1} parent=1 // pred_region
      %s132 = ssub.s32 36864, 36864
      %133 = vsyncadd [#allocation18], %s132
      %s134 = sshll.u32 [#allocation17], 4
      %s135 = int_to_ptr.vmem [resolvable:$true] %s134
      %140 = dma.hbm_to_vmem [thread:$0]  %s10, 36864, %s135, [#allocation18], 384, 384, 24
    $region45: #{tpu_custom_call.1} parent=1 // pred_fallthru
      _
    // Predicated region
    $region46: #{tpu_custom_call.1} parent=1 // pred_check
      _
    $region47: #{tpu_custom_call.1} parent=1 // pred_check_branch
      %142 = sbr.rel (0) target = $region49
    $region48: #{tpu_custom_call.1} parent=1 // pred_region
      %s144 = ssub.s32 96, 96
      %145 = vsyncadd [#allocation18], %s144
      %s147 = sshll.u32 [#allocation19], 4
      %s148 = int_to_ptr.vmem [resolvable:$true] %s147
      %150 = dma.hbm_to_vmem [thread:$0]  %s11, 96, %s148, [#allocation18]
    $region49: #{tpu_custom_call.1} parent=1 // pred_fallthru
      _
    // Predicated region
    $region50: #{tpu_custom_call.1} parent=1 // pred_check
      _
    $region51: #{tpu_custom_call.1} parent=1 // pred_check_branch
      %152 = sbr.rel (0) target = $region53
    $region52: #{tpu_custom_call.1} parent=1 // pred_region
      _
    $region53: #{tpu_custom_call.1} parent=1 // pred_fallthru
      _
    // Predicated region
    $region54: #{tpu_custom_call.1} parent=1 // pred_check
      _
    $region55: #{tpu_custom_call.1} parent=1 // pred_check_branch
      %154 = sbr.rel (0) target = $region57
    $region56: #{tpu_custom_call.1} parent=1 // pred_region
      %s156 = ssub.s32 16, 16
      %157 = vsyncadd [#allocation21], %s156
      %s159 = sshll.u32 [#allocation20], 4
      %s160 = int_to_ptr.vmem [resolvable:$true] %s159
      %162 = dma.hbm_to_vmem [thread:$0]  %s13, 16, %s160, [#allocation21]
    $region57: #{tpu_custom_call.1} parent=1 // pred_fallthru
      _
    // Predicated region
    $region58: #{tpu_custom_call.1} parent=1 // pred_check
      _
    $region59: #{tpu_custom_call.1} parent=1 // pred_check_branch
      %164 = sbr.rel (0) target = $region61
    $region60: #{tpu_custom_call.1} parent=1 // pred_region
      %165 = dma.done [#allocation3], 128
    $region61: #{tpu_custom_call.1} parent=1 // pred_fallthru
      _
    // Predicated region
    $region62: #{tpu_custom_call.1} parent=1 // pred_check
      _
    $region63: #{tpu_custom_call.1} parent=1 // pred_check_branch
      %167 = sbr.rel (0) target = $region65
    $region64: #{tpu_custom_call.1} parent=1 // pred_region
      %168 = dma.done [#allocation6], 128
    $region65: #{tpu_custom_call.1} parent=1 // pred_fallthru
      _
    // Predicated region
    $region66: #{tpu_custom_call.1} parent=1 // pred_check
      _
    $region67: #{tpu_custom_call.1} parent=1 // pred_check_branch
      %170 = sbr.rel (0) target = $region69
    $region68: #{tpu_custom_call.1} parent=1 // pred_region
      %171 = dma.done [#allocation6], 1536
    $region69: #{tpu_custom_call.1} parent=1 // pred_fallthru
      _
    // Predicated region
    $region70: #{tpu_custom_call.1} parent=1 // pred_check
      _
    $region71: #{tpu_custom_call.1} parent=1 // pred_check_branch
      %173 = sbr.rel (0) target = $region73
    $region72: #{tpu_custom_call.1} parent=1 // pred_region
      %174 = dma.done [#allocation9], 96
    $region73: #{tpu_custom_call.1} parent=1 // pred_fallthru
      _
    // Predicated region
    $region74: #{tpu_custom_call.1} parent=1 // pred_check
      _
    $region75: #{tpu_custom_call.1} parent=1 // pred_check_branch
      %176 = sbr.rel (0) target = $region77
    $region76: #{tpu_custom_call.1} parent=1 // pred_region
      %177 = dma.done [#allocation9], 36864
    $region77: #{tpu_custom_call.1} parent=1 // pred_fallthru
      _
    // Predicated region
    $region78: #{tpu_custom_call.1} parent=1 // pred_check
      _
    $region79: #{tpu_custom_call.1} parent=1 // pred_check_branch
      %179 = sbr.rel (0) target = $region81
    $region80: #{tpu_custom_call.1} parent=1 // pred_region
      %180 = dma.done [#allocation12], 96
    $region81: #{tpu_custom_call.1} parent=1 // pred_fallthru
      _
    // Predicated region
    $region82: #{tpu_custom_call.1} parent=1 // pred_check
      _
    $region83: #{tpu_custom_call.1} parent=1 // pred_check_branch
      %182 = sbr.rel (0) target = $region85
    $region84: #{tpu_custom_call.1} parent=1 // pred_region
      %183 = dma.done [#allocation12], 16
    $region85: #{tpu_custom_call.1} parent=1 // pred_fallthru
      _
    // Predicated region
    $region86: #{tpu_custom_call.1} parent=1 // pred_check
      _
    $region87: #{tpu_custom_call.1} parent=1 // pred_check_branch
      %185 = sbr.rel (0) target = $region89
    $region88: #{tpu_custom_call.1} parent=1 // pred_region
      %186 = dma.done [#allocation15], 3072
    $region89: #{tpu_custom_call.1} parent=1 // pred_fallthru
      _
    // Predicated region
    $region90: #{tpu_custom_call.1} parent=1 // pred_check
      _
    $region91: #{tpu_custom_call.1} parent=1 // pred_check_branch
      %188 = sbr.rel (0) target = $region93
    $region92: #{tpu_custom_call.1} parent=1 // pred_region
      %189 = dma.done [#allocation15], 96
    $region93: #{tpu_custom_call.1} parent=1 // pred_fallthru
      _
    // Predicated region
    $region94: #{tpu_custom_call.1} parent=1 // pred_check
      _
    $region95: #{tpu_custom_call.1} parent=1 // pred_check_branch
      %191 = sbr.rel (0) target = $region97
    $region96: #{tpu_custom_call.1} parent=1 // pred_region
      %192 = dma.done [#allocation18], 36864
    $region97: #{tpu_custom_call.1} parent=1 // pred_fallthru
      _
    // Predicated region
    $region98: #{tpu_custom_call.1} parent=1 // pred_check
      _
    $region99: #{tpu_custom_call.1} parent=1 // pred_check_branch
      %194 = sbr.rel (0) target = $region101
    $region100: #{tpu_custom_call.1} parent=1 // pred_region
      %195 = dma.done [#allocation18], 96
    $region101: #{tpu_custom_call.1} parent=1 // pred_fallthru
      _
    // Predicated region
    $region102: #{tpu_custom_call.1} parent=1 // pred_check
      _
    $region103: #{tpu_custom_call.1} parent=1 // pred_check_branch
      %197 = sbr.rel (0) target = $region105
    $region104: #{tpu_custom_call.1} parent=1 // pred_region
      %198 = dma.done [#allocation21], 16
    $region105: #{tpu_custom_call.1} parent=1 // pred_fallthru
      _
    %v200 = vld [vmem:[#allocation2] sm:$0xff]
    %v201 = vpack.c.bf16 %v200, %v200
    %v202 = vld [vmem:[#allocation7] sm:$0xff]
    %v203 = vld [vmem:[#allocation7 + $0x8] sm:$0xff]
    %v204 = vld [vmem:[#allocation7 + $0x10] sm:$0xff]
    %v205 = vld [vmem:[#allocation7 + $0x18] sm:$0xff]
    %v206 = vld [vmem:[#allocation7 + $0x20] sm:$0xff]
    %v207 = vld [vmem:[#allocation7 + $0x28] sm:$0xff]
    %v208 = vld [vmem:[#allocation7 + $0x30] sm:$0xff]
    %v209 = vld [vmem:[#allocation7 + $0x38] sm:$0xff]
    %v210 = vld [vmem:[#allocation7 + $0x40] sm:$0xff]
    %v211 = vld [vmem:[#allocation7 + $0x48] sm:$0x77]
    %v212 = vld [vmem:[#allocation7 + $0x50] sm:$0x77]
    %v213 = vld [vmem:[#allocation7 + $0x58] sm:$0x77]
    %v214 = vld [vmem:[#allocation8] sm:$0x3f]
    %v216 = vlaneseq
    %v217 = vshrl.u32 %v216, 7
    %v218 = vsub.s32 0, %v217
    %v219 = vrot.slane %v214, %v218
    %v220 = vlaneseq
    %v221 = vshrl.u32 %v220, 7
    %v222 = vsub.s32 1, %v221
    %v223 = vrot.slane %v214, %v222
    %v224 = vlaneseq
    %v225 = vshrl.u32 %v224, 7
    %v226 = vsub.s32 2, %v225
    %v227 = vrot.slane %v214, %v226
    %v228 = vlaneseq
    %v229 = vshrl.u32 %v228, 7
    %v230 = vsub.s32 3, %v229
    %v231 = vrot.slane %v214, %v230
    %v232 = vlaneseq
    %v233 = vshrl.u32 %v232, 7
    %v234 = vsub.s32 4, %v233
    %v235 = vrot.slane %v214, %v234
    %v236 = vlaneseq
    %v237 = vshrl.u32 %v236, 7
    %v238 = vsub.s32 5, %v237
    %v239 = vrot.slane %v214, %v238
    %v258 = vunpack.c.l.b16 %v202
    %v259 = vunpack.c.h.b16 %v202
    %v260 = vunpack.c.l.b16 %v203
    %v261 = vunpack.c.h.b16 %v203
    %v262 = vunpack.c.l.b16 %v204
    %v263 = vunpack.c.h.b16 %v204
    %v264 = vunpack.c.l.b16 %v205
    %v265 = vunpack.c.h.b16 %v205
    %v266 = vunpack.c.l.b16 %v206
    %v267 = vunpack.c.h.b16 %v206
    %v268 = vunpack.c.l.b16 %v207
    %v269 = vunpack.c.h.b16 %v207
    %v270 = vunpack.c.l.b16 %v208
    %v271 = vunpack.c.h.b16 %v208
    %v272 = vunpack.c.l.b16 %v209
    %v273 = vunpack.c.h.b16 %v209
    %v274 = vunpack.c.l.b16 %v210
    %v275 = vunpack.c.h.b16 %v210
    %v276 = vunpack.c.l.b16 %v211
    %v277 = vunpack.c.h.b16 %v211
    %v278 = vunpack.c.l.b16 %v212
    %v279 = vunpack.c.h.b16 %v212
    %v280 = vunpack.c.l.b16 %v213
    %v281 = vunpack.c.h.b16 %v213
    %v282 = vpack.c.b16 %v264, %v258
    %v283 = vpack.c.b16 %v265, %v259
    %v284 = vpack.c.b16 %v266, %v260
    %v285 = vpack.c.b16 %v267, %v261
    %v286 = vpack.c.b16 %v268, %v262
    %v287 = vpack.c.b16 %v269, %v263
    %v288 = vpack.c.b16 %v276, %v270
    %v289 = vpack.c.b16 %v277, %v271
    %v290 = vpack.c.b16 %v278, %v272
    %v291 = vpack.c.b16 %v279, %v273
    %v292 = vpack.c.b16 %v280, %v274
    %v293 = vpack.c.b16 %v281, %v275
    %vm300 = vcmask 236544
    %v302 = vsel %vm300, %v201, 0
    %vm304 = vcmask 1045504
    %vm305 = vcmask 1046528
    %v306 = vsel %vm304, 4294967295, 65535
    %v307 = vsel %vm305, %v306, 0
    %v309 = vand.u32 %v288, %v307
    %v312 = vand.u32 %v289, %v307
    %v315 = vand.u32 %v290, %v307
    %v318 = vand.u32 %v291, %v307
    %v321 = vand.u32 %v292, %v307
    %v324 = vand.u32 %v293, %v307
    %326 = vmatprep.subr.bf16.mxu0 0
    %327 = vmatpush1.bf16.msra.mxu0 0
    %328 = vmatprep.subr.bf16.mxu0 0
    %329 = vmatpush1.bf16.msra.mxu0 0
    %330 = vmatprep.subr.bf16.mxu0 0
    %331 = vmatpush1.bf16.msra.mxu0 0
    %332 = vmatprep.subr.bf16.mxu0 0
    %333 = vmatpush1.bf16.msra.mxu0 0
    %334 = vmatprep.subr.bf16.mxu0 0
    %335 = vmatpush1.bf16.msra.mxu0 0
    %336 = vmatprep.subr.bf16.mxu0 0
    %337 = vmatpush1.bf16.msra.mxu0 0
    %338 = vmatprep.subr.bf16.mxu0 %v312
    %339 = vmatpush1.bf16.msra.mxu0 %v309
    %340 = vmatprep.subr.bf16.mxu0 %v283
    %341 = vmatpush1.bf16.msra.mxu0 %v282
    %342 = vmatprep.subr.bf16.mxu0 0
    %343 = vmatpush2.bf16.msra.mxu0 0
    %344 = vmatprep.subr.bf16.mxu0 0
    %345 = vmatpush2.bf16.msra.mxu0 0
    %346 = vmatprep.subr.bf16.mxu0 0
    %347 = vmatpush2.bf16.msra.mxu0 0
    %348 = vmatprep.subr.bf16.mxu0 0
    %349 = vmatpush2.bf16.msra.mxu0 0
    %350 = vmatprep.subr.bf16.mxu0 0
    %351 = vmatpush2.bf16.msra.mxu0 0
    %352 = vmatprep.subr.bf16.mxu0 0
    %353 = vmatpush2.bf16.msra.mxu0 0
    %354 = vmatprep.subr.bf16.mxu0 0
    %355 = vmatpush2.bf16.msra.mxu0 0
    %356 = vmatprep.subr.bf16.mxu0 0
    %357 = vmatpush2.bf16.msra.mxu0 0
    %358 = vmatprep.mubr.bf16.mxu0 0
    %359 = vmatmul.mubr.bf16.gmra.mxu0 %v302
    %v360 = vpop.f32.mrf.mxu0
    %v361 = vadd.f32 %v219, %v360
    %v362 = vpop.f32.mrf.mxu0
    %v363 = vadd.f32 %v223, %v362
    %v364 = vpop.f32.mrf.mxu0
    %v365 = vpop.f32.mrf.mxu0
    %366 = vdwg.mxu0
    %367 = vmatprep.subr.bf16.mxu0 0
    %368 = vmatpush1.bf16.msra.mxu0 0
    %369 = vmatprep.subr.bf16.mxu0 0
    %370 = vmatpush1.bf16.msra.mxu0 0
    %371 = vmatprep.subr.bf16.mxu0 0
    %372 = vmatpush1.bf16.msra.mxu0 0
    %373 = vmatprep.subr.bf16.mxu0 0
    %374 = vmatpush1.bf16.msra.mxu0 0
    %375 = vmatprep.subr.bf16.mxu0 0
    %376 = vmatpush1.bf16.msra.mxu0 0
    %377 = vmatprep.subr.bf16.mxu0 0
    %378 = vmatpush1.bf16.msra.mxu0 0
    %379 = vmatprep.subr.bf16.mxu0 %v318
    %380 = vmatpush1.bf16.msra.mxu0 %v315
    %381 = vmatprep.subr.bf16.mxu0 %v285
    %382 = vmatpush1.bf16.msra.mxu0 %v284
    %383 = vmatprep.subr.bf16.mxu0 0
    %384 = vmatpush2.bf16.msra.mxu0 0
    %385 = vmatprep.subr.bf16.mxu0 0
    %386 = vmatpush2.bf16.msra.mxu0 0
    %387 = vmatprep.subr.bf16.mxu0 0
    %388 = vmatpush2.bf16.msra.mxu0 0
    %389 = vmatprep.subr.bf16.mxu0 0
    %390 = vmatpush2.bf16.msra.mxu0 0
    %391 = vmatprep.subr.bf16.mxu0 0
    %392 = vmatpush2.bf16.msra.mxu0 0
    %393 = vmatprep.subr.bf16.mxu0 0
    %394 = vmatpush2.bf16.msra.mxu0 0
    %395 = vmatprep.subr.bf16.mxu0 0
    %396 = vmatpush2.bf16.msra.mxu0 0
    %397 = vmatprep.subr.bf16.mxu0 0
    %398 = vmatpush2.bf16.msra.mxu0 0
    %399 = vmatprep.mubr.bf16.mxu0 0
    %400 = vmatmul.mubr.bf16.gmra.mxu0 %v302
    %v401 = vpop.f32.mrf.mxu0
    %v402 = vadd.f32 %v227, %v401
    %v403 = vpop.f32.mrf.mxu0
    %v404 = vadd.f32 %v231, %v403
    %v405 = vpop.f32.mrf.mxu0
    %v406 = vpop.f32.mrf.mxu0
    %407 = vdwg.mxu0
    %408 = vmatprep.subr.bf16.mxu0 0
    %409 = vmatpush1.bf16.msra.mxu0 0
    %410 = vmatprep.subr.bf16.mxu0 0
    %411 = vmatpush1.bf16.msra.mxu0 0
    %412 = vmatprep.subr.bf16.mxu0 0
    %413 = vmatpush1.bf16.msra.mxu0 0
    %414 = vmatprep.subr.bf16.mxu0 0
    %415 = vmatpush1.bf16.msra.mxu0 0
    %416 = vmatprep.subr.bf16.mxu0 0
    %417 = vmatpush1.bf16.msra.mxu0 0
    %418 = vmatprep.subr.bf16.mxu0 0
    %419 = vmatpush1.bf16.msra.mxu0 0
    %420 = vmatprep.subr.bf16.mxu0 %v324
    %421 = vmatpush1.bf16.msra.mxu0 %v321
    %422 = vmatprep.subr.bf16.mxu0 %v287
    %423 = vmatpush1.bf16.msra.mxu0 %v286
    %424 = vmatprep.subr.bf16.mxu0 0
    %425 = vmatpush2.bf16.msra.mxu0 0
    %426 = vmatprep.subr.bf16.mxu0 0
    %427 = vmatpush2.bf16.msra.mxu0 0
    %428 = vmatprep.subr.bf16.mxu0 0
    %429 = vmatpush2.bf16.msra.mxu0 0
    %430 = vmatprep.subr.bf16.mxu0 0
    %431 = vmatpush2.bf16.msra.mxu0 0
    %432 = vmatprep.subr.bf16.mxu0 0
    %433 = vmatpush2.bf16.msra.mxu0 0
    %434 = vmatprep.subr.bf16.mxu0 0
    %435 = vmatpush2.bf16.msra.mxu0 0
    %436 = vmatprep.subr.bf16.mxu0 0
    %437 = vmatpush2.bf16.msra.mxu0 0
    %438 = vmatprep.subr.bf16.mxu0 0
    %439 = vmatpush2.bf16.msra.mxu0 0
    %440 = vmatprep.mubr.bf16.mxu0 0
    %441 = vmatmul.mubr.bf16.gmra.mxu0 %v302
    %v442 = vpop.f32.mrf.mxu0
    %v443 = vadd.f32 %v235, %v442
    %v444 = vpop.f32.mrf.mxu0
    %v445 = vadd.f32 %v239, %v444
    %v446 = vpop.f32.mrf.mxu0
    %v447 = vpop.f32.mrf.mxu0
    %448 = vdwg.mxu0
    %v449 = vmax.f32 %v361, 0.0
    %v450 = vmax.f32 %v363, 0.0
    %v451 = vmax.f32 %v402, 0.0
    %v452 = vmax.f32 %v404, 0.0
    %v453 = vmax.f32 %v443, 0.0
    %v454 = vmax.f32 %v445, 0.0
    %v455 = vpack.c.bf16 %v449, %v449
    %v456 = vpack.c.bf16 %v450, %v450
    %v457 = vpack.c.bf16 %v451, %v451
    %v458 = vpack.c.bf16 %v452, %v452
    %v459 = vpack.c.bf16 %v453, %v453
    %v460 = vpack.c.bf16 %v454, %v454
    %v461 = vld [vmem:[#allocation10] sm:$0xff]
    %v462 = vld [vmem:[#allocation10 + $0x8] sm:$0xff]
    %v463 = vld [vmem:[#allocation10 + $0x10] sm:$0xff]
    %v464 = vld [vmem:[#allocation10 + $0x18] sm:$0xff]
    %v465 = vld [vmem:[#allocation10 + $0x20] sm:$0xff]
    %v466 = vld [vmem:[#allocation10 + $0x28] sm:$0xff]
    %v467 = vld [vmem:[#allocation10 + $0x30] sm:$0xff]
    %v468 = vld [vmem:[#allocation10 + $0x38] sm:$0xff]
    %v469 = vld [vmem:[#allocation10 + $0x40] sm:$0xff]
    %v470 = vld [vmem:[#allocation10 + $0x48] sm:$0xff]
    %v471 = vld [vmem:[#allocation10 + $0x50] sm:$0xff]
    %v472 = vld [vmem:[#allocation10 + $0x58] sm:$0xff]
    %v473 = vld [vmem:[#allocation10 + $0x60] sm:$0xff]
    %v474 = vld [vmem:[#allocation10 + $0x68] sm:$0xff]
    %v475 = vld [vmem:[#allocation10 + $0x70] sm:$0xff]
    %v476 = vld [vmem:[#allocation10 + $0x78] sm:$0xff]
    %v477 = vld [vmem:[#allocation10 + $0x80] sm:$0xff]
    %v478 = vld [vmem:[#allocation10 + $0x88] sm:$0xff]
    %v479 = vld [vmem:[#allocation10 + $0x90] sm:$0xff]
    %v480 = vld [vmem:[#allocation10 + $0x98] sm:$0xff]
    %v481 = vld [vmem:[#allocation10 + $0xa0] sm:$0xff]
    %v482 = vld [vmem:[#allocation10 + $0xa8] sm:$0xff]
    %v483 = vld [vmem:[#allocation10 + $0xb0] sm:$0xff]
    %v484 = vld [vmem:[#allocation10 + $0xb8] sm:$0xff]
    %v485 = vld [vmem:[#allocation10 + $0xc0] sm:$0xff]
    %v486 = vld [vmem:[#allocation10 + $0xc8] sm:$0xff]
    %v487 = vld [vmem:[#allocation10 + $0xd0] sm:$0xff]
    %v488 = vld [vmem:[#allocation10 + $0xd8] sm:$0xff]
    %v489 = vld [vmem:[#allocation10 + $0xe0] sm:$0xff]
    %v490 = vld [vmem:[#allocation10 + $0xe8] sm:$0xff]
    %v491 = vld [vmem:[#allocation10 + $0xf0] sm:$0xff]
    %v492 = vld [vmem:[#allocation10 + $0xf8] sm:$0xff]
    %v493 = vld [vmem:[#allocation10 + $0x100] sm:$0xff]
    %v494 = vld [vmem:[#allocation10 + $0x108] sm:$0xff]
    %v495 = vld [vmem:[#allocation10 + $0x110] sm:$0xff]
    %v496 = vld [vmem:[#allocation10 + $0x118] sm:$0xff]
    %v497 = vld [vmem:[#allocation10 + $0x120] sm:$0xff]
    %v498 = vld [vmem:[#allocation10 + $0x128] sm:$0xff]
    %v499 = vld [vmem:[#allocation10 + $0x130] sm:$0xff]
    %v500 = vld [vmem:[#allocation10 + $0x138] sm:$0xff]
    %v501 = vld [vmem:[#allocation10 + $0x140] sm:$0xff]
    %v502 = vld [vmem:[#allocation10 + $0x148] sm:$0xff]
    %v503 = vld [vmem:[#allocation10 + $0x150] sm:$0xff]
    %v504 = vld [vmem:[#allocation10 + $0x158] sm:$0xff]
    %v505 = vld [vmem:[#allocation10 + $0x160] sm:$0xff]
    %v506 = vld [vmem:[#allocation10 + $0x168] sm:$0xff]
    %v507 = vld [vmem:[#allocation10 + $0x170] sm:$0xff]
    %v508 = vld [vmem:[#allocation10 + $0x178] sm:$0xff]
    %v509 = vld [vmem:[#allocation10 + $0x180] sm:$0xff]
    %v510 = vld [vmem:[#allocation10 + $0x188] sm:$0xff]
    %v511 = vld [vmem:[#allocation10 + $0x190] sm:$0xff]
    %v512 = vld [vmem:[#allocation10 + $0x198] sm:$0xff]
    %v513 = vld [vmem:[#allocation10 + $0x1a0] sm:$0xff]
    %v514 = vld [vmem:[#allocation10 + $0x1a8] sm:$0xff]
    %v515 = vld [vmem:[#allocation10 + $0x1b0] sm:$0xff]
    %v516 = vld [vmem:[#allocation10 + $0x1b8] sm:$0xff]
    %v517 = vld [vmem:[#allocation10 + $0x1c0] sm:$0xff]
    %v518 = vld [vmem:[#allocation10 + $0x1c8] sm:$0xff]
    %v519 = vld [vmem:[#allocation10 + $0x1d0] sm:$0xff]
    %v520 = vld [vmem:[#allocation10 + $0x1d8] sm:$0xff]
    %v521 = vld [vmem:[#allocation10 + $0x1e0] sm:$0xff]
    %v522 = vld [vmem:[#allocation10 + $0x1e8] sm:$0xff]
    %v523 = vld [vmem:[#allocation10 + $0x1f0] sm:$0xff]
    %v524 = vld [vmem:[#allocation10 + $0x1f8] sm:$0xff]
    %v525 = vld [vmem:[#allocation10 + $0x200] sm:$0xff]
    %v526 = vld [vmem:[#allocation10 + $0x208] sm:$0xff]
    %v527 = vld [vmem:[#allocation10 + $0x210] sm:$0xff]
    %v528 = vld [vmem:[#allocation10 + $0x218] sm:$0xff]
    %v529 = vld [vmem:[#allocation10 + $0x220] sm:$0xff]
    %v530 = vld [vmem:[#allocation10 + $0x228] sm:$0xff]
    %v531 = vld [vmem:[#allocation10 + $0x230] sm:$0xff]
    %v532 = vld [vmem:[#allocation10 + $0x238] sm:$0xff]
    %v533 = vld [vmem:[#allocation10 + $0x240] sm:$0xff]
    %v534 = vld [vmem:[#allocation10 + $0x248] sm:$0xff]
    %v535 = vld [vmem:[#allocation10 + $0x250] sm:$0xff]
    %v536 = vld [vmem:[#allocation10 + $0x258] sm:$0xff]
    %v537 = vld [vmem:[#allocation10 + $0x260] sm:$0xff]
    %v538 = vld [vmem:[#allocation10 + $0x268] sm:$0xff]
    %v539 = vld [vmem:[#allocation10 + $0x270] sm:$0xff]
    %v540 = vld [vmem:[#allocation10 + $0x278] sm:$0xff]
    %v541 = vld [vmem:[#allocation10 + $0x280] sm:$0xff]
    %v542 = vld [vmem:[#allocation10 + $0x288] sm:$0xff]
    %v543 = vld [vmem:[#allocation10 + $0x290] sm:$0xff]
    %v544 = vld [vmem:[#allocation10 + $0x298] sm:$0xff]
    %v545 = vld [vmem:[#allocation10 + $0x2a0] sm:$0xff]
    %v546 = vld [vmem:[#allocation10 + $0x2a8] sm:$0xff]
    %v547 = vld [vmem:[#allocation10 + $0x2b0] sm:$0xff]
    %v548 = vld [vmem:[#allocation10 + $0x2b8] sm:$0xff]
    %v549 = vld [vmem:[#allocation10 + $0x2c0] sm:$0xff]
    %v550 = vld [vmem:[#allocation10 + $0x2c8] sm:$0xff]
    %v551 = vld [vmem:[#allocation10 + $0x2d0] sm:$0xff]
    %v552 = vld [vmem:[#allocation10 + $0x2d8] sm:$0xff]
    %v553 = vld [vmem:[#allocation10 + $0x2e0] sm:$0xff]
    %v554 = vld [vmem:[#allocation10 + $0x2e8] sm:$0xff]
    %v555 = vld [vmem:[#allocation10 + $0x2f0] sm:$0xff]
    %v556 = vld [vmem:[#allocation10 + $0x2f8] sm:$0xff]
    %v557 = vld [vmem:[#allocation10 + $0x300] sm:$0xff]
    %v558 = vld [vmem:[#allocation10 + $0x308] sm:$0xff]
    %v559 = vld [vmem:[#allocation10 + $0x310] sm:$0xff]
    %v560 = vld [vmem:[#allocation10 + $0x318] sm:$0xff]
    %v561 = vld [vmem:[#allocation10 + $0x320] sm:$0xff]
    %v562 = vld [vmem:[#allocation10 + $0x328] sm:$0xff]
    %v563 = vld [vmem:[#allocation10 + $0x330] sm:$0xff]
    %v564 = vld [vmem:[#allocation10 + $0x338] sm:$0xff]
    %v565 = vld [vmem:[#allocation10 + $0x340] sm:$0xff]
    %v566 = vld [vmem:[#allocation10 + $0x348] sm:$0xff]
    %v567 = vld [vmem:[#allocation10 + $0x350] sm:$0xff]
    %v568 = vld [vmem:[#allocation10 + $0x358] sm:$0xff]
    %v569 = vld [vmem:[#allocation10 + $0x360] sm:$0xff]
    %v570 = vld [vmem:[#allocation10 + $0x368] sm:$0xff]
    %v571 = vld [vmem:[#allocation10 + $0x370] sm:$0xff]
    %v572 = vld [vmem:[#allocation10 + $0x378] sm:$0xff]
    %v573 = vld [vmem:[#allocation10 + $0x380] sm:$0xff]
    %v574 = vld [vmem:[#allocation10 + $0x388] sm:$0xff]
    %v575 = vld [vmem:[#allocation10 + $0x390] sm:$0xff]
    %v576 = vld [vmem:[#allocation10 + $0x398] sm:$0xff]
    %v577 = vld [vmem:[#allocation10 + $0x3a0] sm:$0xff]
    %v578 = vld [vmem:[#allocation10 + $0x3a8] sm:$0xff]
    %v579 = vld [vmem:[#allocation10 + $0x3b0] sm:$0xff]
    %v580 = vld [vmem:[#allocation10 + $0x3b8] sm:$0xff]
    %v581 = vld [vmem:[#allocation10 + $0x3c0] sm:$0xff]
    %v582 = vld [vmem:[#allocation10 + $0x3c8] sm:$0xff]
    %v583 = vld [vmem:[#allocation10 + $0x3d0] sm:$0xff]
    %v584 = vld [vmem:[#allocation10 + $0x3d8] sm:$0xff]
    %v585 = vld [vmem:[#allocation10 + $0x3e0] sm:$0xff]
    %v586 = vld [vmem:[#allocation10 + $0x3e8] sm:$0xff]
    %v587 = vld [vmem:[#allocation10 + $0x3f0] sm:$0xff]
    %v588 = vld [vmem:[#allocation10 + $0x3f8] sm:$0xff]
    %v589 = vld [vmem:[#allocation10 + $0x400] sm:$0xff]
    %v590 = vld [vmem:[#allocation10 + $0x408] sm:$0xff]
    %v591 = vld [vmem:[#allocation10 + $0x410] sm:$0xff]
    %v592 = vld [vmem:[#allocation10 + $0x418] sm:$0xff]
    %v593 = vld [vmem:[#allocation10 + $0x420] sm:$0xff]
    %v594 = vld [vmem:[#allocation10 + $0x428] sm:$0xff]
    %v595 = vld [vmem:[#allocation10 + $0x430] sm:$0xff]
    %v596 = vld [vmem:[#allocation10 + $0x438] sm:$0xff]
    %v597 = vld [vmem:[#allocation10 + $0x440] sm:$0xff]
    %v598 = vld [vmem:[#allocation10 + $0x448] sm:$0xff]
    %v599 = vld [vmem:[#allocation10 + $0x450] sm:$0xff]
    %v600 = vld [vmem:[#allocation10 + $0x458] sm:$0xff]
    %v601 = vld [vmem:[#allocation10 + $0x460] sm:$0xff]
    %v602 = vld [vmem:[#allocation10 + $0x468] sm:$0xff]
    %v603 = vld [vmem:[#allocation10 + $0x470] sm:$0xff]
    %v604 = vld [vmem:[#allocation10 + $0x478] sm:$0xff]
    %v605 = vld [vmem:[#allocation10 + $0x480] sm:$0xff]
    %v606 = vld [vmem:[#allocation10 + $0x488] sm:$0xff]
    %v607 = vld [vmem:[#allocation10 + $0x490] sm:$0xff]
    %v608 = vld [vmem:[#allocation10 + $0x498] sm:$0xff]
    %v609 = vld [vmem:[#allocation10 + $0x4a0] sm:$0xff]
    %v610 = vld [vmem:[#allocation10 + $0x4a8] sm:$0xff]
    %v611 = vld [vmem:[#allocation10 + $0x4b0] sm:$0xff]
    %v612 = vld [vmem:[#allocation10 + $0x4b8] sm:$0xff]
    %v613 = vld [vmem:[#allocation10 + $0x4c0] sm:$0xff]
    %v614 = vld [vmem:[#allocation10 + $0x4c8] sm:$0xff]
    %v615 = vld [vmem:[#allocation10 + $0x4d0] sm:$0xff]
    %v616 = vld [vmem:[#allocation10 + $0x4d8] sm:$0xff]
    %v617 = vld [vmem:[#allocation10 + $0x4e0] sm:$0xff]
    %v618 = vld [vmem:[#allocation10 + $0x4e8] sm:$0xff]
    %v619 = vld [vmem:[#allocation10 + $0x4f0] sm:$0xff]
    %v620 = vld [vmem:[#allocation10 + $0x4f8] sm:$0xff]
    %v621 = vld [vmem:[#allocation10 + $0x500] sm:$0xff]
    %v622 = vld [vmem:[#allocation10 + $0x508] sm:$0xff]
    %v623 = vld [vmem:[#allocation10 + $0x510] sm:$0xff]
    %v624 = vld [vmem:[#allocation10 + $0x518] sm:$0xff]
    %v625 = vld [vmem:[#allocation10 + $0x520] sm:$0xff]
    %v626 = vld [vmem:[#allocation10 + $0x528] sm:$0xff]
    %v627 = vld [vmem:[#allocation10 + $0x530] sm:$0xff]
    %v628 = vld [vmem:[#allocation10 + $0x538] sm:$0xff]
    %v629 = vld [vmem:[#allocation10 + $0x540] sm:$0xff]
    %v630 = vld [vmem:[#allocation10 + $0x548] sm:$0xff]
    %v631 = vld [vmem:[#allocation10 + $0x550] sm:$0xff]
    %v632 = vld [vmem:[#allocation10 + $0x558] sm:$0xff]
    %v633 = vld [vmem:[#allocation10 + $0x560] sm:$0xff]
    %v634 = vld [vmem:[#allocation10 + $0x568] sm:$0xff]
    %v635 = vld [vmem:[#allocation10 + $0x570] sm:$0xff]
    %v636 = vld [vmem:[#allocation10 + $0x578] sm:$0xff]
    %v637 = vld [vmem:[#allocation10 + $0x580] sm:$0xff]
    %v638 = vld [vmem:[#allocation10 + $0x588] sm:$0xff]
    %v639 = vld [vmem:[#allocation10 + $0x590] sm:$0xff]
    %v640 = vld [vmem:[#allocation10 + $0x598] sm:$0xff]
    %v641 = vld [vmem:[#allocation10 + $0x5a0] sm:$0xff]
    %v642 = vld [vmem:[#allocation10 + $0x5a8] sm:$0xff]
    %v643 = vld [vmem:[#allocation10 + $0x5b0] sm:$0xff]
    %v644 = vld [vmem:[#allocation10 + $0x5b8] sm:$0xff]
    %v645 = vld [vmem:[#allocation10 + $0x5c0] sm:$0xff]
    %v646 = vld [vmem:[#allocation10 + $0x5c8] sm:$0xff]
    %v647 = vld [vmem:[#allocation10 + $0x5d0] sm:$0xff]
    %v648 = vld [vmem:[#allocation10 + $0x5d8] sm:$0xff]
    %v649 = vld [vmem:[#allocation10 + $0x5e0] sm:$0xff]
    %v650 = vld [vmem:[#allocation10 + $0x5e8] sm:$0xff]
    %v651 = vld [vmem:[#allocation10 + $0x5f0] sm:$0xff]
    %v652 = vld [vmem:[#allocation10 + $0x5f8] sm:$0xff]
    %v653 = vld [vmem:[#allocation10 + $0x600] sm:$0xff]
    %v654 = vld [vmem:[#allocation10 + $0x608] sm:$0xff]
    %v655 = vld [vmem:[#allocation10 + $0x610] sm:$0xff]
    %v656 = vld [vmem:[#allocation10 + $0x618] sm:$0xff]
    %v657 = vld [vmem:[#allocation10 + $0x620] sm:$0xff]
    %v658 = vld [vmem:[#allocation10 + $0x628] sm:$0xff]
    %v659 = vld [vmem:[#allocation10 + $0x630] sm:$0xff]
    %v660 = vld [vmem:[#allocation10 + $0x638] sm:$0xff]
    %v661 = vld [vmem:[#allocation10 + $0x640] sm:$0xff]
    %v662 = vld [vmem:[#allocation10 + $0x648] sm:$0xff]
    %v663 = vld [vmem:[#allocation10 + $0x650] sm:$0xff]
    %v664 = vld [vmem:[#allocation10 + $0x658] sm:$0xff]
    %v665 = vld [vmem:[#allocation10 + $0x660] sm:$0xff]
    %v666 = vld [vmem:[#allocation10 + $0x668] sm:$0xff]
    %v667 = vld [vmem:[#allocation10 + $0x670] sm:$0xff]
    %v668 = vld [vmem:[#allocation10 + $0x678] sm:$0xff]
    %v669 = vld [vmem:[#allocation10 + $0x680] sm:$0xff]
    %v670 = vld [vmem:[#allocation10 + $0x688] sm:$0xff]
    %v671 = vld [vmem:[#allocation10 + $0x690] sm:$0xff]
    %v672 = vld [vmem:[#allocation10 + $0x698] sm:$0xff]
    %v673 = vld [vmem:[#allocation10 + $0x6a0] sm:$0xff]
    %v674 = vld [vmem:[#allocation10 + $0x6a8] sm:$0xff]
    %v675 = vld [vmem:[#allocation10 + $0x6b0] sm:$0xff]
    %v676 = vld [vmem:[#allocation10 + $0x6b8] sm:$0xff]
    %v677 = vld [vmem:[#allocation10 + $0x6c0] sm:$0xff]
    %v678 = vld [vmem:[#allocation10 + $0x6c8] sm:$0xff]
    %v679 = vld [vmem:[#allocation10 + $0x6d0] sm:$0xff]
    %v680 = vld [vmem:[#allocation10 + $0x6d8] sm:$0xff]
    %v681 = vld [vmem:[#allocation10 + $0x6e0] sm:$0xff]
    %v682 = vld [vmem:[#allocation10 + $0x6e8] sm:$0xff]
    %v683 = vld [vmem:[#allocation10 + $0x6f0] sm:$0xff]
    %v684 = vld [vmem:[#allocation10 + $0x6f8] sm:$0xff]
    %v685 = vld [vmem:[#allocation10 + $0x700] sm:$0xff]
    %v686 = vld [vmem:[#allocation10 + $0x708] sm:$0xff]
    %v687 = vld [vmem:[#allocation10 + $0x710] sm:$0xff]
    %v688 = vld [vmem:[#allocation10 + $0x718] sm:$0xff]
    %v689 = vld [vmem:[#allocation10 + $0x720] sm:$0xff]
    %v690 = vld [vmem:[#allocation10 + $0x728] sm:$0xff]
    %v691 = vld [vmem:[#allocation10 + $0x730] sm:$0xff]
    %v692 = vld [vmem:[#allocation10 + $0x738] sm:$0xff]
    %v693 = vld [vmem:[#allocation10 + $0x740] sm:$0xff]
    %v694 = vld [vmem:[#allocation10 + $0x748] sm:$0xff]
    %v695 = vld [vmem:[#allocation10 + $0x750] sm:$0xff]
    %v696 = vld [vmem:[#allocation10 + $0x758] sm:$0xff]
    %v697 = vld [vmem:[#allocation10 + $0x760] sm:$0xff]
    %v698 = vld [vmem:[#allocation10 + $0x768] sm:$0xff]
    %v699 = vld [vmem:[#allocation10 + $0x770] sm:$0xff]
    %v700 = vld [vmem:[#allocation10 + $0x778] sm:$0xff]
    %v701 = vld [vmem:[#allocation10 + $0x780] sm:$0xff]
    %v702 = vld [vmem:[#allocation10 + $0x788] sm:$0xff]
    %v703 = vld [vmem:[#allocation10 + $0x790] sm:$0xff]
    %v704 = vld [vmem:[#allocation10 + $0x798] sm:$0xff]
    %v705 = vld [vmem:[#allocation10 + $0x7a0] sm:$0xff]
    %v706 = vld [vmem:[#allocation10 + $0x7a8] sm:$0xff]
    %v707 = vld [vmem:[#allocation10 + $0x7b0] sm:$0xff]
    %v708 = vld [vmem:[#allocation10 + $0x7b8] sm:$0xff]
    %v709 = vld [vmem:[#allocation10 + $0x7c0] sm:$0xff]
    %v710 = vld [vmem:[#allocation10 + $0x7c8] sm:$0xff]
    %v711 = vld [vmem:[#allocation10 + $0x7d0] sm:$0xff]
    %v712 = vld [vmem:[#allocation10 + $0x7d8] sm:$0xff]
    %v713 = vld [vmem:[#allocation10 + $0x7e0] sm:$0xff]
    %v714 = vld [vmem:[#allocation10 + $0x7e8] sm:$0xff]
    %v715 = vld [vmem:[#allocation10 + $0x7f0] sm:$0xff]
    %v716 = vld [vmem:[#allocation10 + $0x7f8] sm:$0xff]
    %v717 = vld [vmem:[#allocation10 + $0x800] sm:$0xff]
    %v718 = vld [vmem:[#allocation10 + $0x808] sm:$0xff]
    %v719 = vld [vmem:[#allocation10 + $0x810] sm:$0xff]
    %v720 = vld [vmem:[#allocation10 + $0x818] sm:$0xff]
    %v721 = vld [vmem:[#allocation10 + $0x820] sm:$0xff]
    %v722 = vld [vmem:[#allocation10 + $0x828] sm:$0xff]
    %v723 = vld [vmem:[#allocation10 + $0x830] sm:$0xff]
    %v724 = vld [vmem:[#allocation10 + $0x838] sm:$0xff]
    %v725 = vld [vmem:[#allocation10 + $0x840] sm:$0xff]
    %v726 = vld [vmem:[#allocation10 + $0x848] sm:$0xff]
    %v727 = vld [vmem:[#allocation10 + $0x850] sm:$0xff]
    %v728 = vld [vmem:[#allocation10 + $0x858] sm:$0xff]
    %v729 = vld [vmem:[#allocation10 + $0x860] sm:$0xff]
    %v730 = vld [vmem:[#allocation10 + $0x868] sm:$0xff]
    %v731 = vld [vmem:[#allocation10 + $0x870] sm:$0xff]
    %v732 = vld [vmem:[#allocation10 + $0x878] sm:$0xff]
    %v733 = vld [vmem:[#allocation10 + $0x880] sm:$0xff]
    %v734 = vld [vmem:[#allocation10 + $0x888] sm:$0xff]
    %v735 = vld [vmem:[#allocation10 + $0x890] sm:$0xff]
    %v736 = vld [vmem:[#allocation10 + $0x898] sm:$0xff]
    %v737 = vld [vmem:[#allocation10 + $0x8a0] sm:$0xff]
    %v738 = vld [vmem:[#allocation10 + $0x8a8] sm:$0xff]
    %v739 = vld [vmem:[#allocation10 + $0x8b0] sm:$0xff]
    %v740 = vld [vmem:[#allocation10 + $0x8b8] sm:$0xff]
    %v741 = vld [vmem:[#allocation10 + $0x8c0] sm:$0xff]
    %v742 = vld [vmem:[#allocation10 + $0x8c8] sm:$0xff]
    %v743 = vld [vmem:[#allocation10 + $0x8d0] sm:$0xff]
    %v744 = vld [vmem:[#allocation10 + $0x8d8] sm:$0xff]
    %v745 = vld [vmem:[#allocation10 + $0x8e0] sm:$0xff]
    %v746 = vld [vmem:[#allocation10 + $0x8e8] sm:$0xff]
    %v747 = vld [vmem:[#allocation10 + $0x8f0] sm:$0xff]
    %v748 = vld [vmem:[#allocation10 + $0x8f8] sm:$0xff]
    %v749 = vld [vmem:[#allocation11] sm:$0x3f]
    %v751 = vlaneseq
    %v752 = vshrl.u32 %v751, 7
    %v753 = vsub.s32 0, %v752
    %v754 = vrot.slane %v749, %v753
    %v755 = vlaneseq
    %v756 = vshrl.u32 %v755, 7
    %v757 = vsub.s32 1, %v756
    %v758 = vrot.slane %v749, %v757
    %v759 = vlaneseq
    %v760 = vshrl.u32 %v759, 7
    %v761 = vsub.s32 2, %v760
    %v762 = vrot.slane %v749, %v761
    %v763 = vlaneseq
    %v764 = vshrl.u32 %v763, 7
    %v765 = vsub.s32 3, %v764
    %v766 = vrot.slane %v749, %v765
    %v767 = vlaneseq
    %v768 = vshrl.u32 %v767, 7
    %v769 = vsub.s32 4, %v768
    %v770 = vrot.slane %v749, %v769
    %v771 = vlaneseq
    %v772 = vshrl.u32 %v771, 7
    %v773 = vsub.s32 5, %v772
    %v774 = vrot.slane %v749, %v773
    %v1069 = vunpack.c.l.b16 %v461
    %v1070 = vunpack.c.h.b16 %v461
    %v1071 = vunpack.c.l.b16 %v462
    %v1072 = vunpack.c.h.b16 %v462
    %v1073 = vunpack.c.l.b16 %v463
    %v1074 = vunpack.c.h.b16 %v463
    %v1075 = vunpack.c.l.b16 %v464
    %v1076 = vunpack.c.h.b16 %v464
    %v1077 = vunpack.c.l.b16 %v465
    %v1078 = vunpack.c.h.b16 %v465
    %v1079 = vunpack.c.l.b16 %v466
    %v1080 = vunpack.c.h.b16 %v466
    %v1081 = vunpack.c.l.b16 %v467
    %v1082 = vunpack.c.h.b16 %v467
    %v1083 = vunpack.c.l.b16 %v468
    %v1084 = vunpack.c.h.b16 %v468
    %v1085 = vunpack.c.l.b16 %v469
    %v1086 = vunpack.c.h.b16 %v469
    %v1087 = vunpack.c.l.b16 %v470
    %v1088 = vunpack.c.h.b16 %v470
    %v1089 = vunpack.c.l.b16 %v471
    %v1090 = vunpack.c.h.b16 %v471
    %v1091 = vunpack.c.l.b16 %v472
    %v1092 = vunpack.c.h.b16 %v472
    %v1093 = vunpack.c.l.b16 %v473
    %v1094 = vunpack.c.h.b16 %v473
    %v1095 = vunpack.c.l.b16 %v474
    %v1096 = vunpack.c.h.b16 %v474
    %v1097 = vunpack.c.l.b16 %v475
    %v1098 = vunpack.c.h.b16 %v475
    %v1099 = vunpack.c.l.b16 %v476
    %v1100 = vunpack.c.h.b16 %v476
    %v1101 = vunpack.c.l.b16 %v477
    %v1102 = vunpack.c.h.b16 %v477
    %v1103 = vunpack.c.l.b16 %v478
    %v1104 = vunpack.c.h.b16 %v478
    %v1105 = vunpack.c.l.b16 %v479
    %v1106 = vunpack.c.h.b16 %v479
    %v1107 = vunpack.c.l.b16 %v480
    %v1108 = vunpack.c.h.b16 %v480
    %v1109 = vunpack.c.l.b16 %v481
    %v1110 = vunpack.c.h.b16 %v481
    %v1111 = vunpack.c.l.b16 %v482
    %v1112 = vunpack.c.h.b16 %v482
    %v1113 = vunpack.c.l.b16 %v483
    %v1114 = vunpack.c.h.b16 %v483
    %v1115 = vunpack.c.l.b16 %v484
    %v1116 = vunpack.c.h.b16 %v484
    %v1117 = vunpack.c.l.b16 %v485
    %v1118 = vunpack.c.h.b16 %v485
    %v1119 = vunpack.c.l.b16 %v486
    %v1120 = vunpack.c.h.b16 %v486
    %v1121 = vunpack.c.l.b16 %v487
    %v1122 = vunpack.c.h.b16 %v487
    %v1123 = vunpack.c.l.b16 %v488
    %v1124 = vunpack.c.h.b16 %v488
    %v1125 = vunpack.c.l.b16 %v489
    %v1126 = vunpack.c.h.b16 %v489
    %v1127 = vunpack.c.l.b16 %v490
    %v1128 = vunpack.c.h.b16 %v490
    %v1129 = vunpack.c.l.b16 %v491
    %v1130 = vunpack.c.h.b16 %v491
    %v1131 = vunpack.c.l.b16 %v492
    %v1132 = vunpack.c.h.b16 %v492
    %v1133 = vunpack.c.l.b16 %v493
    %v1134 = vunpack.c.h.b16 %v493
    %v1135 = vunpack.c.l.b16 %v494
    %v1136 = vunpack.c.h.b16 %v494
    %v1137 = vunpack.c.l.b16 %v495
    %v1138 = vunpack.c.h.b16 %v495
    %v1139 = vunpack.c.l.b16 %v496
    %v1140 = vunpack.c.h.b16 %v496
    %v1141 = vunpack.c.l.b16 %v497
    %v1142 = vunpack.c.h.b16 %v497
    %v1143 = vunpack.c.l.b16 %v498
    %v1144 = vunpack.c.h.b16 %v498
    %v1145 = vunpack.c.l.b16 %v499
    %v1146 = vunpack.c.h.b16 %v499
    %v1147 = vunpack.c.l.b16 %v500
    %v1148 = vunpack.c.h.b16 %v500
    %v1149 = vunpack.c.l.b16 %v501
    %v1150 = vunpack.c.h.b16 %v501
    %v1151 = vunpack.c.l.b16 %v502
    %v1152 = vunpack.c.h.b16 %v502
    %v1153 = vunpack.c.l.b16 %v503
    %v1154 = vunpack.c.h.b16 %v503
    %v1155 = vunpack.c.l.b16 %v504
    %v1156 = vunpack.c.h.b16 %v504
    %v1157 = vunpack.c.l.b16 %v505
    %v1158 = vunpack.c.h.b16 %v505
    %v1159 = vunpack.c.l.b16 %v506
    %v1160 = vunpack.c.h.b16 %v506
    %v1161 = vunpack.c.l.b16 %v507
    %v1162 = vunpack.c.h.b16 %v507
    %v1163 = vunpack.c.l.b16 %v508
    %v1164 = vunpack.c.h.b16 %v508
    %v1165 = vunpack.c.l.b16 %v509
    %v1166 = vunpack.c.h.b16 %v509
    %v1167 = vunpack.c.l.b16 %v510
    %v1168 = vunpack.c.h.b16 %v510
    %v1169 = vunpack.c.l.b16 %v511
    %v1170 = vunpack.c.h.b16 %v511
    %v1171 = vunpack.c.l.b16 %v512
    %v1172 = vunpack.c.h.b16 %v512
    %v1173 = vunpack.c.l.b16 %v513
    %v1174 = vunpack.c.h.b16 %v513
    %v1175 = vunpack.c.l.b16 %v514
    %v1176 = vunpack.c.h.b16 %v514
    %v1177 = vunpack.c.l.b16 %v515
    %v1178 = vunpack.c.h.b16 %v515
    %v1179 = vunpack.c.l.b16 %v516
    %v1180 = vunpack.c.h.b16 %v516
    %v1181 = vunpack.c.l.b16 %v517
    %v1182 = vunpack.c.h.b16 %v517
    %v1183 = vunpack.c.l.b16 %v518
    %v1184 = vunpack.c.h.b16 %v518
    %v1185 = vunpack.c.l.b16 %v519
    %v1186 = vunpack.c.h.b16 %v519
    %v1187 = vunpack.c.l.b16 %v520
    %v1188 = vunpack.c.h.b16 %v520
    %v1189 = vunpack.c.l.b16 %v521
    %v1190 = vunpack.c.h.b16 %v521
    %v1191 = vunpack.c.l.b16 %v522
    %v1192 = vunpack.c.h.b16 %v522
    %v1193 = vunpack.c.l.b16 %v523
    %v1194 = vunpack.c.h.b16 %v523
    %v1195 = vunpack.c.l.b16 %v524
    %v1196 = vunpack.c.h.b16 %v524
    %v1197 = vunpack.c.l.b16 %v525
    %v1198 = vunpack.c.h.b16 %v525
    %v1199 = vunpack.c.l.b16 %v526
    %v1200 = vunpack.c.h.b16 %v526
    %v1201 = vunpack.c.l.b16 %v527
    %v1202 = vunpack.c.h.b16 %v527
    %v1203 = vunpack.c.l.b16 %v528
    %v1204 = vunpack.c.h.b16 %v528
    %v1205 = vunpack.c.l.b16 %v529
    %v1206 = vunpack.c.h.b16 %v529
    %v1207 = vunpack.c.l.b16 %v530
    %v1208 = vunpack.c.h.b16 %v530
    %v1209 = vunpack.c.l.b16 %v531
    %v1210 = vunpack.c.h.b16 %v531
    %v1211 = vunpack.c.l.b16 %v532
    %v1212 = vunpack.c.h.b16 %v532
    %v1213 = vunpack.c.l.b16 %v533
    %v1214 = vunpack.c.h.b16 %v533
    %v1215 = vunpack.c.l.b16 %v534
    %v1216 = vunpack.c.h.b16 %v534
    %v1217 = vunpack.c.l.b16 %v535
    %v1218 = vunpack.c.h.b16 %v535
    %v1219 = vunpack.c.l.b16 %v536
    %v1220 = vunpack.c.h.b16 %v536
    %v1221 = vunpack.c.l.b16 %v537
    %v1222 = vunpack.c.h.b16 %v537
    %v1223 = vunpack.c.l.b16 %v538
    %v1224 = vunpack.c.h.b16 %v538
    %v1225 = vunpack.c.l.b16 %v539
    %v1226 = vunpack.c.h.b16 %v539
    %v1227 = vunpack.c.l.b16 %v540
    %v1228 = vunpack.c.h.b16 %v540
    %v1229 = vunpack.c.l.b16 %v541
    %v1230 = vunpack.c.h.b16 %v541
    %v1231 = vunpack.c.l.b16 %v542
    %v1232 = vunpack.c.h.b16 %v542
    %v1233 = vunpack.c.l.b16 %v543
    %v1234 = vunpack.c.h.b16 %v543
    %v1235 = vunpack.c.l.b16 %v544
    %v1236 = vunpack.c.h.b16 %v544
    %v1237 = vunpack.c.l.b16 %v545
    %v1238 = vunpack.c.h.b16 %v545
    %v1239 = vunpack.c.l.b16 %v546
    %v1240 = vunpack.c.h.b16 %v546
    %v1241 = vunpack.c.l.b16 %v547
    %v1242 = vunpack.c.h.b16 %v547
    %v1243 = vunpack.c.l.b16 %v548
    %v1244 = vunpack.c.h.b16 %v548
    %v1245 = vunpack.c.l.b16 %v549
    %v1246 = vunpack.c.h.b16 %v549
    %v1247 = vunpack.c.l.b16 %v550
    %v1248 = vunpack.c.h.b16 %v550
    %v1249 = vunpack.c.l.b16 %v551
    %v1250 = vunpack.c.h.b16 %v551
    %v1251 = vunpack.c.l.b16 %v552
    %v1252 = vunpack.c.h.b16 %v552
    %v1253 = vunpack.c.l.b16 %v553
    %v1254 = vunpack.c.h.b16 %v553
    %v1255 = vunpack.c.l.b16 %v554
    %v1256 = vunpack.c.h.b16 %v554
    %v1257 = vunpack.c.l.b16 %v555
    %v1258 = vunpack.c.h.b16 %v555
    %v1259 = vunpack.c.l.b16 %v556
    %v1260 = vunpack.c.h.b16 %v556
    %v1261 = vunpack.c.l.b16 %v557
    %v1262 = vunpack.c.h.b16 %v557
    %v1263 = vunpack.c.l.b16 %v558
    %v1264 = vunpack.c.h.b16 %v558
    %v1265 = vunpack.c.l.b16 %v559
    %v1266 = vunpack.c.h.b16 %v559
    %v1267 = vunpack.c.l.b16 %v560
    %v1268 = vunpack.c.h.b16 %v560
    %v1269 = vunpack.c.l.b16 %v561
    %v1270 = vunpack.c.h.b16 %v561
    %v1271 = vunpack.c.l.b16 %v562
    %v1272 = vunpack.c.h.b16 %v562
    %v1273 = vunpack.c.l.b16 %v563
    %v1274 = vunpack.c.h.b16 %v563
    %v1275 = vunpack.c.l.b16 %v564
    %v1276 = vunpack.c.h.b16 %v564
    %v1277 = vunpack.c.l.b16 %v565
    %v1278 = vunpack.c.h.b16 %v565
    %v1279 = vunpack.c.l.b16 %v566
    %v1280 = vunpack.c.h.b16 %v566
    %v1281 = vunpack.c.l.b16 %v567
    %v1282 = vunpack.c.h.b16 %v567
    %v1283 = vunpack.c.l.b16 %v568
    %v1284 = vunpack.c.h.b16 %v568
    %v1285 = vunpack.c.l.b16 %v569
    %v1286 = vunpack.c.h.b16 %v569
    %v1287 = vunpack.c.l.b16 %v570
    %v1288 = vunpack.c.h.b16 %v570
    %v1289 = vunpack.c.l.b16 %v571
    %v1290 = vunpack.c.h.b16 %v571
    %v1291 = vunpack.c.l.b16 %v572
    %v1292 = vunpack.c.h.b16 %v572
    %v1293 = vunpack.c.l.b16 %v573
    %v1294 = vunpack.c.h.b16 %v573
    %v1295 = vunpack.c.l.b16 %v574
    %v1296 = vunpack.c.h.b16 %v574
    %v1297 = vunpack.c.l.b16 %v575
    %v1298 = vunpack.c.h.b16 %v575
    %v1299 = vunpack.c.l.b16 %v576
    %v1300 = vunpack.c.h.b16 %v576
    %v1301 = vunpack.c.l.b16 %v577
    %v1302 = vunpack.c.h.b16 %v577
    %v1303 = vunpack.c.l.b16 %v578
    %v1304 = vunpack.c.h.b16 %v578
    %v1305 = vunpack.c.l.b16 %v579
    %v1306 = vunpack.c.h.b16 %v579
    %v1307 = vunpack.c.l.b16 %v580
    %v1308 = vunpack.c.h.b16 %v580
    %v1309 = vunpack.c.l.b16 %v581
    %v1310 = vunpack.c.h.b16 %v581
    %v1311 = vunpack.c.l.b16 %v582
    %v1312 = vunpack.c.h.b16 %v582
    %v1313 = vunpack.c.l.b16 %v583
    %v1314 = vunpack.c.h.b16 %v583
    %v1315 = vunpack.c.l.b16 %v584
    %v1316 = vunpack.c.h.b16 %v584
    %v1317 = vunpack.c.l.b16 %v585
    %v1318 = vunpack.c.h.b16 %v585
    %v1319 = vunpack.c.l.b16 %v586
    %v1320 = vunpack.c.h.b16 %v586
    %v1321 = vunpack.c.l.b16 %v587
    %v1322 = vunpack.c.h.b16 %v587
    %v1323 = vunpack.c.l.b16 %v588
    %v1324 = vunpack.c.h.b16 %v588
    %v1325 = vunpack.c.l.b16 %v589
    %v1326 = vunpack.c.h.b16 %v589
    %v1327 = vunpack.c.l.b16 %v590
    %v1328 = vunpack.c.h.b16 %v590
    %v1329 = vunpack.c.l.b16 %v591
    %v1330 = vunpack.c.h.b16 %v591
    %v1331 = vunpack.c.l.b16 %v592
    %v1332 = vunpack.c.h.b16 %v592
    %v1333 = vunpack.c.l.b16 %v593
    %v1334 = vunpack.c.h.b16 %v593
    %v1335 = vunpack.c.l.b16 %v594
    %v1336 = vunpack.c.h.b16 %v594
    %v1337 = vunpack.c.l.b16 %v595
    %v1338 = vunpack.c.h.b16 %v595
    %v1339 = vunpack.c.l.b16 %v596
    %v1340 = vunpack.c.h.b16 %v596
    %v1341 = vunpack.c.l.b16 %v597
    %v1342 = vunpack.c.h.b16 %v597
    %v1343 = vunpack.c.l.b16 %v598
    %v1344 = vunpack.c.h.b16 %v598
    %v1345 = vunpack.c.l.b16 %v599
    %v1346 = vunpack.c.h.b16 %v599
    %v1347 = vunpack.c.l.b16 %v600
    %v1348 = vunpack.c.h.b16 %v600
    %v1349 = vunpack.c.l.b16 %v601
    %v1350 = vunpack.c.h.b16 %v601
    %v1351 = vunpack.c.l.b16 %v602
    %v1352 = vunpack.c.h.b16 %v602
    %v1353 = vunpack.c.l.b16 %v603
    %v1354 = vunpack.c.h.b16 %v603
    %v1355 = vunpack.c.l.b16 %v604
    %v1356 = vunpack.c.h.b16 %v604
    %v1357 = vunpack.c.l.b16 %v605
    %v1358 = vunpack.c.h.b16 %v605
    %v1359 = vunpack.c.l.b16 %v606
    %v1360 = vunpack.c.h.b16 %v606
    %v1361 = vunpack.c.l.b16 %v607
    %v1362 = vunpack.c.h.b16 %v607
    %v1363 = vunpack.c.l.b16 %v608
    %v1364 = vunpack.c.h.b16 %v608
    %v1365 = vunpack.c.l.b16 %v609
    %v1366 = vunpack.c.h.b16 %v609
    %v1367 = vunpack.c.l.b16 %v610
    %v1368 = vunpack.c.h.b16 %v610
    %v1369 = vunpack.c.l.b16 %v611
    %v1370 = vunpack.c.h.b16 %v611
    %v1371 = vunpack.c.l.b16 %v612
    %v1372 = vunpack.c.h.b16 %v612
    %v1373 = vunpack.c.l.b16 %v613
    %v1374 = vunpack.c.h.b16 %v613
    %v1375 = vunpack.c.l.b16 %v614
    %v1376 = vunpack.c.h.b16 %v614
    %v1377 = vunpack.c.l.b16 %v615
    %v1378 = vunpack.c.h.b16 %v615
    %v1379 = vunpack.c.l.b16 %v616
    %v1380 = vunpack.c.h.b16 %v616
    %v1381 = vunpack.c.l.b16 %v617
    %v1382 = vunpack.c.h.b16 %v617
    %v1383 = vunpack.c.l.b16 %v618
    %v1384 = vunpack.c.h.b16 %v618
    %v1385 = vunpack.c.l.b16 %v619
    %v1386 = vunpack.c.h.b16 %v619
    %v1387 = vunpack.c.l.b16 %v620
    %v1388 = vunpack.c.h.b16 %v620
    %v1389 = vunpack.c.l.b16 %v621
    %v1390 = vunpack.c.h.b16 %v621
    %v1391 = vunpack.c.l.b16 %v622
    %v1392 = vunpack.c.h.b16 %v622
    %v1393 = vunpack.c.l.b16 %v623
    %v1394 = vunpack.c.h.b16 %v623
    %v1395 = vunpack.c.l.b16 %v624
    %v1396 = vunpack.c.h.b16 %v624
    %v1397 = vunpack.c.l.b16 %v625
    %v1398 = vunpack.c.h.b16 %v625
    %v1399 = vunpack.c.l.b16 %v626
    %v1400 = vunpack.c.h.b16 %v626
    %v1401 = vunpack.c.l.b16 %v627
    %v1402 = vunpack.c.h.b16 %v627
    %v1403 = vunpack.c.l.b16 %v628
    %v1404 = vunpack.c.h.b16 %v628
    %v1405 = vunpack.c.l.b16 %v629
    %v1406 = vunpack.c.h.b16 %v629
    %v1407 = vunpack.c.l.b16 %v630
    %v1408 = vunpack.c.h.b16 %v630
    %v1409 = vunpack.c.l.b16 %v631
    %v1410 = vunpack.c.h.b16 %v631
    %v1411 = vunpack.c.l.b16 %v632
    %v1412 = vunpack.c.h.b16 %v632
    %v1413 = vunpack.c.l.b16 %v633
    %v1414 = vunpack.c.h.b16 %v633
    %v1415 = vunpack.c.l.b16 %v634
    %v1416 = vunpack.c.h.b16 %v634
    %v1417 = vunpack.c.l.b16 %v635
    %v1418 = vunpack.c.h.b16 %v635
    %v1419 = vunpack.c.l.b16 %v636
    %v1420 = vunpack.c.h.b16 %v636
    %v1421 = vunpack.c.l.b16 %v637
    %v1422 = vunpack.c.h.b16 %v637
    %v1423 = vunpack.c.l.b16 %v638
    %v1424 = vunpack.c.h.b16 %v638
    %v1425 = vunpack.c.l.b16 %v639
    %v1426 = vunpack.c.h.b16 %v639
    %v1427 = vunpack.c.l.b16 %v640
    %v1428 = vunpack.c.h.b16 %v640
    %v1429 = vunpack.c.l.b16 %v641
    %v1430 = vunpack.c.h.b16 %v641
    %v1431 = vunpack.c.l.b16 %v642
    %v1432 = vunpack.c.h.b16 %v642
    %v1433 = vunpack.c.l.b16 %v643
    %v1434 = vunpack.c.h.b16 %v643
    %v1435 = vunpack.c.l.b16 %v644
    %v1436 = vunpack.c.h.b16 %v644
    %v1437 = vunpack.c.l.b16 %v645
    %v1438 = vunpack.c.h.b16 %v645
    %v1439 = vunpack.c.l.b16 %v646
    %v1440 = vunpack.c.h.b16 %v646
    %v1441 = vunpack.c.l.b16 %v647
    %v1442 = vunpack.c.h.b16 %v647
    %v1443 = vunpack.c.l.b16 %v648
    %v1444 = vunpack.c.h.b16 %v648
    %v1445 = vunpack.c.l.b16 %v649
    %v1446 = vunpack.c.h.b16 %v649
    %v1447 = vunpack.c.l.b16 %v650
    %v1448 = vunpack.c.h.b16 %v650
    %v1449 = vunpack.c.l.b16 %v651
    %v1450 = vunpack.c.h.b16 %v651
    %v1451 = vunpack.c.l.b16 %v652
    %v1452 = vunpack.c.h.b16 %v652
    %v1453 = vunpack.c.l.b16 %v653
    %v1454 = vunpack.c.h.b16 %v653
    %v1455 = vunpack.c.l.b16 %v654
    %v1456 = vunpack.c.h.b16 %v654
    %v1457 = vunpack.c.l.b16 %v655
    %v1458 = vunpack.c.h.b16 %v655
    %v1459 = vunpack.c.l.b16 %v656
    %v1460 = vunpack.c.h.b16 %v656
    %v1461 = vunpack.c.l.b16 %v657
    %v1462 = vunpack.c.h.b16 %v657
    %v1463 = vunpack.c.l.b16 %v658
    %v1464 = vunpack.c.h.b16 %v658
    %v1465 = vunpack.c.l.b16 %v659
    %v1466 = vunpack.c.h.b16 %v659
    %v1467 = vunpack.c.l.b16 %v660
    %v1468 = vunpack.c.h.b16 %v660
    %v1469 = vunpack.c.l.b16 %v661
    %v1470 = vunpack.c.h.b16 %v661
    %v1471 = vunpack.c.l.b16 %v662
    %v1472 = vunpack.c.h.b16 %v662
    %v1473 = vunpack.c.l.b16 %v663
    %v1474 = vunpack.c.h.b16 %v663
    %v1475 = vunpack.c.l.b16 %v664
    %v1476 = vunpack.c.h.b16 %v664
    %v1477 = vunpack.c.l.b16 %v665
    %v1478 = vunpack.c.h.b16 %v665
    %v1479 = vunpack.c.l.b16 %v666
    %v1480 = vunpack.c.h.b16 %v666
    %v1481 = vunpack.c.l.b16 %v667
    %v1482 = vunpack.c.h.b16 %v667
    %v1483 = vunpack.c.l.b16 %v668
    %v1484 = vunpack.c.h.b16 %v668
    %v1485 = vunpack.c.l.b16 %v669
    %v1486 = vunpack.c.h.b16 %v669
    %v1487 = vunpack.c.l.b16 %v670
    %v1488 = vunpack.c.h.b16 %v670
    %v1489 = vunpack.c.l.b16 %v671
    %v1490 = vunpack.c.h.b16 %v671
    %v1491 = vunpack.c.l.b16 %v672
    %v1492 = vunpack.c.h.b16 %v672
    %v1493 = vunpack.c.l.b16 %v673
    %v1494 = vunpack.c.h.b16 %v673
    %v1495 = vunpack.c.l.b16 %v674
    %v1496 = vunpack.c.h.b16 %v674
    %v1497 = vunpack.c.l.b16 %v675
    %v1498 = vunpack.c.h.b16 %v675
    %v1499 = vunpack.c.l.b16 %v676
    %v1500 = vunpack.c.h.b16 %v676
    %v1501 = vunpack.c.l.b16 %v677
    %v1502 = vunpack.c.h.b16 %v677
    %v1503 = vunpack.c.l.b16 %v678
    %v1504 = vunpack.c.h.b16 %v678
    %v1505 = vunpack.c.l.b16 %v679
    %v1506 = vunpack.c.h.b16 %v679
    %v1507 = vunpack.c.l.b16 %v680
    %v1508 = vunpack.c.h.b16 %v680
    %v1509 = vunpack.c.l.b16 %v681
    %v1510 = vunpack.c.h.b16 %v681
    %v1511 = vunpack.c.l.b16 %v682
    %v1512 = vunpack.c.h.b16 %v682
    %v1513 = vunpack.c.l.b16 %v683
    %v1514 = vunpack.c.h.b16 %v683
    %v1515 = vunpack.c.l.b16 %v684
    %v1516 = vunpack.c.h.b16 %v684
    %v1517 = vunpack.c.l.b16 %v685
    %v1518 = vunpack.c.h.b16 %v685
    %v1519 = vunpack.c.l.b16 %v686
    %v1520 = vunpack.c.h.b16 %v686
    %v1521 = vunpack.c.l.b16 %v687
    %v1522 = vunpack.c.h.b16 %v687
    %v1523 = vunpack.c.l.b16 %v688
    %v1524 = vunpack.c.h.b16 %v688
    %v1525 = vunpack.c.l.b16 %v689
    %v1526 = vunpack.c.h.b16 %v689
    %v1527 = vunpack.c.l.b16 %v690
    %v1528 = vunpack.c.h.b16 %v690
    %v1529 = vunpack.c.l.b16 %v691
    %v1530 = vunpack.c.h.b16 %v691
    %v1531 = vunpack.c.l.b16 %v692
    %v1532 = vunpack.c.h.b16 %v692
    %v1533 = vunpack.c.l.b16 %v693
    %v1534 = vunpack.c.h.b16 %v693
    %v1535 = vunpack.c.l.b16 %v694
    %v1536 = vunpack.c.h.b16 %v694
    %v1537 = vunpack.c.l.b16 %v695
    %v1538 = vunpack.c.h.b16 %v695
    %v1539 = vunpack.c.l.b16 %v696
    %v1540 = vunpack.c.h.b16 %v696
    %v1541 = vunpack.c.l.b16 %v697
    %v1542 = vunpack.c.h.b16 %v697
    %v1543 = vunpack.c.l.b16 %v698
    %v1544 = vunpack.c.h.b16 %v698
    %v1545 = vunpack.c.l.b16 %v699
    %v1546 = vunpack.c.h.b16 %v699
    %v1547 = vunpack.c.l.b16 %v700
    %v1548 = vunpack.c.h.b16 %v700
    %v1549 = vunpack.c.l.b16 %v701
    %v1550 = vunpack.c.h.b16 %v701
    %v1551 = vunpack.c.l.b16 %v702
    %v1552 = vunpack.c.h.b16 %v702
    %v1553 = vunpack.c.l.b16 %v703
    %v1554 = vunpack.c.h.b16 %v703
    %v1555 = vunpack.c.l.b16 %v704
    %v1556 = vunpack.c.h.b16 %v704
    %v1557 = vunpack.c.l.b16 %v705
    %v1558 = vunpack.c.h.b16 %v705
    %v1559 = vunpack.c.l.b16 %v706
    %v1560 = vunpack.c.h.b16 %v706
    %v1561 = vunpack.c.l.b16 %v707
    %v1562 = vunpack.c.h.b16 %v707
    %v1563 = vunpack.c.l.b16 %v708
    %v1564 = vunpack.c.h.b16 %v708
    %v1565 = vunpack.c.l.b16 %v709
    %v1566 = vunpack.c.h.b16 %v709
    %v1567 = vunpack.c.l.b16 %v710
    %v1568 = vunpack.c.h.b16 %v710
    %v1569 = vunpack.c.l.b16 %v711
    %v1570 = vunpack.c.h.b16 %v711
    %v1571 = vunpack.c.l.b16 %v712
    %v1572 = vunpack.c.h.b16 %v712
    %v1573 = vunpack.c.l.b16 %v713
    %v1574 = vunpack.c.h.b16 %v713
    %v1575 = vunpack.c.l.b16 %v714
    %v1576 = vunpack.c.h.b16 %v714
    %v1577 = vunpack.c.l.b16 %v715
    %v1578 = vunpack.c.h.b16 %v715
    %v1579 = vunpack.c.l.b16 %v716
    %v1580 = vunpack.c.h.b16 %v716
    %v1581 = vunpack.c.l.b16 %v717
    %v1582 = vunpack.c.h.b16 %v717
    %v1583 = vunpack.c.l.b16 %v718
    %v1584 = vunpack.c.h.b16 %v718
    %v1585 = vunpack.c.l.b16 %v719
    %v1586 = vunpack.c.h.b16 %v719
    %v1587 = vunpack.c.l.b16 %v720
    %v1588 = vunpack.c.h.b16 %v720
    %v1589 = vunpack.c.l.b16 %v721
    %v1590 = vunpack.c.h.b16 %v721
    %v1591 = vunpack.c.l.b16 %v722
    %v1592 = vunpack.c.h.b16 %v722
    %v1593 = vunpack.c.l.b16 %v723
    %v1594 = vunpack.c.h.b16 %v723
    %v1595 = vunpack.c.l.b16 %v724
    %v1596 = vunpack.c.h.b16 %v724
    %v1597 = vunpack.c.l.b16 %v725
    %v1598 = vunpack.c.h.b16 %v725
    %v1599 = vunpack.c.l.b16 %v726
    %v1600 = vunpack.c.h.b16 %v726
    %v1601 = vunpack.c.l.b16 %v727
    %v1602 = vunpack.c.h.b16 %v727
    %v1603 = vunpack.c.l.b16 %v728
    %v1604 = vunpack.c.h.b16 %v728
    %v1605 = vunpack.c.l.b16 %v729
    %v1606 = vunpack.c.h.b16 %v729
    %v1607 = vunpack.c.l.b16 %v730
    %v1608 = vunpack.c.h.b16 %v730
    %v1609 = vunpack.c.l.b16 %v731
    %v1610 = vunpack.c.h.b16 %v731
    %v1611 = vunpack.c.l.b16 %v732
    %v1612 = vunpack.c.h.b16 %v732
    %v1613 = vunpack.c.l.b16 %v733
    %v1614 = vunpack.c.h.b16 %v733
    %v1615 = vunpack.c.l.b16 %v734
    %v1616 = vunpack.c.h.b16 %v734
    %v1617 = vunpack.c.l.b16 %v735
    %v1618 = vunpack.c.h.b16 %v735
    %v1619 = vunpack.c.l.b16 %v736
    %v1620 = vunpack.c.h.b16 %v736
    %v1621 = vunpack.c.l.b16 %v737
    %v1622 = vunpack.c.h.b16 %v737
    %v1623 = vunpack.c.l.b16 %v738
    %v1624 = vunpack.c.h.b16 %v738
    %v1625 = vunpack.c.l.b16 %v739
    %v1626 = vunpack.c.h.b16 %v739
    %v1627 = vunpack.c.l.b16 %v740
    %v1628 = vunpack.c.h.b16 %v740
    %v1629 = vunpack.c.l.b16 %v741
    %v1630 = vunpack.c.h.b16 %v741
    %v1631 = vunpack.c.l.b16 %v742
    %v1632 = vunpack.c.h.b16 %v742
    %v1633 = vunpack.c.l.b16 %v743
    %v1634 = vunpack.c.h.b16 %v743
    %v1635 = vunpack.c.l.b16 %v744
    %v1636 = vunpack.c.h.b16 %v744
    %v1637 = vunpack.c.l.b16 %v745
    %v1638 = vunpack.c.h.b16 %v745
    %v1639 = vunpack.c.l.b16 %v746
    %v1640 = vunpack.c.h.b16 %v746
    %v1641 = vunpack.c.l.b16 %v747
    %v1642 = vunpack.c.h.b16 %v747
    %v1643 = vunpack.c.l.b16 %v748
    %v1644 = vunpack.c.h.b16 %v748
    %v1645 = vpack.c.b16 %v1075, %v1069
    %v1646 = vpack.c.b16 %v1076, %v1070
    %v1647 = vpack.c.b16 %v1077, %v1071
    %v1648 = vpack.c.b16 %v1078, %v1072
    %v1649 = vpack.c.b16 %v1079, %v1073
    %v1650 = vpack.c.b16 %v1080, %v1074
    %v1651 = vpack.c.b16 %v1087, %v1081
    %v1652 = vpack.c.b16 %v1088, %v1082
    %v1653 = vpack.c.b16 %v1089, %v1083
    %v1654 = vpack.c.b16 %v1090, %v1084
    %v1655 = vpack.c.b16 %v1091, %v1085
    %v1656 = vpack.c.b16 %v1092, %v1086
    %v1657 = vpack.c.b16 %v1099, %v1093
    %v1658 = vpack.c.b16 %v1100, %v1094
    %v1659 = vpack.c.b16 %v1101, %v1095
    %v1660 = vpack.c.b16 %v1102, %v1096
    %v1661 = vpack.c.b16 %v1103, %v1097
    %v1662 = vpack.c.b16 %v1104, %v1098
    %v1663 = vpack.c.b16 %v1111, %v1105
    %v1664 = vpack.c.b16 %v1112, %v1106
    %v1665 = vpack.c.b16 %v1113, %v1107
    %v1666 = vpack.c.b16 %v1114, %v1108
    %v1667 = vpack.c.b16 %v1115, %v1109
    %v1668 = vpack.c.b16 %v1116, %v1110
    %v1669 = vpack.c.b16 %v1123, %v1117
    %v1670 = vpack.c.b16 %v1124, %v1118
    %v1671 = vpack.c.b16 %v1125, %v1119
    %v1672 = vpack.c.b16 %v1126, %v1120
    %v1673 = vpack.c.b16 %v1127, %v1121
    %v1674 = vpack.c.b16 %v1128, %v1122
    %v1675 = vpack.c.b16 %v1135, %v1129
    %v1676 = vpack.c.b16 %v1136, %v1130
    %v1677 = vpack.c.b16 %v1137, %v1131
    %v1678 = vpack.c.b16 %v1138, %v1132
    %v1679 = vpack.c.b16 %v1139, %v1133
    %v1680 = vpack.c.b16 %v1140, %v1134
    %v1681 = vpack.c.b16 %v1147, %v1141
    %v1682 = vpack.c.b16 %v1148, %v1142
    %v1683 = vpack.c.b16 %v1149, %v1143
    %v1684 = vpack.c.b16 %v1150, %v1144
    %v1685 = vpack.c.b16 %v1151, %v1145
    %v1686 = vpack.c.b16 %v1152, %v1146
    %v1687 = vpack.c.b16 %v1159, %v1153
    %v1688 = vpack.c.b16 %v1160, %v1154
    %v1689 = vpack.c.b16 %v1161, %v1155
    %v1690 = vpack.c.b16 %v1162, %v1156
    %v1691 = vpack.c.b16 %v1163, %v1157
    %v1692 = vpack.c.b16 %v1164, %v1158
    %v1693 = vpack.c.b16 %v1171, %v1165
    %v1694 = vpack.c.b16 %v1172, %v1166
    %v1695 = vpack.c.b16 %v1173, %v1167
    %v1696 = vpack.c.b16 %v1174, %v1168
    %v1697 = vpack.c.b16 %v1175, %v1169
    %v1698 = vpack.c.b16 %v1176, %v1170
    %v1699 = vpack.c.b16 %v1183, %v1177
    %v1700 = vpack.c.b16 %v1184, %v1178
    %v1701 = vpack.c.b16 %v1185, %v1179
    %v1702 = vpack.c.b16 %v1186, %v1180
    %v1703 = vpack.c.b16 %v1187, %v1181
    %v1704 = vpack.c.b16 %v1188, %v1182
    %v1705 = vpack.c.b16 %v1195, %v1189
    %v1706 = vpack.c.b16 %v1196, %v1190
    %v1707 = vpack.c.b16 %v1197, %v1191
    %v1708 = vpack.c.b16 %v1198, %v1192
    %v1709 = vpack.c.b16 %v1199, %v1193
    %v1710 = vpack.c.b16 %v1200, %v1194
    %v1711 = vpack.c.b16 %v1207, %v1201
    %v1712 = vpack.c.b16 %v1208, %v1202
    %v1713 = vpack.c.b16 %v1209, %v1203
    %v1714 = vpack.c.b16 %v1210, %v1204
    %v1715 = vpack.c.b16 %v1211, %v1205
    %v1716 = vpack.c.b16 %v1212, %v1206
    %v1717 = vpack.c.b16 %v1219, %v1213
    %v1718 = vpack.c.b16 %v1220, %v1214
    %v1719 = vpack.c.b16 %v1221, %v1215
    %v1720 = vpack.c.b16 %v1222, %v1216
    %v1721 = vpack.c.b16 %v1223, %v1217
    %v1722 = vpack.c.b16 %v1224, %v1218
    %v1723 = vpack.c.b16 %v1231, %v1225
    %v1724 = vpack.c.b16 %v1232, %v1226
    %v1725 = vpack.c.b16 %v1233, %v1227
    %v1726 = vpack.c.b16 %v1234, %v1228
    %v1727 = vpack.c.b16 %v1235, %v1229
    %v1728 = vpack.c.b16 %v1236, %v1230
    %v1729 = vpack.c.b16 %v1243, %v1237
    %v1730 = vpack.c.b16 %v1244, %v1238
    %v1731 = vpack.c.b16 %v1245, %v1239
    %v1732 = vpack.c.b16 %v1246, %v1240
    %v1733 = vpack.c.b16 %v1247, %v1241
    %v1734 = vpack.c.b16 %v1248, %v1242
    %v1735 = vpack.c.b16 %v1255, %v1249
    %v1736 = vpack.c.b16 %v1256, %v1250
    %v1737 = vpack.c.b16 %v1257, %v1251
    %v1738 = vpack.c.b16 %v1258, %v1252
    %v1739 = vpack.c.b16 %v1259, %v1253
    %v1740 = vpack.c.b16 %v1260, %v1254
    %v1741 = vpack.c.b16 %v1267, %v1261
    %v1742 = vpack.c.b16 %v1268, %v1262
    %v1743 = vpack.c.b16 %v1269, %v1263
    %v1744 = vpack.c.b16 %v1270, %v1264
    %v1745 = vpack.c.b16 %v1271, %v1265
    %v1746 = vpack.c.b16 %v1272, %v1266
    %v1747 = vpack.c.b16 %v1279, %v1273
    %v1748 = vpack.c.b16 %v1280, %v1274
    %v1749 = vpack.c.b16 %v1281, %v1275
    %v1750 = vpack.c.b16 %v1282, %v1276
    %v1751 = vpack.c.b16 %v1283, %v1277
    %v1752 = vpack.c.b16 %v1284, %v1278
    %v1753 = vpack.c.b16 %v1291, %v1285
    %v1754 = vpack.c.b16 %v1292, %v1286
    %v1755 = vpack.c.b16 %v1293, %v1287
    %v1756 = vpack.c.b16 %v1294, %v1288
    %v1757 = vpack.c.b16 %v1295, %v1289
    %v1758 = vpack.c.b16 %v1296, %v1290
    %v1759 = vpack.c.b16 %v1303, %v1297
    %v1760 = vpack.c.b16 %v1304, %v1298
    %v1761 = vpack.c.b16 %v1305, %v1299
    %v1762 = vpack.c.b16 %v1306, %v1300
    %v1763 = vpack.c.b16 %v1307, %v1301
    %v1764 = vpack.c.b16 %v1308, %v1302
    %v1765 = vpack.c.b16 %v1315, %v1309
    %v1766 = vpack.c.b16 %v1316, %v1310
    %v1767 = vpack.c.b16 %v1317, %v1311
    %v1768 = vpack.c.b16 %v1318, %v1312
    %v1769 = vpack.c.b16 %v1319, %v1313
    %v1770 = vpack.c.b16 %v1320, %v1314
    %v1771 = vpack.c.b16 %v1327, %v1321
    %v1772 = vpack.c.b16 %v1328, %v1322
    %v1773 = vpack.c.b16 %v1329, %v1323
    %v1774 = vpack.c.b16 %v1330, %v1324
    %v1775 = vpack.c.b16 %v1331, %v1325
    %v1776 = vpack.c.b16 %v1332, %v1326
    %v1777 = vpack.c.b16 %v1339, %v1333
    %v1778 = vpack.c.b16 %v1340, %v1334
    %v1779 = vpack.c.b16 %v1341, %v1335
    %v1780 = vpack.c.b16 %v1342, %v1336
    %v1781 = vpack.c.b16 %v1343, %v1337
    %v1782 = vpack.c.b16 %v1344, %v1338
    %v1783 = vpack.c.b16 %v1351, %v1345
    %v1784 = vpack.c.b16 %v1352, %v1346
    %v1785 = vpack.c.b16 %v1353, %v1347
    %v1786 = vpack.c.b16 %v1354, %v1348
    %v1787 = vpack.c.b16 %v1355, %v1349
    %v1788 = vpack.c.b16 %v1356, %v1350
    %v1789 = vpack.c.b16 %v1363, %v1357
    %v1790 = vpack.c.b16 %v1364, %v1358
    %v1791 = vpack.c.b16 %v1365, %v1359
    %v1792 = vpack.c.b16 %v1366, %v1360
    %v1793 = vpack.c.b16 %v1367, %v1361
    %v1794 = vpack.c.b16 %v1368, %v1362
    %v1795 = vpack.c.b16 %v1375, %v1369
    %v1796 = vpack.c.b16 %v1376, %v1370
    %v1797 = vpack.c.b16 %v1377, %v1371
    %v1798 = vpack.c.b16 %v1378, %v1372
    %v1799 = vpack.c.b16 %v1379, %v1373
    %v1800 = vpack.c.b16 %v1380, %v1374
    %v1801 = vpack.c.b16 %v1387, %v1381
    %v1802 = vpack.c.b16 %v1388, %v1382
    %v1803 = vpack.c.b16 %v1389, %v1383
    %v1804 = vpack.c.b16 %v1390, %v1384
    %v1805 = vpack.c.b16 %v1391, %v1385
    %v1806 = vpack.c.b16 %v1392, %v1386
    %v1807 = vpack.c.b16 %v1399, %v1393
    %v1808 = vpack.c.b16 %v1400, %v1394
    %v1809 = vpack.c.b16 %v1401, %v1395
    %v1810 = vpack.c.b16 %v1402, %v1396
    %v1811 = vpack.c.b16 %v1403, %v1397
    %v1812 = vpack.c.b16 %v1404, %v1398
    %v1813 = vpack.c.b16 %v1411, %v1405
    %v1814 = vpack.c.b16 %v1412, %v1406
    %v1815 = vpack.c.b16 %v1413, %v1407
    %v1816 = vpack.c.b16 %v1414, %v1408
    %v1817 = vpack.c.b16 %v1415, %v1409
    %v1818 = vpack.c.b16 %v1416, %v1410
    %v1819 = vpack.c.b16 %v1423, %v1417
    %v1820 = vpack.c.b16 %v1424, %v1418
    %v1821 = vpack.c.b16 %v1425, %v1419
    %v1822 = vpack.c.b16 %v1426, %v1420
    %v1823 = vpack.c.b16 %v1427, %v1421
    %v1824 = vpack.c.b16 %v1428, %v1422
    %v1825 = vpack.c.b16 %v1435, %v1429
    %v1826 = vpack.c.b16 %v1436, %v1430
    %v1827 = vpack.c.b16 %v1437, %v1431
    %v1828 = vpack.c.b16 %v1438, %v1432
    %v1829 = vpack.c.b16 %v1439, %v1433
    %v1830 = vpack.c.b16 %v1440, %v1434
    %v1831 = vpack.c.b16 %v1447, %v1441
    %v1832 = vpack.c.b16 %v1448, %v1442
    %v1833 = vpack.c.b16 %v1449, %v1443
    %v1834 = vpack.c.b16 %v1450, %v1444
    %v1835 = vpack.c.b16 %v1451, %v1445
    %v1836 = vpack.c.b16 %v1452, %v1446
    %v1837 = vpack.c.b16 %v1459, %v1453
    %v1838 = vpack.c.b16 %v1460, %v1454
    %v1839 = vpack.c.b16 %v1461, %v1455
    %v1840 = vpack.c.b16 %v1462, %v1456
    %v1841 = vpack.c.b16 %v1463, %v1457
    %v1842 = vpack.c.b16 %v1464, %v1458
    %v1843 = vpack.c.b16 %v1471, %v1465
    %v1844 = vpack.c.b16 %v1472, %v1466
    %v1845 = vpack.c.b16 %v1473, %v1467
    %v1846 = vpack.c.b16 %v1474, %v1468
    %v1847 = vpack.c.b16 %v1475, %v1469
    %v1848 = vpack.c.b16 %v1476, %v1470
    %v1849 = vpack.c.b16 %v1483, %v1477
    %v1850 = vpack.c.b16 %v1484, %v1478
    %v1851 = vpack.c.b16 %v1485, %v1479
    %v1852 = vpack.c.b16 %v1486, %v1480
    %v1853 = vpack.c.b16 %v1487, %v1481
    %v1854 = vpack.c.b16 %v1488, %v1482
    %v1855 = vpack.c.b16 %v1495, %v1489
    %v1856 = vpack.c.b16 %v1496, %v1490
    %v1857 = vpack.c.b16 %v1497, %v1491
    %v1858 = vpack.c.b16 %v1498, %v1492
    %v1859 = vpack.c.b16 %v1499, %v1493
    %v1860 = vpack.c.b16 %v1500, %v1494
    %v1861 = vpack.c.b16 %v1507, %v1501
    %v1862 = vpack.c.b16 %v1508, %v1502
    %v1863 = vpack.c.b16 %v1509, %v1503
    %v1864 = vpack.c.b16 %v1510, %v1504
    %v1865 = vpack.c.b16 %v1511, %v1505
    %v1866 = vpack.c.b16 %v1512, %v1506
    %v1867 = vpack.c.b16 %v1519, %v1513
    %v1868 = vpack.c.b16 %v1520, %v1514
    %v1869 = vpack.c.b16 %v1521, %v1515
    %v1870 = vpack.c.b16 %v1522, %v1516
    %v1871 = vpack.c.b16 %v1523, %v1517
    %v1872 = vpack.c.b16 %v1524, %v1518
    %v1873 = vpack.c.b16 %v1531, %v1525
    %v1874 = vpack.c.b16 %v1532, %v1526
    %v1875 = vpack.c.b16 %v1533, %v1527
    %v1876 = vpack.c.b16 %v1534, %v1528
    %v1877 = vpack.c.b16 %v1535, %v1529
    %v1878 = vpack.c.b16 %v1536, %v1530
    %v1879 = vpack.c.b16 %v1543, %v1537
    %v1880 = vpack.c.b16 %v1544, %v1538
    %v1881 = vpack.c.b16 %v1545, %v1539
    %v1882 = vpack.c.b16 %v1546, %v1540
    %v1883 = vpack.c.b16 %v1547, %v1541
    %v1884 = vpack.c.b16 %v1548, %v1542
    %v1885 = vpack.c.b16 %v1555, %v1549
    %v1886 = vpack.c.b16 %v1556, %v1550
    %v1887 = vpack.c.b16 %v1557, %v1551
    %v1888 = vpack.c.b16 %v1558, %v1552
    %v1889 = vpack.c.b16 %v1559, %v1553
    %v1890 = vpack.c.b16 %v1560, %v1554
    %v1891 = vpack.c.b16 %v1567, %v1561
    %v1892 = vpack.c.b16 %v1568, %v1562
    %v1893 = vpack.c.b16 %v1569, %v1563
    %v1894 = vpack.c.b16 %v1570, %v1564
    %v1895 = vpack.c.b16 %v1571, %v1565
    %v1896 = vpack.c.b16 %v1572, %v1566
    %v1897 = vpack.c.b16 %v1579, %v1573
    %v1898 = vpack.c.b16 %v1580, %v1574
    %v1899 = vpack.c.b16 %v1581, %v1575
    %v1900 = vpack.c.b16 %v1582, %v1576
    %v1901 = vpack.c.b16 %v1583, %v1577
    %v1902 = vpack.c.b16 %v1584, %v1578
    %v1903 = vpack.c.b16 %v1591, %v1585
    %v1904 = vpack.c.b16 %v1592, %v1586
    %v1905 = vpack.c.b16 %v1593, %v1587
    %v1906 = vpack.c.b16 %v1594, %v1588
    %v1907 = vpack.c.b16 %v1595, %v1589
    %v1908 = vpack.c.b16 %v1596, %v1590
    %v1909 = vpack.c.b16 %v1603, %v1597
    %v1910 = vpack.c.b16 %v1604, %v1598
    %v1911 = vpack.c.b16 %v1605, %v1599
    %v1912 = vpack.c.b16 %v1606, %v1600
    %v1913 = vpack.c.b16 %v1607, %v1601
    %v1914 = vpack.c.b16 %v1608, %v1602
    %v1915 = vpack.c.b16 %v1615, %v1609
    %v1916 = vpack.c.b16 %v1616, %v1610
    %v1917 = vpack.c.b16 %v1617, %v1611
    %v1918 = vpack.c.b16 %v1618, %v1612
    %v1919 = vpack.c.b16 %v1619, %v1613
    %v1920 = vpack.c.b16 %v1620, %v1614
    %v1921 = vpack.c.b16 %v1627, %v1621
    %v1922 = vpack.c.b16 %v1628, %v1622
    %v1923 = vpack.c.b16 %v1629, %v1623
    %v1924 = vpack.c.b16 %v1630, %v1624
    %v1925 = vpack.c.b16 %v1631, %v1625
    %v1926 = vpack.c.b16 %v1632, %v1626
    %v1927 = vpack.c.b16 %v1639, %v1633
    %v1928 = vpack.c.b16 %v1640, %v1634
    %v1929 = vpack.c.b16 %v1641, %v1635
    %v1930 = vpack.c.b16 %v1642, %v1636
    %v1931 = vpack.c.b16 %v1643, %v1637
    %v1932 = vpack.c.b16 %v1644, %v1638
    %2221 = vmatprep.subr.bf16.mxu0 %v1688
    %2222 = vmatpush1.bf16.msra.mxu0 %v1687
    %2223 = vmatprep.subr.bf16.mxu0 %v1682
    %2224 = vmatpush1.bf16.msra.mxu0 %v1681
    %2225 = vmatprep.subr.bf16.mxu0 %v1676
    %2226 = vmatpush1.bf16.msra.mxu0 %v1675
    %2227 = vmatprep.subr.bf16.mxu0 %v1670
    %2228 = vmatpush1.bf16.msra.mxu0 %v1669
    %2229 = vmatprep.subr.bf16.mxu0 %v1664
    %2230 = vmatpush1.bf16.msra.mxu0 %v1663
    %2231 = vmatprep.subr.bf16.mxu0 %v1658
    %2232 = vmatpush1.bf16.msra.mxu0 %v1657
    %2233 = vmatprep.subr.bf16.mxu0 %v1652
    %2234 = vmatpush1.bf16.msra.mxu0 %v1651
    %2235 = vmatprep.subr.bf16.mxu0 %v1646
    %2236 = vmatpush1.bf16.msra.mxu0 %v1645
    %2237 = vmatprep.subr.bf16.mxu0 %v1736
    %2238 = vmatpush2.bf16.msra.mxu0 %v1735
    %2239 = vmatprep.subr.bf16.mxu0 %v1730
    %2240 = vmatpush2.bf16.msra.mxu0 %v1729
    %2241 = vmatprep.subr.bf16.mxu0 %v1724
    %2242 = vmatpush2.bf16.msra.mxu0 %v1723
    %2243 = vmatprep.subr.bf16.mxu0 %v1718
    %2244 = vmatpush2.bf16.msra.mxu0 %v1717
    %2245 = vmatprep.subr.bf16.mxu0 %v1712
    %2246 = vmatpush2.bf16.msra.mxu0 %v1711
    %2247 = vmatprep.subr.bf16.mxu0 %v1706
    %2248 = vmatpush2.bf16.msra.mxu0 %v1705
    %2249 = vmatprep.subr.bf16.mxu0 %v1700
    %2250 = vmatpush2.bf16.msra.mxu0 %v1699
    %2251 = vmatprep.subr.bf16.mxu0 %v1694
    %2252 = vmatpush2.bf16.msra.mxu0 %v1693
    %2253 = vmatprep.mubr.bf16.mxu0 %v456
    %2254 = vmatmul.mubr.bf16.gmra.mxu0 %v455
    %v2255 = vpop.f32.mrf.mxu0
    %v2256 = vadd.f32 %v754, %v2255
    %v2257 = vpop.f32.mrf.mxu0
    %v2258 = vadd.f32 %v758, %v2257
    %v2259 = vpop.f32.mrf.mxu0
    %v2260 = vpop.f32.mrf.mxu0
    %2261 = vdwg.mxu0
    %2262 = vmatprep.subr.bf16.mxu0 %v1784
    %2263 = vmatpush1.bf16.msra.mxu0 %v1783
    %2264 = vmatprep.subr.bf16.mxu0 %v1778
    %2265 = vmatpush1.bf16.msra.mxu0 %v1777
    %2266 = vmatprep.subr.bf16.mxu0 %v1772
    %2267 = vmatpush1.bf16.msra.mxu0 %v1771
    %2268 = vmatprep.subr.bf16.mxu0 %v1766
    %2269 = vmatpush1.bf16.msra.mxu0 %v1765
    %2270 = vmatprep.subr.bf16.mxu0 %v1760
    %2271 = vmatpush1.bf16.msra.mxu0 %v1759
    %2272 = vmatprep.subr.bf16.mxu0 %v1754
    %2273 = vmatpush1.bf16.msra.mxu0 %v1753
    %2274 = vmatprep.subr.bf16.mxu0 %v1748
    %2275 = vmatpush1.bf16.msra.mxu0 %v1747
    %2276 = vmatprep.subr.bf16.mxu0 %v1742
    %2277 = vmatpush1.bf16.msra.mxu0 %v1741
    %2278 = vmatprep.subr.bf16.mxu0 %v1832
    %2279 = vmatpush2.bf16.msra.mxu0 %v1831
    %2280 = vmatprep.subr.bf16.mxu0 %v1826
    %2281 = vmatpush2.bf16.msra.mxu0 %v1825
    %2282 = vmatprep.subr.bf16.mxu0 %v1820
    %2283 = vmatpush2.bf16.msra.mxu0 %v1819
    %2284 = vmatprep.subr.bf16.mxu0 %v1814
    %2285 = vmatpush2.bf16.msra.mxu0 %v1813
    %2286 = vmatprep.subr.bf16.mxu0 %v1808
    %2287 = vmatpush2.bf16.msra.mxu0 %v1807
    %2288 = vmatprep.subr.bf16.mxu0 %v1802
    %2289 = vmatpush2.bf16.msra.mxu0 %v1801
    %2290 = vmatprep.subr.bf16.mxu0 %v1796
    %2291 = vmatpush2.bf16.msra.mxu0 %v1795
    %2292 = vmatprep.subr.bf16.mxu0 %v1790
    %2293 = vmatpush2.bf16.msra.mxu0 %v1789
    %2294 = vmatprep.mubr.bf16.mxu0 %v458
    %2295 = vmatmul.mubr.bf16.gmra.mxu0 %v457
    %v2296 = vpop.f32.mrf.mxu0
    %v2297 = vadd.f32 %v2256, %v2296
    %v2298 = vpop.f32.mrf.mxu0
    %v2299 = vadd.f32 %v2258, %v2298
    %v2300 = vpop.f32.mrf.mxu0
    %v2301 = vpop.f32.mrf.mxu0
    %2302 = vdwg.mxu0
    %2303 = vmatprep.subr.bf16.mxu0 %v1880
    %2304 = vmatpush1.bf16.msra.mxu0 %v1879
    %2305 = vmatprep.subr.bf16.mxu0 %v1874
    %2306 = vmatpush1.bf16.msra.mxu0 %v1873
    %2307 = vmatprep.subr.bf16.mxu0 %v1868
    %2308 = vmatpush1.bf16.msra.mxu0 %v1867
    %2309 = vmatprep.subr.bf16.mxu0 %v1862
    %2310 = vmatpush1.bf16.msra.mxu0 %v1861
    %2311 = vmatprep.subr.bf16.mxu0 %v1856
    %2312 = vmatpush1.bf16.msra.mxu0 %v1855
    %2313 = vmatprep.subr.bf16.mxu0 %v1850
    %2314 = vmatpush1.bf16.msra.mxu0 %v1849
    %2315 = vmatprep.subr.bf16.mxu0 %v1844
    %2316 = vmatpush1.bf16.msra.mxu0 %v1843
    %2317 = vmatprep.subr.bf16.mxu0 %v1838
    %2318 = vmatpush1.bf16.msra.mxu0 %v1837
    %2319 = vmatprep.subr.bf16.mxu0 %v1928
    %2320 = vmatpush2.bf16.msra.mxu0 %v1927
    %2321 = vmatprep.subr.bf16.mxu0 %v1922
    %2322 = vmatpush2.bf16.msra.mxu0 %v1921
    %2323 = vmatprep.subr.bf16.mxu0 %v1916
    %2324 = vmatpush2.bf16.msra.mxu0 %v1915
    %2325 = vmatprep.subr.bf16.mxu0 %v1910
    %2326 = vmatpush2.bf16.msra.mxu0 %v1909
    %2327 = vmatprep.subr.bf16.mxu0 %v1904
    %2328 = vmatpush2.bf16.msra.mxu0 %v1903
    %2329 = vmatprep.subr.bf16.mxu0 %v1898
    %2330 = vmatpush2.bf16.msra.mxu0 %v1897
    %2331 = vmatprep.subr.bf16.mxu0 %v1892
    %2332 = vmatpush2.bf16.msra.mxu0 %v1891
    %2333 = vmatprep.subr.bf16.mxu0 %v1886
    %2334 = vmatpush2.bf16.msra.mxu0 %v1885
    %2335 = vmatprep.mubr.bf16.mxu0 %v460
    %2336 = vmatmul.mubr.bf16.gmra.mxu0 %v459
    %v2337 = vpop.f32.mrf.mxu0
    %v2338 = vadd.f32 %v2297, %v2337
    %v2339 = vpop.f32.mrf.mxu0
    %v2340 = vadd.f32 %v2299, %v2339
    %v2341 = vpop.f32.mrf.mxu0
    %v2342 = vpop.f32.mrf.mxu0
    %2343 = vdwg.mxu0
    %2344 = vmatprep.subr.bf16.mxu0 %v1690
    %2345 = vmatpush1.bf16.msra.mxu0 %v1689
    %2346 = vmatprep.subr.bf16.mxu0 %v1684
    %2347 = vmatpush1.bf16.msra.mxu0 %v1683
    %2348 = vmatprep.subr.bf16.mxu0 %v1678
    %2349 = vmatpush1.bf16.msra.mxu0 %v1677
    %2350 = vmatprep.subr.bf16.mxu0 %v1672
    %2351 = vmatpush1.bf16.msra.mxu0 %v1671
    %2352 = vmatprep.subr.bf16.mxu0 %v1666
    %2353 = vmatpush1.bf16.msra.mxu0 %v1665
    %2354 = vmatprep.subr.bf16.mxu0 %v1660
    %2355 = vmatpush1.bf16.msra.mxu0 %v1659
    %2356 = vmatprep.subr.bf16.mxu0 %v1654
    %2357 = vmatpush1.bf16.msra.mxu0 %v1653
    %2358 = vmatprep.subr.bf16.mxu0 %v1648
    %2359 = vmatpush1.bf16.msra.mxu0 %v1647
    %2360 = vmatprep.subr.bf16.mxu0 %v1738
    %2361 = vmatpush2.bf16.msra.mxu0 %v1737
    %2362 = vmatprep.subr.bf16.mxu0 %v1732
    %2363 = vmatpush2.bf16.msra.mxu0 %v1731
    %2364 = vmatprep.subr.bf16.mxu0 %v1726
    %2365 = vmatpush2.bf16.msra.mxu0 %v1725
    %2366 = vmatprep.subr.bf16.mxu0 %v1720
    %2367 = vmatpush2.bf16.msra.mxu0 %v1719
    %2368 = vmatprep.subr.bf16.mxu0 %v1714
    %2369 = vmatpush2.bf16.msra.mxu0 %v1713
    %2370 = vmatprep.subr.bf16.mxu0 %v1708
    %2371 = vmatpush2.bf16.msra.mxu0 %v1707
    %2372 = vmatprep.subr.bf16.mxu0 %v1702
    %2373 = vmatpush2.bf16.msra.mxu0 %v1701
    %2374 = vmatprep.subr.bf16.mxu0 %v1696
    %2375 = vmatpush2.bf16.msra.mxu0 %v1695
    %2376 = vmatprep.mubr.bf16.mxu0 %v456
    %2377 = vmatmul.mubr.bf16.gmra.mxu0 %v455
    %v2378 = vpop.f32.mrf.mxu0
    %v2379 = vadd.f32 %v762, %v2378
    %v2380 = vpop.f32.mrf.mxu0
    %v2381 = vadd.f32 %v766, %v2380
    %v2382 = vpop.f32.mrf.mxu0
    %v2383 = vpop.f32.mrf.mxu0
    %2384 = vdwg.mxu0
    %2385 = vmatprep.subr.bf16.mxu0 %v1786
    %2386 = vmatpush1.bf16.msra.mxu0 %v1785
    %2387 = vmatprep.subr.bf16.mxu0 %v1780
    %2388 = vmatpush1.bf16.msra.mxu0 %v1779
    %2389 = vmatprep.subr.bf16.mxu0 %v1774
    %2390 = vmatpush1.bf16.msra.mxu0 %v1773
    %2391 = vmatprep.subr.bf16.mxu0 %v1768
    %2392 = vmatpush1.bf16.msra.mxu0 %v1767
    %2393 = vmatprep.subr.bf16.mxu0 %v1762
    %2394 = vmatpush1.bf16.msra.mxu0 %v1761
    %2395 = vmatprep.subr.bf16.mxu0 %v1756
    %2396 = vmatpush1.bf16.msra.mxu0 %v1755
    %2397 = vmatprep.subr.bf16.mxu0 %v1750
    %2398 = vmatpush1.bf16.msra.mxu0 %v1749
    %2399 = vmatprep.subr.bf16.mxu0 %v1744
    %2400 = vmatpush1.bf16.msra.mxu0 %v1743
    %2401 = vmatprep.subr.bf16.mxu0 %v1834
    %2402 = vmatpush2.bf16.msra.mxu0 %v1833
    %2403 = vmatprep.subr.bf16.mxu0 %v1828
    %2404 = vmatpush2.bf16.msra.mxu0 %v1827
    %2405 = vmatprep.subr.bf16.mxu0 %v1822
    %2406 = vmatpush2.bf16.msra.mxu0 %v1821
    %2407 = vmatprep.subr.bf16.mxu0 %v1816
    %2408 = vmatpush2.bf16.msra.mxu0 %v1815
    %2409 = vmatprep.subr.bf16.mxu0 %v1810
    %2410 = vmatpush2.bf16.msra.mxu0 %v1809
    %2411 = vmatprep.subr.bf16.mxu0 %v1804
    %2412 = vmatpush2.bf16.msra.mxu0 %v1803
    %2413 = vmatprep.subr.bf16.mxu0 %v1798
    %2414 = vmatpush2.bf16.msra.mxu0 %v1797
    %2415 = vmatprep.subr.bf16.mxu0 %v1792
    %2416 = vmatpush2.bf16.msra.mxu0 %v1791
    %2417 = vmatprep.mubr.bf16.mxu0 %v458
    %2418 = vmatmul.mubr.bf16.gmra.mxu0 %v457
    %v2419 = vpop.f32.mrf.mxu0
    %v2420 = vadd.f32 %v2379, %v2419
    %v2421 = vpop.f32.mrf.mxu0
    %v2422 = vadd.f32 %v2381, %v2421
    %v2423 = vpop.f32.mrf.mxu0
    %v2424 = vpop.f32.mrf.mxu0
    %2425 = vdwg.mxu0
    %2426 = vmatprep.subr.bf16.mxu0 %v1882
    %2427 = vmatpush1.bf16.msra.mxu0 %v1881
    %2428 = vmatprep.subr.bf16.mxu0 %v1876
    %2429 = vmatpush1.bf16.msra.mxu0 %v1875
    %2430 = vmatprep.subr.bf16.mxu0 %v1870
    %2431 = vmatpush1.bf16.msra.mxu0 %v1869
    %2432 = vmatprep.subr.bf16.mxu0 %v1864
    %2433 = vmatpush1.bf16.msra.mxu0 %v1863
    %2434 = vmatprep.subr.bf16.mxu0 %v1858
    %2435 = vmatpush1.bf16.msra.mxu0 %v1857
    %2436 = vmatprep.subr.bf16.mxu0 %v1852
    %2437 = vmatpush1.bf16.msra.mxu0 %v1851
    %2438 = vmatprep.subr.bf16.mxu0 %v1846
    %2439 = vmatpush1.bf16.msra.mxu0 %v1845
    %2440 = vmatprep.subr.bf16.mxu0 %v1840
    %2441 = vmatpush1.bf16.msra.mxu0 %v1839
    %2442 = vmatprep.subr.bf16.mxu0 %v1930
    %2443 = vmatpush2.bf16.msra.mxu0 %v1929
    %2444 = vmatprep.subr.bf16.mxu0 %v1924
    %2445 = vmatpush2.bf16.msra.mxu0 %v1923
    %2446 = vmatprep.subr.bf16.mxu0 %v1918
    %2447 = vmatpush2.bf16.msra.mxu0 %v1917
    %2448 = vmatprep.subr.bf16.mxu0 %v1912
    %2449 = vmatpush2.bf16.msra.mxu0 %v1911
    %2450 = vmatprep.subr.bf16.mxu0 %v1906
    %2451 = vmatpush2.bf16.msra.mxu0 %v1905
    %2452 = vmatprep.subr.bf16.mxu0 %v1900
    %2453 = vmatpush2.bf16.msra.mxu0 %v1899
    %2454 = vmatprep.subr.bf16.mxu0 %v1894
    %2455 = vmatpush2.bf16.msra.mxu0 %v1893
    %2456 = vmatprep.subr.bf16.mxu0 %v1888
    %2457 = vmatpush2.bf16.msra.mxu0 %v1887
    %2458 = vmatprep.mubr.bf16.mxu0 %v460
    %2459 = vmatmul.mubr.bf16.gmra.mxu0 %v459
    %v2460 = vpop.f32.mrf.mxu0
    %v2461 = vadd.f32 %v2420, %v2460
    %v2462 = vpop.f32.mrf.mxu0
    %v2463 = vadd.f32 %v2422, %v2462
    %v2464 = vpop.f32.mrf.mxu0
    %v2465 = vpop.f32.mrf.mxu0
    %2466 = vdwg.mxu0
    %2467 = vmatprep.subr.bf16.mxu0 %v1692
    %2468 = vmatpush1.bf16.msra.mxu0 %v1691
    %2469 = vmatprep.subr.bf16.mxu0 %v1686
    %2470 = vmatpush1.bf16.msra.mxu0 %v1685
    %2471 = vmatprep.subr.bf16.mxu0 %v1680
    %2472 = vmatpush1.bf16.msra.mxu0 %v1679
    %2473 = vmatprep.subr.bf16.mxu0 %v1674
    %2474 = vmatpush1.bf16.msra.mxu0 %v1673
    %2475 = vmatprep.subr.bf16.mxu0 %v1668
    %2476 = vmatpush1.bf16.msra.mxu0 %v1667
    %2477 = vmatprep.subr.bf16.mxu0 %v1662
    %2478 = vmatpush1.bf16.msra.mxu0 %v1661
    %2479 = vmatprep.subr.bf16.mxu0 %v1656
    %2480 = vmatpush1.bf16.msra.mxu0 %v1655
    %2481 = vmatprep.subr.bf16.mxu0 %v1650
    %2482 = vmatpush1.bf16.msra.mxu0 %v1649
    %2483 = vmatprep.subr.bf16.mxu0 %v1740
    %2484 = vmatpush2.bf16.msra.mxu0 %v1739
    %2485 = vmatprep.subr.bf16.mxu0 %v1734
    %2486 = vmatpush2.bf16.msra.mxu0 %v1733
    %2487 = vmatprep.subr.bf16.mxu0 %v1728
    %2488 = vmatpush2.bf16.msra.mxu0 %v1727
    %2489 = vmatprep.subr.bf16.mxu0 %v1722
    %2490 = vmatpush2.bf16.msra.mxu0 %v1721
    %2491 = vmatprep.subr.bf16.mxu0 %v1716
    %2492 = vmatpush2.bf16.msra.mxu0 %v1715
    %2493 = vmatprep.subr.bf16.mxu0 %v1710
    %2494 = vmatpush2.bf16.msra.mxu0 %v1709
    %2495 = vmatprep.subr.bf16.mxu0 %v1704
    %2496 = vmatpush2.bf16.msra.mxu0 %v1703
    %2497 = vmatprep.subr.bf16.mxu0 %v1698
    %2498 = vmatpush2.bf16.msra.mxu0 %v1697
    %2499 = vmatprep.mubr.bf16.mxu0 %v456
    %2500 = vmatmul.mubr.bf16.gmra.mxu0 %v455
    %v2501 = vpop.f32.mrf.mxu0
    %v2502 = vadd.f32 %v770, %v2501
    %v2503 = vpop.f32.mrf.mxu0
    %v2504 = vadd.f32 %v774, %v2503
    %v2505 = vpop.f32.mrf.mxu0
    %v2506 = vpop.f32.mrf.mxu0
    %2507 = vdwg.mxu0
    %2508 = vmatprep.subr.bf16.mxu0 %v1788
    %2509 = vmatpush1.bf16.msra.mxu0 %v1787
    %2510 = vmatprep.subr.bf16.mxu0 %v1782
    %2511 = vmatpush1.bf16.msra.mxu0 %v1781
    %2512 = vmatprep.subr.bf16.mxu0 %v1776
    %2513 = vmatpush1.bf16.msra.mxu0 %v1775
    %2514 = vmatprep.subr.bf16.mxu0 %v1770
    %2515 = vmatpush1.bf16.msra.mxu0 %v1769
    %2516 = vmatprep.subr.bf16.mxu0 %v1764
    %2517 = vmatpush1.bf16.msra.mxu0 %v1763
    %2518 = vmatprep.subr.bf16.mxu0 %v1758
    %2519 = vmatpush1.bf16.msra.mxu0 %v1757
    %2520 = vmatprep.subr.bf16.mxu0 %v1752
    %2521 = vmatpush1.bf16.msra.mxu0 %v1751
    %2522 = vmatprep.subr.bf16.mxu0 %v1746
    %2523 = vmatpush1.bf16.msra.mxu0 %v1745
    %2524 = vmatprep.subr.bf16.mxu0 %v1836
    %2525 = vmatpush2.bf16.msra.mxu0 %v1835
    %2526 = vmatprep.subr.bf16.mxu0 %v1830
    %2527 = vmatpush2.bf16.msra.mxu0 %v1829
    %2528 = vmatprep.subr.bf16.mxu0 %v1824
    %2529 = vmatpush2.bf16.msra.mxu0 %v1823
    %2530 = vmatprep.subr.bf16.mxu0 %v1818
    %2531 = vmatpush2.bf16.msra.mxu0 %v1817
    %2532 = vmatprep.subr.bf16.mxu0 %v1812
    %2533 = vmatpush2.bf16.msra.mxu0 %v1811
    %2534 = vmatprep.subr.bf16.mxu0 %v1806
    %2535 = vmatpush2.bf16.msra.mxu0 %v1805
    %2536 = vmatprep.subr.bf16.mxu0 %v1800
    %2537 = vmatpush2.bf16.msra.mxu0 %v1799
    %2538 = vmatprep.subr.bf16.mxu0 %v1794
    %2539 = vmatpush2.bf16.msra.mxu0 %v1793
    %2540 = vmatprep.mubr.bf16.mxu0 %v458
    %2541 = vmatmul.mubr.bf16.gmra.mxu0 %v457
    %v2542 = vpop.f32.mrf.mxu0
    %v2543 = vadd.f32 %v2502, %v2542
    %v2544 = vpop.f32.mrf.mxu0
    %v2545 = vadd.f32 %v2504, %v2544
    %v2546 = vpop.f32.mrf.mxu0
    %v2547 = vpop.f32.mrf.mxu0
    %2548 = vdwg.mxu0
    %2549 = vmatprep.subr.bf16.mxu0 %v1884
    %2550 = vmatpush1.bf16.msra.mxu0 %v1883
    %2551 = vmatprep.subr.bf16.mxu0 %v1878
    %2552 = vmatpush1.bf16.msra.mxu0 %v1877
    %2553 = vmatprep.subr.bf16.mxu0 %v1872
    %2554 = vmatpush1.bf16.msra.mxu0 %v1871
    %2555 = vmatprep.subr.bf16.mxu0 %v1866
    %2556 = vmatpush1.bf16.msra.mxu0 %v1865
    %2557 = vmatprep.subr.bf16.mxu0 %v1860
    %2558 = vmatpush1.bf16.msra.mxu0 %v1859
    %2559 = vmatprep.subr.bf16.mxu0 %v1854
    %2560 = vmatpush1.bf16.msra.mxu0 %v1853
    %2561 = vmatprep.subr.bf16.mxu0 %v1848
    %2562 = vmatpush1.bf16.msra.mxu0 %v1847
    %2563 = vmatprep.subr.bf16.mxu0 %v1842
    %2564 = vmatpush1.bf16.msra.mxu0 %v1841
    %2565 = vmatprep.subr.bf16.mxu0 %v1932
    %2566 = vmatpush2.bf16.msra.mxu0 %v1931
    %2567 = vmatprep.subr.bf16.mxu0 %v1926
    %2568 = vmatpush2.bf16.msra.mxu0 %v1925
    %2569 = vmatprep.subr.bf16.mxu0 %v1920
    %2570 = vmatpush2.bf16.msra.mxu0 %v1919
    %2571 = vmatprep.subr.bf16.mxu0 %v1914
    %2572 = vmatpush2.bf16.msra.mxu0 %v1913
    %2573 = vmatprep.subr.bf16.mxu0 %v1908
    %2574 = vmatpush2.bf16.msra.mxu0 %v1907
    %2575 = vmatprep.subr.bf16.mxu0 %v1902
    %2576 = vmatpush2.bf16.msra.mxu0 %v1901
    %2577 = vmatprep.subr.bf16.mxu0 %v1896
    %2578 = vmatpush2.bf16.msra.mxu0 %v1895
    %2579 = vmatprep.subr.bf16.mxu0 %v1890
    %2580 = vmatpush2.bf16.msra.mxu0 %v1889
    %2581 = vmatprep.mubr.bf16.mxu0 %v460
    %2582 = vmatmul.mubr.bf16.gmra.mxu0 %v459
    %v2583 = vpop.f32.mrf.mxu0
    %v2584 = vadd.f32 %v2543, %v2583
    %v2585 = vpop.f32.mrf.mxu0
    %v2586 = vadd.f32 %v2545, %v2585
    %v2587 = vpop.f32.mrf.mxu0
    %v2588 = vpop.f32.mrf.mxu0
    %2589 = vdwg.mxu0
    %v2590 = vmax.f32 %v2338, 0.0
    %v2591 = vmax.f32 %v2340, 0.0
    %v2592 = vmax.f32 %v2461, 0.0
    %v2593 = vmax.f32 %v2463, 0.0
    %v2594 = vmax.f32 %v2584, 0.0
    %v2595 = vmax.f32 %v2586, 0.0
    %v2596 = vpack.c.bf16 %v2590, %v2590
    %v2597 = vpack.c.bf16 %v2591, %v2591
    %v2598 = vpack.c.bf16 %v2592, %v2592
    %v2599 = vpack.c.bf16 %v2593, %v2593
    %v2600 = vpack.c.bf16 %v2594, %v2594
    %v2601 = vpack.c.bf16 %v2595, %v2595
    %v2602 = vld [vmem:[%s6] sm:$0xf]
    %v2603 = vld [vmem:[%s6 + $0x4] sm:$0xf]
    %v2604 = vld [vmem:[%s6 + $0x8] sm:$0xf]
    %v2605 = vld [vmem:[%s6 + $0xc] sm:$0xf]
    %v2606 = vld [vmem:[%s6 + $0x10] sm:$0xf]
    %v2607 = vld [vmem:[%s6 + $0x14] sm:$0xf]
    %v2608 = vld [vmem:[%s6 + $0x18] sm:$0xf]
    %v2609 = vld [vmem:[%s6 + $0x1c] sm:$0xf]
    %v2610 = vld [vmem:[%s6 + $0x20] sm:$0xf]
    %v2611 = vld [vmem:[%s6 + $0x24] sm:$0xf]
    %v2612 = vld [vmem:[%s6 + $0x28] sm:$0xf]
    %v2613 = vld [vmem:[%s6 + $0x2c] sm:$0xf]
    %v2614 = vld [vmem:[%s6 + $0x30] sm:$0xf]
    %v2615 = vld [vmem:[%s6 + $0x34] sm:$0xf]
    %v2616 = vld [vmem:[%s6 + $0x38] sm:$0xf]
    %v2617 = vld [vmem:[%s6 + $0x3c] sm:$0xf]
    %v2618 = vld [vmem:[%s6 + $0x40] sm:$0xf]
    %v2619 = vld [vmem:[%s6 + $0x44] sm:$0xf]
    %v2620 = vld [vmem:[%s6 + $0x48] sm:$0xf]
    %v2621 = vld [vmem:[%s6 + $0x4c] sm:$0xf]
    %v2622 = vld [vmem:[%s6 + $0x50] sm:$0xf]
    %v2623 = vld [vmem:[%s6 + $0x54] sm:$0xf]
    %v2624 = vld [vmem:[%s6 + $0x58] sm:$0xf]
    %v2625 = vld [vmem:[%s6 + $0x5c] sm:$0xf]
    %v2626 = vld [vmem:[%s6 + $0x60] sm:$0xf]
    %v2627 = vld [vmem:[%s6 + $0x64] sm:$0xf]
    %v2628 = vld [vmem:[%s6 + $0x68] sm:$0xf]
    %v2629 = vld [vmem:[%s6 + $0x6c] sm:$0xf]
    %v2630 = vld [vmem:[%s6 + $0x70] sm:$0xf]
    %v2631 = vld [vmem:[%s6 + $0x74] sm:$0xf]
    %v2632 = vld [vmem:[%s6 + $0x78] sm:$0xf]
    %v2633 = vld [vmem:[%s6 + $0x7c] sm:$0xf]
    %v2634 = vld [vmem:[%s6 + $0x80] sm:$0xf]
    %v2635 = vld [vmem:[%s6 + $0x84] sm:$0xf]
    %v2636 = vld [vmem:[%s6 + $0x88] sm:$0xf]
    %v2637 = vld [vmem:[%s6 + $0x8c] sm:$0xf]
    %v2638 = vld [vmem:[%s6 + $0x90] sm:$0xf]
    %v2639 = vld [vmem:[%s6 + $0x94] sm:$0xf]
    %v2640 = vld [vmem:[%s6 + $0x98] sm:$0xf]
    %v2641 = vld [vmem:[%s6 + $0x9c] sm:$0xf]
    %v2642 = vld [vmem:[%s6 + $0xa0] sm:$0xf]
    %v2643 = vld [vmem:[%s6 + $0xa4] sm:$0xf]
    %v2644 = vld [vmem:[%s6 + $0xa8] sm:$0xf]
    %v2645 = vld [vmem:[%s6 + $0xac] sm:$0xf]
    %v2646 = vld [vmem:[%s6 + $0xb0] sm:$0xf]
    %v2647 = vld [vmem:[%s6 + $0xb4] sm:$0xf]
    %v2648 = vld [vmem:[%s6 + $0xb8] sm:$0xf]
    %v2649 = vld [vmem:[%s6 + $0xbc] sm:$0xf]
    %v2650 = vld [vmem:[%s6 + $0xc0] sm:$0xf]
    %v2651 = vld [vmem:[%s6 + $0xc4] sm:$0xf]
    %v2652 = vld [vmem:[%s6 + $0xc8] sm:$0xf]
    %v2653 = vld [vmem:[%s6 + $0xcc] sm:$0xf]
    %v2654 = vld [vmem:[%s6 + $0xd0] sm:$0xf]
    %v2655 = vld [vmem:[%s6 + $0xd4] sm:$0xf]
    %v2656 = vld [vmem:[%s6 + $0xd8] sm:$0xf]
    %v2657 = vld [vmem:[%s6 + $0xdc] sm:$0xf]
    %v2658 = vld [vmem:[%s6 + $0xe0] sm:$0xf]
    %v2659 = vld [vmem:[%s6 + $0xe4] sm:$0xf]
    %v2660 = vld [vmem:[%s6 + $0xe8] sm:$0xf]
    %v2661 = vld [vmem:[%s6 + $0xec] sm:$0xf]
    %v2662 = vld [vmem:[%s6 + $0xf0] sm:$0xf]
    %v2663 = vld [vmem:[%s6 + $0xf4] sm:$0xf]
    %v2664 = vld [vmem:[%s6 + $0xf8] sm:$0xf]
    %v2665 = vld [vmem:[%s6 + $0xfc] sm:$0xf]
    %v2666 = vld [vmem:[%s6 + $0x100] sm:$0xf]
    %v2667 = vld [vmem:[%s6 + $0x104] sm:$0xf]
    %v2668 = vld [vmem:[%s6 + $0x108] sm:$0xf]
    %v2669 = vld [vmem:[%s6 + $0x10c] sm:$0xf]
    %v2670 = vld [vmem:[%s6 + $0x110] sm:$0xf]
    %v2671 = vld [vmem:[%s6 + $0x114] sm:$0xf]
    %v2672 = vld [vmem:[%s6 + $0x118] sm:$0xf]
    %v2673 = vld [vmem:[%s6 + $0x11c] sm:$0xf]
    %v2674 = vld [vmem:[%s6 + $0x120] sm:$0xf]
    %v2675 = vld [vmem:[%s6 + $0x124] sm:$0xf]
    %v2676 = vld [vmem:[%s6 + $0x128] sm:$0xf]
    %v2677 = vld [vmem:[%s6 + $0x12c] sm:$0xf]
    %v2678 = vld [vmem:[%s6 + $0x130] sm:$0xf]
    %v2679 = vld [vmem:[%s6 + $0x134] sm:$0xf]
    %v2680 = vld [vmem:[%s6 + $0x138] sm:$0xf]
    %v2681 = vld [vmem:[%s6 + $0x13c] sm:$0xf]
    %v2682 = vld [vmem:[%s6 + $0x140] sm:$0xf]
    %v2683 = vld [vmem:[%s6 + $0x144] sm:$0xf]
    %v2684 = vld [vmem:[%s6 + $0x148] sm:$0xf]
    %v2685 = vld [vmem:[%s6 + $0x14c] sm:$0xf]
    %v2686 = vld [vmem:[%s6 + $0x150] sm:$0xf]
    %v2687 = vld [vmem:[%s6 + $0x154] sm:$0xf]
    %v2688 = vld [vmem:[%s6 + $0x158] sm:$0xf]
    %v2689 = vld [vmem:[%s6 + $0x15c] sm:$0xf]
    %v2690 = vld [vmem:[%s6 + $0x160] sm:$0xf]
    %v2691 = vld [vmem:[%s6 + $0x164] sm:$0xf]
    %v2692 = vld [vmem:[%s6 + $0x168] sm:$0xf]
    %v2693 = vld [vmem:[%s6 + $0x16c] sm:$0xf]
    %v2694 = vld [vmem:[%s6 + $0x170] sm:$0xf]
    %v2695 = vld [vmem:[%s6 + $0x174] sm:$0xf]
    %v2696 = vld [vmem:[%s6 + $0x178] sm:$0xf]
    %v2697 = vld [vmem:[%s6 + $0x17c] sm:$0xf]
    %v2698 = vld [vmem:[#allocation13] sm:$0x1]
    %v2700 = vlaneseq
    %v2701 = vshrl.u32 %v2700, 7
    %v2702 = vsub.s32 0, %v2701
    %v2703 = vrot.slane %v2698, %v2702
    %v2801 = vunpack.c.l.b16 %v2602
    %v2802 = vunpack.c.l.b16 %v2603
    %v2803 = vunpack.c.l.b16 %v2604
    %v2804 = vunpack.c.l.b16 %v2605
    %v2805 = vunpack.c.l.b16 %v2606
    %v2806 = vunpack.c.l.b16 %v2607
    %v2807 = vunpack.c.l.b16 %v2608
    %v2808 = vunpack.c.l.b16 %v2609
    %v2809 = vunpack.c.l.b16 %v2610
    %v2810 = vunpack.c.l.b16 %v2611
    %v2811 = vunpack.c.l.b16 %v2612
    %v2812 = vunpack.c.l.b16 %v2613
    %v2813 = vunpack.c.l.b16 %v2614
    %v2814 = vunpack.c.l.b16 %v2615
    %v2815 = vunpack.c.l.b16 %v2616
    %v2816 = vunpack.c.l.b16 %v2617
    %v2817 = vunpack.c.l.b16 %v2618
    %v2818 = vunpack.c.l.b16 %v2619
    %v2819 = vunpack.c.l.b16 %v2620
    %v2820 = vunpack.c.l.b16 %v2621
    %v2821 = vunpack.c.l.b16 %v2622
    %v2822 = vunpack.c.l.b16 %v2623
    %v2823 = vunpack.c.l.b16 %v2624
    %v2824 = vunpack.c.l.b16 %v2625
    %v2825 = vunpack.c.l.b16 %v2626
    %v2826 = vunpack.c.l.b16 %v2627
    %v2827 = vunpack.c.l.b16 %v2628
    %v2828 = vunpack.c.l.b16 %v2629
    %v2829 = vunpack.c.l.b16 %v2630
    %v2830 = vunpack.c.l.b16 %v2631
    %v2831 = vunpack.c.l.b16 %v2632
    %v2832 = vunpack.c.l.b16 %v2633
    %v2833 = vunpack.c.l.b16 %v2634
    %v2834 = vunpack.c.l.b16 %v2635
    %v2835 = vunpack.c.l.b16 %v2636
    %v2836 = vunpack.c.l.b16 %v2637
    %v2837 = vunpack.c.l.b16 %v2638
    %v2838 = vunpack.c.l.b16 %v2639
    %v2839 = vunpack.c.l.b16 %v2640
    %v2840 = vunpack.c.l.b16 %v2641
    %v2841 = vunpack.c.l.b16 %v2642
    %v2842 = vunpack.c.l.b16 %v2643
    %v2843 = vunpack.c.l.b16 %v2644
    %v2844 = vunpack.c.l.b16 %v2645
    %v2845 = vunpack.c.l.b16 %v2646
    %v2846 = vunpack.c.l.b16 %v2647
    %v2847 = vunpack.c.l.b16 %v2648
    %v2848 = vunpack.c.l.b16 %v2649
    %v2849 = vunpack.c.l.b16 %v2650
    %v2850 = vunpack.c.l.b16 %v2651
    %v2851 = vunpack.c.l.b16 %v2652
    %v2852 = vunpack.c.l.b16 %v2653
    %v2853 = vunpack.c.l.b16 %v2654
    %v2854 = vunpack.c.l.b16 %v2655
    %v2855 = vunpack.c.l.b16 %v2656
    %v2856 = vunpack.c.l.b16 %v2657
    %v2857 = vunpack.c.l.b16 %v2658
    %v2858 = vunpack.c.l.b16 %v2659
    %v2859 = vunpack.c.l.b16 %v2660
    %v2860 = vunpack.c.l.b16 %v2661
    %v2861 = vunpack.c.l.b16 %v2662
    %v2862 = vunpack.c.l.b16 %v2663
    %v2863 = vunpack.c.l.b16 %v2664
    %v2864 = vunpack.c.l.b16 %v2665
    %v2865 = vunpack.c.l.b16 %v2666
    %v2866 = vunpack.c.l.b16 %v2667
    %v2867 = vunpack.c.l.b16 %v2668
    %v2868 = vunpack.c.l.b16 %v2669
    %v2869 = vunpack.c.l.b16 %v2670
    %v2870 = vunpack.c.l.b16 %v2671
    %v2871 = vunpack.c.l.b16 %v2672
    %v2872 = vunpack.c.l.b16 %v2673
    %v2873 = vunpack.c.l.b16 %v2674
    %v2874 = vunpack.c.l.b16 %v2675
    %v2875 = vunpack.c.l.b16 %v2676
    %v2876 = vunpack.c.l.b16 %v2677
    %v2877 = vunpack.c.l.b16 %v2678
    %v2878 = vunpack.c.l.b16 %v2679
    %v2879 = vunpack.c.l.b16 %v2680
    %v2880 = vunpack.c.l.b16 %v2681
    %v2881 = vunpack.c.l.b16 %v2682
    %v2882 = vunpack.c.l.b16 %v2683
    %v2883 = vunpack.c.l.b16 %v2684
    %v2884 = vunpack.c.l.b16 %v2685
    %v2885 = vunpack.c.l.b16 %v2686
    %v2886 = vunpack.c.l.b16 %v2687
    %v2887 = vunpack.c.l.b16 %v2688
    %v2888 = vunpack.c.l.b16 %v2689
    %v2889 = vunpack.c.l.b16 %v2690
    %v2890 = vunpack.c.l.b16 %v2691
    %v2891 = vunpack.c.l.b16 %v2692
    %v2892 = vunpack.c.l.b16 %v2693
    %v2893 = vunpack.c.l.b16 %v2694
    %v2894 = vunpack.c.l.b16 %v2695
    %v2895 = vunpack.c.l.b16 %v2696
    %v2896 = vunpack.c.l.b16 %v2697
    %v2897 = vpack.c.b16 %v2802, %v2801
    %v2898 = vpack.c.b16 %v2804, %v2803
    %v2899 = vpack.c.b16 %v2806, %v2805
    %v2900 = vpack.c.b16 %v2808, %v2807
    %v2901 = vpack.c.b16 %v2810, %v2809
    %v2902 = vpack.c.b16 %v2812, %v2811
    %v2903 = vpack.c.b16 %v2814, %v2813
    %v2904 = vpack.c.b16 %v2816, %v2815
    %v2905 = vpack.c.b16 %v2818, %v2817
    %v2906 = vpack.c.b16 %v2820, %v2819
    %v2907 = vpack.c.b16 %v2822, %v2821
    %v2908 = vpack.c.b16 %v2824, %v2823
    %v2909 = vpack.c.b16 %v2826, %v2825
    %v2910 = vpack.c.b16 %v2828, %v2827
    %v2911 = vpack.c.b16 %v2830, %v2829
    %v2912 = vpack.c.b16 %v2832, %v2831
    %v2913 = vpack.c.b16 %v2834, %v2833
    %v2914 = vpack.c.b16 %v2836, %v2835
    %v2915 = vpack.c.b16 %v2838, %v2837
    %v2916 = vpack.c.b16 %v2840, %v2839
    %v2917 = vpack.c.b16 %v2842, %v2841
    %v2918 = vpack.c.b16 %v2844, %v2843
    %v2919 = vpack.c.b16 %v2846, %v2845
    %v2920 = vpack.c.b16 %v2848, %v2847
    %v2921 = vpack.c.b16 %v2850, %v2849
    %v2922 = vpack.c.b16 %v2852, %v2851
    %v2923 = vpack.c.b16 %v2854, %v2853
    %v2924 = vpack.c.b16 %v2856, %v2855
    %v2925 = vpack.c.b16 %v2858, %v2857
    %v2926 = vpack.c.b16 %v2860, %v2859
    %v2927 = vpack.c.b16 %v2862, %v2861
    %v2928 = vpack.c.b16 %v2864, %v2863
    %v2929 = vpack.c.b16 %v2866, %v2865
    %v2930 = vpack.c.b16 %v2868, %v2867
    %v2931 = vpack.c.b16 %v2870, %v2869
    %v2932 = vpack.c.b16 %v2872, %v2871
    %v2933 = vpack.c.b16 %v2874, %v2873
    %v2934 = vpack.c.b16 %v2876, %v2875
    %v2935 = vpack.c.b16 %v2878, %v2877
    %v2936 = vpack.c.b16 %v2880, %v2879
    %v2937 = vpack.c.b16 %v2882, %v2881
    %v2938 = vpack.c.b16 %v2884, %v2883
    %v2939 = vpack.c.b16 %v2886, %v2885
    %v2940 = vpack.c.b16 %v2888, %v2887
    %v2941 = vpack.c.b16 %v2890, %v2889
    %v2942 = vpack.c.b16 %v2892, %v2891
    %v2943 = vpack.c.b16 %v2894, %v2893
    %v2944 = vpack.c.b16 %v2896, %v2895
    %2993 = vmatprep.subr.bf16.mxu0 0
    %2994 = vmatpush1.bf16.msra.mxu0 %v2904
    %2995 = vmatprep.subr.bf16.mxu0 0
    %2996 = vmatpush1.bf16.msra.mxu0 %v2903
    %2997 = vmatprep.subr.bf16.mxu0 0
    %2998 = vmatpush1.bf16.msra.mxu0 %v2902
    %2999 = vmatprep.subr.bf16.mxu0 0
    %3000 = vmatpush1.bf16.msra.mxu0 %v2901
    %3001 = vmatprep.subr.bf16.mxu0 0
    %3002 = vmatpush1.bf16.msra.mxu0 %v2900
    %3003 = vmatprep.subr.bf16.mxu0 0
    %3004 = vmatpush1.bf16.msra.mxu0 %v2899
    %3005 = vmatprep.subr.bf16.mxu0 0
    %3006 = vmatpush1.bf16.msra.mxu0 %v2898
    %3007 = vmatprep.subr.bf16.mxu0 0
    %3008 = vmatpush1.bf16.msra.mxu0 %v2897
    %3009 = vmatprep.subr.bf16.mxu0 0
    %3010 = vmatpush2.bf16.msra.mxu0 %v2912
    %3011 = vmatprep.subr.bf16.mxu0 0
    %3012 = vmatpush2.bf16.msra.mxu0 %v2911
    %3013 = vmatprep.subr.bf16.mxu0 0
    %3014 = vmatpush2.bf16.msra.mxu0 %v2910
    %3015 = vmatprep.subr.bf16.mxu0 0
    %3016 = vmatpush2.bf16.msra.mxu0 %v2909
    %3017 = vmatprep.subr.bf16.mxu0 0
    %3018 = vmatpush2.bf16.msra.mxu0 %v2908
    %3019 = vmatprep.subr.bf16.mxu0 0
    %3020 = vmatpush2.bf16.msra.mxu0 %v2907
    %3021 = vmatprep.subr.bf16.mxu0 0
    %3022 = vmatpush2.bf16.msra.mxu0 %v2906
    %3023 = vmatprep.subr.bf16.mxu0 0
    %3024 = vmatpush2.bf16.msra.mxu0 %v2905
    %3025 = vmatprep.mubr.bf16.mxu0 %v2597
    %3026 = vmatmul.mubr.bf16.gmra.mxu0 %v2596
    %v3027 = vpop.f32.mrf.mxu0
    %v3028 = vadd.f32 %v2703, %v3027
    %v3029 = vpop.f32.mrf.mxu0
    %v3030 = vpop.f32.mrf.mxu0
    %v3031 = vpop.f32.mrf.mxu0
    %3032 = vdwg.mxu0
    %3033 = vmatprep.subr.bf16.mxu0 0
    %3034 = vmatpush1.bf16.msra.mxu0 %v2920
    %3035 = vmatprep.subr.bf16.mxu0 0
    %3036 = vmatpush1.bf16.msra.mxu0 %v2919
    %3037 = vmatprep.subr.bf16.mxu0 0
    %3038 = vmatpush1.bf16.msra.mxu0 %v2918
    %3039 = vmatprep.subr.bf16.mxu0 0
    %3040 = vmatpush1.bf16.msra.mxu0 %v2917
    %3041 = vmatprep.subr.bf16.mxu0 0
    %3042 = vmatpush1.bf16.msra.mxu0 %v2916
    %3043 = vmatprep.subr.bf16.mxu0 0
    %3044 = vmatpush1.bf16.msra.mxu0 %v2915
    %3045 = vmatprep.subr.bf16.mxu0 0
    %3046 = vmatpush1.bf16.msra.mxu0 %v2914
    %3047 = vmatprep.subr.bf16.mxu0 0
    %3048 = vmatpush1.bf16.msra.mxu0 %v2913
    %3049 = vmatprep.subr.bf16.mxu0 0
    %3050 = vmatpush2.bf16.msra.mxu0 %v2928
    %3051 = vmatprep.subr.bf16.mxu0 0
    %3052 = vmatpush2.bf16.msra.mxu0 %v2927
    %3053 = vmatprep.subr.bf16.mxu0 0
    %3054 = vmatpush2.bf16.msra.mxu0 %v2926
    %3055 = vmatprep.subr.bf16.mxu0 0
    %3056 = vmatpush2.bf16.msra.mxu0 %v2925
    %3057 = vmatprep.subr.bf16.mxu0 0
    %3058 = vmatpush2.bf16.msra.mxu0 %v2924
    %3059 = vmatprep.subr.bf16.mxu0 0
    %3060 = vmatpush2.bf16.msra.mxu0 %v2923
    %3061 = vmatprep.subr.bf16.mxu0 0
    %3062 = vmatpush2.bf16.msra.mxu0 %v2922
    %3063 = vmatprep.subr.bf16.mxu0 0
    %3064 = vmatpush2.bf16.msra.mxu0 %v2921
    %3065 = vmatprep.mubr.bf16.mxu0 %v2599
    %3066 = vmatmul.mubr.bf16.gmra.mxu0 %v2598
    %v3067 = vpop.f32.mrf.mxu0
    %v3068 = vadd.f32 %v3028, %v3067
    %v3069 = vpop.f32.mrf.mxu0
    %v3070 = vpop.f32.mrf.mxu0
    %v3071 = vpop.f32.mrf.mxu0
    %3072 = vdwg.mxu0
    %3073 = vmatprep.subr.bf16.mxu0 0
    %3074 = vmatpush1.bf16.msra.mxu0 %v2936
    %3075 = vmatprep.subr.bf16.mxu0 0
    %3076 = vmatpush1.bf16.msra.mxu0 %v2935
    %3077 = vmatprep.subr.bf16.mxu0 0
    %3078 = vmatpush1.bf16.msra.mxu0 %v2934
    %3079 = vmatprep.subr.bf16.mxu0 0
    %3080 = vmatpush1.bf16.msra.mxu0 %v2933
    %3081 = vmatprep.subr.bf16.mxu0 0
    %3082 = vmatpush1.bf16.msra.mxu0 %v2932
    %3083 = vmatprep.subr.bf16.mxu0 0
    %3084 = vmatpush1.bf16.msra.mxu0 %v2931
    %3085 = vmatprep.subr.bf16.mxu0 0
    %3086 = vmatpush1.bf16.msra.mxu0 %v2930
    %3087 = vmatprep.subr.bf16.mxu0 0
    %3088 = vmatpush1.bf16.msra.mxu0 %v2929
    %3089 = vmatprep.subr.bf16.mxu0 0
    %3090 = vmatpush2.bf16.msra.mxu0 %v2944
    %3091 = vmatprep.subr.bf16.mxu0 0
    %3092 = vmatpush2.bf16.msra.mxu0 %v2943
    %3093 = vmatprep.subr.bf16.mxu0 0
    %3094 = vmatpush2.bf16.msra.mxu0 %v2942
    %3095 = vmatprep.subr.bf16.mxu0 0
    %3096 = vmatpush2.bf16.msra.mxu0 %v2941
    %3097 = vmatprep.subr.bf16.mxu0 0
    %3098 = vmatpush2.bf16.msra.mxu0 %v2940
    %3099 = vmatprep.subr.bf16.mxu0 0
    %3100 = vmatpush2.bf16.msra.mxu0 %v2939
    %3101 = vmatprep.subr.bf16.mxu0 0
    %3102 = vmatpush2.bf16.msra.mxu0 %v2938
    %3103 = vmatprep.subr.bf16.mxu0 0
    %3104 = vmatpush2.bf16.msra.mxu0 %v2937
    %3105 = vmatprep.mubr.bf16.mxu0 %v2601
    %3106 = vmatmul.mubr.bf16.gmra.mxu0 %v2600
    %v3107 = vpop.f32.mrf.mxu0
    %v3108 = vadd.f32 %v3068, %v3107
    %v3109 = vpop.f32.mrf.mxu0
    %v3110 = vpop.f32.mrf.mxu0
    %v3111 = vpop.f32.mrf.mxu0
    %3112 = vdwg.mxu0
    %v3113 = vmax.f32 %v3108, -4.0
    %v3114 = vmin.f32 %v3113, 15.0
    %v3115 = vmul.f32 %v3114, 1.442695
    %v3116 = vpow.pop %v3115
    %v3117 = vld [vmem:[#allocation5] sm:$0xff]
    %3119 = vrot.lane.b32.xlu0 %v3117, 29
    %v3120 = vpop.permute.xlu0 %3119
    %v3122 = vmul.f32 %v3116, %v3120
    %3124 = vrot.lane.b32.xlu0 %v3122, 99
    %v3125 = vpop.permute.xlu0 %3124
    %v3127 = vadd.f32 %v3108, %v3125
    %3129 = vrot.lane.b32.xlu0 %v3127, 29
    %v3130 = vpop.permute.xlu0 %3129
    %v3132 = vsel %vm300, %v200, %v3130
    %v3133 = vpack.c.bf16 %v3132, %v3132
    %v3134 = vld [vmem:[#allocation14] sm:$0xff]
    %v3135 = vld [vmem:[#allocation14 + $0x8] sm:$0xff]
    %v3136 = vld [vmem:[#allocation14 + $0x10] sm:$0xff]
    %v3137 = vld [vmem:[#allocation14 + $0x18] sm:$0xff]
    %v3138 = vld [vmem:[#allocation14 + $0x20] sm:$0xff]
    %v3139 = vld [vmem:[#allocation14 + $0x28] sm:$0xff]
    %v3140 = vld [vmem:[#allocation14 + $0x30] sm:$0xff]
    %v3141 = vld [vmem:[#allocation14 + $0x38] sm:$0xff]
    %v3142 = vld [vmem:[#allocation14 + $0x40] sm:$0xff]
    %v3143 = vld [vmem:[#allocation14 + $0x48] sm:$0xff]
    %v3144 = vld [vmem:[#allocation14 + $0x50] sm:$0xff]
    %v3145 = vld [vmem:[#allocation14 + $0x58] sm:$0xff]
    %v3146 = vld [vmem:[#allocation14 + $0x60] sm:$0xff]
    %v3147 = vld [vmem:[#allocation14 + $0x68] sm:$0xff]
    %v3148 = vld [vmem:[#allocation14 + $0x70] sm:$0xff]
    %v3149 = vld [vmem:[#allocation14 + $0x78] sm:$0xff]
    %v3150 = vld [vmem:[#allocation14 + $0x80] sm:$0xff]
    %v3151 = vld [vmem:[#allocation14 + $0x88] sm:$0xff]
    %v3152 = vld [vmem:[#allocation14 + $0x90] sm:$0xff]
    %v3153 = vld [vmem:[#allocation14 + $0x98] sm:$0xff]
    %v3154 = vld [vmem:[#allocation14 + $0xa0] sm:$0xff]
    %v3155 = vld [vmem:[#allocation14 + $0xa8] sm:$0x11]
    %v3156 = vld [vmem:[#allocation14 + $0xb0] sm:$0x11]
    %v3157 = vld [vmem:[#allocation14 + $0xb8] sm:$0x11]
    %v3158 = vld [vmem:[#allocation16] sm:$0x3f]
    %v3160 = vlaneseq
    %v3161 = vshrl.u32 %v3160, 7
    %v3162 = vsub.s32 0, %v3161
    %v3163 = vrot.slane %v3158, %v3162
    %v3164 = vlaneseq
    %v3165 = vshrl.u32 %v3164, 7
    %v3166 = vsub.s32 1, %v3165
    %v3167 = vrot.slane %v3158, %v3166
    %v3168 = vlaneseq
    %v3169 = vshrl.u32 %v3168, 7
    %v3170 = vsub.s32 2, %v3169
    %v3171 = vrot.slane %v3158, %v3170
    %v3172 = vlaneseq
    %v3173 = vshrl.u32 %v3172, 7
    %v3174 = vsub.s32 3, %v3173
    %v3175 = vrot.slane %v3158, %v3174
    %v3176 = vlaneseq
    %v3177 = vshrl.u32 %v3176, 7
    %v3178 = vsub.s32 4, %v3177
    %v3179 = vrot.slane %v3158, %v3178
    %v3180 = vlaneseq
    %v3181 = vshrl.u32 %v3180, 7
    %v3182 = vsub.s32 5, %v3181
    %v3183 = vrot.slane %v3158, %v3182
    %v3214 = vunpack.c.l.b16 %v3134
    %v3215 = vunpack.c.h.b16 %v3134
    %v3216 = vunpack.c.l.b16 %v3135
    %v3217 = vunpack.c.h.b16 %v3135
    %v3218 = vunpack.c.l.b16 %v3136
    %v3219 = vunpack.c.h.b16 %v3136
    %v3220 = vunpack.c.l.b16 %v3137
    %v3221 = vunpack.c.h.b16 %v3137
    %v3222 = vunpack.c.l.b16 %v3138
    %v3223 = vunpack.c.h.b16 %v3138
    %v3224 = vunpack.c.l.b16 %v3139
    %v3225 = vunpack.c.h.b16 %v3139
    %v3226 = vunpack.c.l.b16 %v3140
    %v3227 = vunpack.c.h.b16 %v3140
    %v3228 = vunpack.c.l.b16 %v3141
    %v3229 = vunpack.c.h.b16 %v3141
    %v3230 = vunpack.c.l.b16 %v3142
    %v3231 = vunpack.c.h.b16 %v3142
    %v3232 = vunpack.c.l.b16 %v3143
    %v3233 = vunpack.c.h.b16 %v3143
    %v3234 = vunpack.c.l.b16 %v3144
    %v3235 = vunpack.c.h.b16 %v3144
    %v3236 = vunpack.c.l.b16 %v3145
    %v3237 = vunpack.c.h.b16 %v3145
    %v3238 = vunpack.c.l.b16 %v3146
    %v3239 = vunpack.c.h.b16 %v3146
    %v3240 = vunpack.c.l.b16 %v3147
    %v3241 = vunpack.c.h.b16 %v3147
    %v3242 = vunpack.c.l.b16 %v3148
    %v3243 = vunpack.c.h.b16 %v3148
    %v3244 = vunpack.c.l.b16 %v3149
    %v3245 = vunpack.c.h.b16 %v3149
    %v3246 = vunpack.c.l.b16 %v3150
    %v3247 = vunpack.c.h.b16 %v3150
    %v3248 = vunpack.c.l.b16 %v3151
    %v3249 = vunpack.c.h.b16 %v3151
    %v3250 = vunpack.c.l.b16 %v3152
    %v3251 = vunpack.c.h.b16 %v3152
    %v3252 = vunpack.c.l.b16 %v3153
    %v3253 = vunpack.c.h.b16 %v3153
    %v3254 = vunpack.c.l.b16 %v3154
    %v3255 = vunpack.c.h.b16 %v3154
    %v3256 = vunpack.c.l.b16 %v3155
    %v3257 = vunpack.c.h.b16 %v3155
    %v3258 = vunpack.c.l.b16 %v3156
    %v3259 = vunpack.c.h.b16 %v3156
    %v3260 = vunpack.c.l.b16 %v3157
    %v3261 = vunpack.c.h.b16 %v3157
    %v3262 = vpack.c.b16 %v3220, %v3214
    %v3263 = vpack.c.b16 %v3221, %v3215
    %v3264 = vpack.c.b16 %v3222, %v3216
    %v3265 = vpack.c.b16 %v3223, %v3217
    %v3266 = vpack.c.b16 %v3224, %v3218
    %v3267 = vpack.c.b16 %v3225, %v3219
    %v3268 = vpack.c.b16 %v3232, %v3226
    %v3269 = vpack.c.b16 %v3233, %v3227
    %v3270 = vpack.c.b16 %v3234, %v3228
    %v3271 = vpack.c.b16 %v3235, %v3229
    %v3272 = vpack.c.b16 %v3236, %v3230
    %v3273 = vpack.c.b16 %v3237, %v3231
    %v3274 = vpack.c.b16 %v3244, %v3238
    %v3275 = vpack.c.b16 %v3245, %v3239
    %v3276 = vpack.c.b16 %v3246, %v3240
    %v3277 = vpack.c.b16 %v3247, %v3241
    %v3278 = vpack.c.b16 %v3248, %v3242
    %v3279 = vpack.c.b16 %v3249, %v3243
    %v3280 = vpack.c.b16 %v3256, %v3250
    %v3281 = vpack.c.b16 %v3257, %v3251
    %v3282 = vpack.c.b16 %v3258, %v3252
    %v3283 = vpack.c.b16 %v3259, %v3253
    %v3284 = vpack.c.b16 %v3260, %v3254
    %v3285 = vpack.c.b16 %v3261, %v3255
    %vm3304 = vcmask 474112
    %v3306 = vsel %vm3304, %v3133, 0
    %vm3308 = vcmask 1044480
    %v3310 = vsel %vm3308, %v3280, 0
    %v3313 = vsel %vm3308, %v3281, 0
    %v3316 = vsel %vm3308, %v3282, 0
    %v3319 = vsel %vm3308, %v3283, 0
    %v3322 = vsel %vm3308, %v3284, 0
    %v3325 = vsel %vm3308, %v3285, 0
    %3327 = vmatprep.subr.bf16.mxu0 0
    %3328 = vmatpush1.bf16.msra.mxu0 0
    %3329 = vmatprep.subr.bf16.mxu0 0
    %3330 = vmatpush1.bf16.msra.mxu0 0
    %3331 = vmatprep.subr.bf16.mxu0 0
    %3332 = vmatpush1.bf16.msra.mxu0 0
    %3333 = vmatprep.subr.bf16.mxu0 0
    %3334 = vmatpush1.bf16.msra.mxu0 0
    %3335 = vmatprep.subr.bf16.mxu0 %v3313
    %3336 = vmatpush1.bf16.msra.mxu0 %v3310
    %3337 = vmatprep.subr.bf16.mxu0 %v3275
    %3338 = vmatpush1.bf16.msra.mxu0 %v3274
    %3339 = vmatprep.subr.bf16.mxu0 %v3269
    %3340 = vmatpush1.bf16.msra.mxu0 %v3268
    %3341 = vmatprep.subr.bf16.mxu0 %v3263
    %3342 = vmatpush1.bf16.msra.mxu0 %v3262
    %3343 = vmatprep.subr.bf16.mxu0 0
    %3344 = vmatpush2.bf16.msra.mxu0 0
    %3345 = vmatprep.subr.bf16.mxu0 0
    %3346 = vmatpush2.bf16.msra.mxu0 0
    %3347 = vmatprep.subr.bf16.mxu0 0
    %3348 = vmatpush2.bf16.msra.mxu0 0
    %3349 = vmatprep.subr.bf16.mxu0 0
    %3350 = vmatpush2.bf16.msra.mxu0 0
    %3351 = vmatprep.subr.bf16.mxu0 0
    %3352 = vmatpush2.bf16.msra.mxu0 0
    %3353 = vmatprep.subr.bf16.mxu0 0
    %3354 = vmatpush2.bf16.msra.mxu0 0
    %3355 = vmatprep.subr.bf16.mxu0 0
    %3356 = vmatpush2.bf16.msra.mxu0 0
    %3357 = vmatprep.subr.bf16.mxu0 0
    %3358 = vmatpush2.bf16.msra.mxu0 0
    %3359 = vmatprep.mubr.bf16.mxu0 0
    %3360 = vmatmul.mubr.bf16.gmra.mxu0 %v3306
    %v3361 = vpop.f32.mrf.mxu0
    %v3362 = vadd.f32 %v3163, %v3361
    %v3363 = vpop.f32.mrf.mxu0
    %v3364 = vadd.f32 %v3167, %v3363
    %v3365 = vpop.f32.mrf.mxu0
    %v3366 = vpop.f32.mrf.mxu0
    %3367 = vdwg.mxu0
    %3368 = vmatprep.subr.bf16.mxu0 0
    %3369 = vmatpush1.bf16.msra.mxu0 0
    %3370 = vmatprep.subr.bf16.mxu0 0
    %3371 = vmatpush1.bf16.msra.mxu0 0
    %3372 = vmatprep.subr.bf16.mxu0 0
    %3373 = vmatpush1.bf16.msra.mxu0 0
    %3374 = vmatprep.subr.bf16.mxu0 0
    %3375 = vmatpush1.bf16.msra.mxu0 0
    %3376 = vmatprep.subr.bf16.mxu0 %v3319
    %3377 = vmatpush1.bf16.msra.mxu0 %v3316
    %3378 = vmatprep.subr.bf16.mxu0 %v3277
    %3379 = vmatpush1.bf16.msra.mxu0 %v3276
    %3380 = vmatprep.subr.bf16.mxu0 %v3271
    %3381 = vmatpush1.bf16.msra.mxu0 %v3270
    %3382 = vmatprep.subr.bf16.mxu0 %v3265
    %3383 = vmatpush1.bf16.msra.mxu0 %v3264
    %3384 = vmatprep.subr.bf16.mxu0 0
    %3385 = vmatpush2.bf16.msra.mxu0 0
    %3386 = vmatprep.subr.bf16.mxu0 0
    %3387 = vmatpush2.bf16.msra.mxu0 0
    %3388 = vmatprep.subr.bf16.mxu0 0
    %3389 = vmatpush2.bf16.msra.mxu0 0
    %3390 = vmatprep.subr.bf16.mxu0 0
    %3391 = vmatpush2.bf16.msra.mxu0 0
    %3392 = vmatprep.subr.bf16.mxu0 0
    %3393 = vmatpush2.bf16.msra.mxu0 0
    %3394 = vmatprep.subr.bf16.mxu0 0
    %3395 = vmatpush2.bf16.msra.mxu0 0
    %3396 = vmatprep.subr.bf16.mxu0 0
    %3397 = vmatpush2.bf16.msra.mxu0 0
    %3398 = vmatprep.subr.bf16.mxu0 0
    %3399 = vmatpush2.bf16.msra.mxu0 0
    %3400 = vmatprep.mubr.bf16.mxu0 0
    %3401 = vmatmul.mubr.bf16.gmra.mxu0 %v3306
    %v3402 = vpop.f32.mrf.mxu0
    %v3403 = vadd.f32 %v3171, %v3402
    %v3404 = vpop.f32.mrf.mxu0
    %v3405 = vadd.f32 %v3175, %v3404
    %v3406 = vpop.f32.mrf.mxu0
    %v3407 = vpop.f32.mrf.mxu0
    %3408 = vdwg.mxu0
    %3409 = vmatprep.subr.bf16.mxu0 0
    %3410 = vmatpush1.bf16.msra.mxu0 0
    %3411 = vmatprep.subr.bf16.mxu0 0
    %3412 = vmatpush1.bf16.msra.mxu0 0
    %3413 = vmatprep.subr.bf16.mxu0 0
    %3414 = vmatpush1.bf16.msra.mxu0 0
    %3415 = vmatprep.subr.bf16.mxu0 0
    %3416 = vmatpush1.bf16.msra.mxu0 0
    %3417 = vmatprep.subr.bf16.mxu0 %v3325
    %3418 = vmatpush1.bf16.msra.mxu0 %v3322
    %3419 = vmatprep.subr.bf16.mxu0 %v3279
    %3420 = vmatpush1.bf16.msra.mxu0 %v3278
    %3421 = vmatprep.subr.bf16.mxu0 %v3273
    %3422 = vmatpush1.bf16.msra.mxu0 %v3272
    %3423 = vmatprep.subr.bf16.mxu0 %v3267
    %3424 = vmatpush1.bf16.msra.mxu0 %v3266
    %3425 = vmatprep.subr.bf16.mxu0 0
    %3426 = vmatpush2.bf16.msra.mxu0 0
    %3427 = vmatprep.subr.bf16.mxu0 0
    %3428 = vmatpush2.bf16.msra.mxu0 0
    %3429 = vmatprep.subr.bf16.mxu0 0
    %3430 = vmatpush2.bf16.msra.mxu0 0
    %3431 = vmatprep.subr.bf16.mxu0 0
    %3432 = vmatpush2.bf16.msra.mxu0 0
    %3433 = vmatprep.subr.bf16.mxu0 0
    %3434 = vmatpush2.bf16.msra.mxu0 0
    %3435 = vmatprep.subr.bf16.mxu0 0
    %3436 = vmatpush2.bf16.msra.mxu0 0
    %3437 = vmatprep.subr.bf16.mxu0 0
    %3438 = vmatpush2.bf16.msra.mxu0 0
    %3439 = vmatprep.subr.bf16.mxu0 0
    %3440 = vmatpush2.bf16.msra.mxu0 0
    %3441 = vmatprep.mubr.bf16.mxu0 0
    %3442 = vmatmul.mubr.bf16.gmra.mxu0 %v3306
    %v3443 = vpop.f32.mrf.mxu0
    %v3444 = vadd.f32 %v3179, %v3443
    %v3445 = vpop.f32.mrf.mxu0
    %v3446 = vadd.f32 %v3183, %v3445
    %v3447 = vpop.f32.mrf.mxu0
    %v3448 = vpop.f32.mrf.mxu0
    %3449 = vdwg.mxu0
    %v3450 = vmax.f32 %v3362, 0.0
    %v3451 = vmax.f32 %v3364, 0.0
    %v3452 = vmax.f32 %v3403, 0.0
    %v3453 = vmax.f32 %v3405, 0.0
    %v3454 = vmax.f32 %v3444, 0.0
    %v3455 = vmax.f32 %v3446, 0.0
    %v3456 = vpack.c.bf16 %v3450, %v3450
    %v3457 = vpack.c.bf16 %v3451, %v3451
    %v3458 = vpack.c.bf16 %v3452, %v3452
    %v3459 = vpack.c.bf16 %v3453, %v3453
    %v3460 = vpack.c.bf16 %v3454, %v3454
    %v3461 = vpack.c.bf16 %v3455, %v3455
    %v3462 = vld [vmem:[#allocation17] sm:$0xff]
    %v3463 = vld [vmem:[#allocation17 + $0x8] sm:$0xff]
    %v3464 = vld [vmem:[#allocation17 + $0x10] sm:$0xff]
    %v3465 = vld [vmem:[#allocation17 + $0x18] sm:$0xff]
    %v3466 = vld [vmem:[#allocation17 + $0x20] sm:$0xff]
    %v3467 = vld [vmem:[#allocation17 + $0x28] sm:$0xff]
    %v3468 = vld [vmem:[#allocation17 + $0x30] sm:$0xff]
    %v3469 = vld [vmem:[#allocation17 + $0x38] sm:$0xff]
    %v3470 = vld [vmem:[#allocation17 + $0x40] sm:$0xff]
    %v3471 = vld [vmem:[#allocation17 + $0x48] sm:$0xff]
    %v3472 = vld [vmem:[#allocation17 + $0x50] sm:$0xff]
    %v3473 = vld [vmem:[#allocation17 + $0x58] sm:$0xff]
    %v3474 = vld [vmem:[#allocation17 + $0x60] sm:$0xff]
    %v3475 = vld [vmem:[#allocation17 + $0x68] sm:$0xff]
    %v3476 = vld [vmem:[#allocation17 + $0x70] sm:$0xff]
    %v3477 = vld [vmem:[#allocation17 + $0x78] sm:$0xff]
    %v3478 = vld [vmem:[#allocation17 + $0x80] sm:$0xff]
    %v3479 = vld [vmem:[#allocation17 + $0x88] sm:$0xff]
    %v3480 = vld [vmem:[#allocation17 + $0x90] sm:$0xff]
    %v3481 = vld [vmem:[#allocation17 + $0x98] sm:$0xff]
    %v3482 = vld [vmem:[#allocation17 + $0xa0] sm:$0xff]
    %v3483 = vld [vmem:[#allocation17 + $0xa8] sm:$0xff]
    %v3484 = vld [vmem:[#allocation17 + $0xb0] sm:$0xff]
    %v3485 = vld [vmem:[#allocation17 + $0xb8] sm:$0xff]
    %v3486 = vld [vmem:[#allocation17 + $0xc0] sm:$0xff]
    %v3487 = vld [vmem:[#allocation17 + $0xc8] sm:$0xff]
    %v3488 = vld [vmem:[#allocation17 + $0xd0] sm:$0xff]
    %v3489 = vld [vmem:[#allocation17 + $0xd8] sm:$0xff]
    %v3490 = vld [vmem:[#allocation17 + $0xe0] sm:$0xff]
    %v3491 = vld [vmem:[#allocation17 + $0xe8] sm:$0xff]
    %v3492 = vld [vmem:[#allocation17 + $0xf0] sm:$0xff]
    %v3493 = vld [vmem:[#allocation17 + $0xf8] sm:$0xff]
    %v3494 = vld [vmem:[#allocation17 + $0x100] sm:$0xff]
    %v3495 = vld [vmem:[#allocation17 + $0x108] sm:$0xff]
    %v3496 = vld [vmem:[#allocation17 + $0x110] sm:$0xff]
    %v3497 = vld [vmem:[#allocation17 + $0x118] sm:$0xff]
    %v3498 = vld [vmem:[#allocation17 + $0x120] sm:$0xff]
    %v3499 = vld [vmem:[#allocation17 + $0x128] sm:$0xff]
    %v3500 = vld [vmem:[#allocation17 + $0x130] sm:$0xff]
    %v3501 = vld [vmem:[#allocation17 + $0x138] sm:$0xff]
    %v3502 = vld [vmem:[#allocation17 + $0x140] sm:$0xff]
    %v3503 = vld [vmem:[#allocation17 + $0x148] sm:$0xff]
    %v3504 = vld [vmem:[#allocation17 + $0x150] sm:$0xff]
    %v3505 = vld [vmem:[#allocation17 + $0x158] sm:$0xff]
    %v3506 = vld [vmem:[#allocation17 + $0x160] sm:$0xff]
    %v3507 = vld [vmem:[#allocation17 + $0x168] sm:$0xff]
    %v3508 = vld [vmem:[#allocation17 + $0x170] sm:$0xff]
    %v3509 = vld [vmem:[#allocation17 + $0x178] sm:$0xff]
    %v3510 = vld [vmem:[#allocation17 + $0x180] sm:$0xff]
    %v3511 = vld [vmem:[#allocation17 + $0x188] sm:$0xff]
    %v3512 = vld [vmem:[#allocation17 + $0x190] sm:$0xff]
    %v3513 = vld [vmem:[#allocation17 + $0x198] sm:$0xff]
    %v3514 = vld [vmem:[#allocation17 + $0x1a0] sm:$0xff]
    %v3515 = vld [vmem:[#allocation17 + $0x1a8] sm:$0xff]
    %v3516 = vld [vmem:[#allocation17 + $0x1b0] sm:$0xff]
    %v3517 = vld [vmem:[#allocation17 + $0x1b8] sm:$0xff]
    %v3518 = vld [vmem:[#allocation17 + $0x1c0] sm:$0xff]
    %v3519 = vld [vmem:[#allocation17 + $0x1c8] sm:$0xff]
    %v3520 = vld [vmem:[#allocation17 + $0x1d0] sm:$0xff]
    %v3521 = vld [vmem:[#allocation17 + $0x1d8] sm:$0xff]
    %v3522 = vld [vmem:[#allocation17 + $0x1e0] sm:$0xff]
    %v3523 = vld [vmem:[#allocation17 + $0x1e8] sm:$0xff]
    %v3524 = vld [vmem:[#allocation17 + $0x1f0] sm:$0xff]
    %v3525 = vld [vmem:[#allocation17 + $0x1f8] sm:$0xff]
    %v3526 = vld [vmem:[#allocation17 + $0x200] sm:$0xff]
    %v3527 = vld [vmem:[#allocation17 + $0x208] sm:$0xff]
    %v3528 = vld [vmem:[#allocation17 + $0x210] sm:$0xff]
    %v3529 = vld [vmem:[#allocation17 + $0x218] sm:$0xff]
    %v3530 = vld [vmem:[#allocation17 + $0x220] sm:$0xff]
    %v3531 = vld [vmem:[#allocation17 + $0x228] sm:$0xff]
    %v3532 = vld [vmem:[#allocation17 + $0x230] sm:$0xff]
    %v3533 = vld [vmem:[#allocation17 + $0x238] sm:$0xff]
    %v3534 = vld [vmem:[#allocation17 + $0x240] sm:$0xff]
    %v3535 = vld [vmem:[#allocation17 + $0x248] sm:$0xff]
    %v3536 = vld [vmem:[#allocation17 + $0x250] sm:$0xff]
    %v3537 = vld [vmem:[#allocation17 + $0x258] sm:$0xff]
    %v3538 = vld [vmem:[#allocation17 + $0x260] sm:$0xff]
    %v3539 = vld [vmem:[#allocation17 + $0x268] sm:$0xff]
    %v3540 = vld [vmem:[#allocation17 + $0x270] sm:$0xff]
    %v3541 = vld [vmem:[#allocation17 + $0x278] sm:$0xff]
    %v3542 = vld [vmem:[#allocation17 + $0x280] sm:$0xff]
    %v3543 = vld [vmem:[#allocation17 + $0x288] sm:$0xff]
    %v3544 = vld [vmem:[#allocation17 + $0x290] sm:$0xff]
    %v3545 = vld [vmem:[#allocation17 + $0x298] sm:$0xff]
    %v3546 = vld [vmem:[#allocation17 + $0x2a0] sm:$0xff]
    %v3547 = vld [vmem:[#allocation17 + $0x2a8] sm:$0xff]
    %v3548 = vld [vmem:[#allocation17 + $0x2b0] sm:$0xff]
    %v3549 = vld [vmem:[#allocation17 + $0x2b8] sm:$0xff]
    %v3550 = vld [vmem:[#allocation17 + $0x2c0] sm:$0xff]
    %v3551 = vld [vmem:[#allocation17 + $0x2c8] sm:$0xff]
    %v3552 = vld [vmem:[#allocation17 + $0x2d0] sm:$0xff]
    %v3553 = vld [vmem:[#allocation17 + $0x2d8] sm:$0xff]
    %v3554 = vld [vmem:[#allocation17 + $0x2e0] sm:$0xff]
    %v3555 = vld [vmem:[#allocation17 + $0x2e8] sm:$0xff]
    %v3556 = vld [vmem:[#allocation17 + $0x2f0] sm:$0xff]
    %v3557 = vld [vmem:[#allocation17 + $0x2f8] sm:$0xff]
    %v3558 = vld [vmem:[#allocation17 + $0x300] sm:$0xff]
    %v3559 = vld [vmem:[#allocation17 + $0x308] sm:$0xff]
    %v3560 = vld [vmem:[#allocation17 + $0x310] sm:$0xff]
    %v3561 = vld [vmem:[#allocation17 + $0x318] sm:$0xff]
    %v3562 = vld [vmem:[#allocation17 + $0x320] sm:$0xff]
    %v3563 = vld [vmem:[#allocation17 + $0x328] sm:$0xff]
    %v3564 = vld [vmem:[#allocation17 + $0x330] sm:$0xff]
    %v3565 = vld [vmem:[#allocation17 + $0x338] sm:$0xff]
    %v3566 = vld [vmem:[#allocation17 + $0x340] sm:$0xff]
    %v3567 = vld [vmem:[#allocation17 + $0x348] sm:$0xff]
    %v3568 = vld [vmem:[#allocation17 + $0x350] sm:$0xff]
    %v3569 = vld [vmem:[#allocation17 + $0x358] sm:$0xff]
    %v3570 = vld [vmem:[#allocation17 + $0x360] sm:$0xff]
    %v3571 = vld [vmem:[#allocation17 + $0x368] sm:$0xff]
    %v3572 = vld [vmem:[#allocation17 + $0x370] sm:$0xff]
    %v3573 = vld [vmem:[#allocation17 + $0x378] sm:$0xff]
    %v3574 = vld [vmem:[#allocation17 + $0x380] sm:$0xff]
    %v3575 = vld [vmem:[#allocation17 + $0x388] sm:$0xff]
    %v3576 = vld [vmem:[#allocation17 + $0x390] sm:$0xff]
    %v3577 = vld [vmem:[#allocation17 + $0x398] sm:$0xff]
    %v3578 = vld [vmem:[#allocation17 + $0x3a0] sm:$0xff]
    %v3579 = vld [vmem:[#allocation17 + $0x3a8] sm:$0xff]
    %v3580 = vld [vmem:[#allocation17 + $0x3b0] sm:$0xff]
    %v3581 = vld [vmem:[#allocation17 + $0x3b8] sm:$0xff]
    %v3582 = vld [vmem:[#allocation17 + $0x3c0] sm:$0xff]
    %v3583 = vld [vmem:[#allocation17 + $0x3c8] sm:$0xff]
    %v3584 = vld [vmem:[#allocation17 + $0x3d0] sm:$0xff]
    %v3585 = vld [vmem:[#allocation17 + $0x3d8] sm:$0xff]
    %v3586 = vld [vmem:[#allocation17 + $0x3e0] sm:$0xff]
    %v3587 = vld [vmem:[#allocation17 + $0x3e8] sm:$0xff]
    %v3588 = vld [vmem:[#allocation17 + $0x3f0] sm:$0xff]
    %v3589 = vld [vmem:[#allocation17 + $0x3f8] sm:$0xff]
    %v3590 = vld [vmem:[#allocation17 + $0x400] sm:$0xff]
    %v3591 = vld [vmem:[#allocation17 + $0x408] sm:$0xff]
    %v3592 = vld [vmem:[#allocation17 + $0x410] sm:$0xff]
    %v3593 = vld [vmem:[#allocation17 + $0x418] sm:$0xff]
    %v3594 = vld [vmem:[#allocation17 + $0x420] sm:$0xff]
    %v3595 = vld [vmem:[#allocation17 + $0x428] sm:$0xff]
    %v3596 = vld [vmem:[#allocation17 + $0x430] sm:$0xff]
    %v3597 = vld [vmem:[#allocation17 + $0x438] sm:$0xff]
    %v3598 = vld [vmem:[#allocation17 + $0x440] sm:$0xff]
    %v3599 = vld [vmem:[#allocation17 + $0x448] sm:$0xff]
    %v3600 = vld [vmem:[#allocation17 + $0x450] sm:$0xff]
    %v3601 = vld [vmem:[#allocation17 + $0x458] sm:$0xff]
    %v3602 = vld [vmem:[#allocation17 + $0x460] sm:$0xff]
    %v3603 = vld [vmem:[#allocation17 + $0x468] sm:$0xff]
    %v3604 = vld [vmem:[#allocation17 + $0x470] sm:$0xff]
    %v3605 = vld [vmem:[#allocation17 + $0x478] sm:$0xff]
    %v3606 = vld [vmem:[#allocation17 + $0x480] sm:$0xff]
    %v3607 = vld [vmem:[#allocation17 + $0x488] sm:$0xff]
    %v3608 = vld [vmem:[#allocation17 + $0x490] sm:$0xff]
    %v3609 = vld [vmem:[#allocation17 + $0x498] sm:$0xff]
    %v3610 = vld [vmem:[#allocation17 + $0x4a0] sm:$0xff]
    %v3611 = vld [vmem:[#allocation17 + $0x4a8] sm:$0xff]
    %v3612 = vld [vmem:[#allocation17 + $0x4b0] sm:$0xff]
    %v3613 = vld [vmem:[#allocation17 + $0x4b8] sm:$0xff]
    %v3614 = vld [vmem:[#allocation17 + $0x4c0] sm:$0xff]
    %v3615 = vld [vmem:[#allocation17 + $0x4c8] sm:$0xff]
    %v3616 = vld [vmem:[#allocation17 + $0x4d0] sm:$0xff]
    %v3617 = vld [vmem:[#allocation17 + $0x4d8] sm:$0xff]
    %v3618 = vld [vmem:[#allocation17 + $0x4e0] sm:$0xff]
    %v3619 = vld [vmem:[#allocation17 + $0x4e8] sm:$0xff]
    %v3620 = vld [vmem:[#allocation17 + $0x4f0] sm:$0xff]
    %v3621 = vld [vmem:[#allocation17 + $0x4f8] sm:$0xff]
    %v3622 = vld [vmem:[#allocation17 + $0x500] sm:$0xff]
    %v3623 = vld [vmem:[#allocation17 + $0x508] sm:$0xff]
    %v3624 = vld [vmem:[#allocation17 + $0x510] sm:$0xff]
    %v3625 = vld [vmem:[#allocation17 + $0x518] sm:$0xff]
    %v3626 = vld [vmem:[#allocation17 + $0x520] sm:$0xff]
    %v3627 = vld [vmem:[#allocation17 + $0x528] sm:$0xff]
    %v3628 = vld [vmem:[#allocation17 + $0x530] sm:$0xff]
    %v3629 = vld [vmem:[#allocation17 + $0x538] sm:$0xff]
    %v3630 = vld [vmem:[#allocation17 + $0x540] sm:$0xff]
    %v3631 = vld [vmem:[#allocation17 + $0x548] sm:$0xff]
    %v3632 = vld [vmem:[#allocation17 + $0x550] sm:$0xff]
    %v3633 = vld [vmem:[#allocation17 + $0x558] sm:$0xff]
    %v3634 = vld [vmem:[#allocation17 + $0x560] sm:$0xff]
    %v3635 = vld [vmem:[#allocation17 + $0x568] sm:$0xff]
    %v3636 = vld [vmem:[#allocation17 + $0x570] sm:$0xff]
    %v3637 = vld [vmem:[#allocation17 + $0x578] sm:$0xff]
    %v3638 = vld [vmem:[#allocation17 + $0x580] sm:$0xff]
    %v3639 = vld [vmem:[#allocation17 + $0x588] sm:$0xff]
    %v3640 = vld [vmem:[#allocation17 + $0x590] sm:$0xff]
    %v3641 = vld [vmem:[#allocation17 + $0x598] sm:$0xff]
    %v3642 = vld [vmem:[#allocation17 + $0x5a0] sm:$0xff]
    %v3643 = vld [vmem:[#allocation17 + $0x5a8] sm:$0xff]
    %v3644 = vld [vmem:[#allocation17 + $0x5b0] sm:$0xff]
    %v3645 = vld [vmem:[#allocation17 + $0x5b8] sm:$0xff]
    %v3646 = vld [vmem:[#allocation17 + $0x5c0] sm:$0xff]
    %v3647 = vld [vmem:[#allocation17 + $0x5c8] sm:$0xff]
    %v3648 = vld [vmem:[#allocation17 + $0x5d0] sm:$0xff]
    %v3649 = vld [vmem:[#allocation17 + $0x5d8] sm:$0xff]
    %v3650 = vld [vmem:[#allocation17 + $0x5e0] sm:$0xff]
    %v3651 = vld [vmem:[#allocation17 + $0x5e8] sm:$0xff]
    %v3652 = vld [vmem:[#allocation17 + $0x5f0] sm:$0xff]
    %v3653 = vld [vmem:[#allocation17 + $0x5f8] sm:$0xff]
    %v3654 = vld [vmem:[#allocation17 + $0x600] sm:$0xff]
    %v3655 = vld [vmem:[#allocation17 + $0x608] sm:$0xff]
    %v3656 = vld [vmem:[#allocation17 + $0x610] sm:$0xff]
    %v3657 = vld [vmem:[#allocation17 + $0x618] sm:$0xff]
    %v3658 = vld [vmem:[#allocation17 + $0x620] sm:$0xff]
    %v3659 = vld [vmem:[#allocation17 + $0x628] sm:$0xff]
    %v3660 = vld [vmem:[#allocation17 + $0x630] sm:$0xff]
    %v3661 = vld [vmem:[#allocation17 + $0x638] sm:$0xff]
    %v3662 = vld [vmem:[#allocation17 + $0x640] sm:$0xff]
    %v3663 = vld [vmem:[#allocation17 + $0x648] sm:$0xff]
    %v3664 = vld [vmem:[#allocation17 + $0x650] sm:$0xff]
    %v3665 = vld [vmem:[#allocation17 + $0x658] sm:$0xff]
    %v3666 = vld [vmem:[#allocation17 + $0x660] sm:$0xff]
    %v3667 = vld [vmem:[#allocation17 + $0x668] sm:$0xff]
    %v3668 = vld [vmem:[#allocation17 + $0x670] sm:$0xff]
    %v3669 = vld [vmem:[#allocation17 + $0x678] sm:$0xff]
    %v3670 = vld [vmem:[#allocation17 + $0x680] sm:$0xff]
    %v3671 = vld [vmem:[#allocation17 + $0x688] sm:$0xff]
    %v3672 = vld [vmem:[#allocation17 + $0x690] sm:$0xff]
    %v3673 = vld [vmem:[#allocation17 + $0x698] sm:$0xff]
    %v3674 = vld [vmem:[#allocation17 + $0x6a0] sm:$0xff]
    %v3675 = vld [vmem:[#allocation17 + $0x6a8] sm:$0xff]
    %v3676 = vld [vmem:[#allocation17 + $0x6b0] sm:$0xff]
    %v3677 = vld [vmem:[#allocation17 + $0x6b8] sm:$0xff]
    %v3678 = vld [vmem:[#allocation17 + $0x6c0] sm:$0xff]
    %v3679 = vld [vmem:[#allocation17 + $0x6c8] sm:$0xff]
    %v3680 = vld [vmem:[#allocation17 + $0x6d0] sm:$0xff]
    %v3681 = vld [vmem:[#allocation17 + $0x6d8] sm:$0xff]
    %v3682 = vld [vmem:[#allocation17 + $0x6e0] sm:$0xff]
    %v3683 = vld [vmem:[#allocation17 + $0x6e8] sm:$0xff]
    %v3684 = vld [vmem:[#allocation17 + $0x6f0] sm:$0xff]
    %v3685 = vld [vmem:[#allocation17 + $0x6f8] sm:$0xff]
    %v3686 = vld [vmem:[#allocation17 + $0x700] sm:$0xff]
    %v3687 = vld [vmem:[#allocation17 + $0x708] sm:$0xff]
    %v3688 = vld [vmem:[#allocation17 + $0x710] sm:$0xff]
    %v3689 = vld [vmem:[#allocation17 + $0x718] sm:$0xff]
    %v3690 = vld [vmem:[#allocation17 + $0x720] sm:$0xff]
    %v3691 = vld [vmem:[#allocation17 + $0x728] sm:$0xff]
    %v3692 = vld [vmem:[#allocation17 + $0x730] sm:$0xff]
    %v3693 = vld [vmem:[#allocation17 + $0x738] sm:$0xff]
    %v3694 = vld [vmem:[#allocation17 + $0x740] sm:$0xff]
    %v3695 = vld [vmem:[#allocation17 + $0x748] sm:$0xff]
    %v3696 = vld [vmem:[#allocation17 + $0x750] sm:$0xff]
    %v3697 = vld [vmem:[#allocation17 + $0x758] sm:$0xff]
    %v3698 = vld [vmem:[#allocation17 + $0x760] sm:$0xff]
    %v3699 = vld [vmem:[#allocation17 + $0x768] sm:$0xff]
    %v3700 = vld [vmem:[#allocation17 + $0x770] sm:$0xff]
    %v3701 = vld [vmem:[#allocation17 + $0x778] sm:$0xff]
    %v3702 = vld [vmem:[#allocation17 + $0x780] sm:$0xff]
    %v3703 = vld [vmem:[#allocation17 + $0x788] sm:$0xff]
    %v3704 = vld [vmem:[#allocation17 + $0x790] sm:$0xff]
    %v3705 = vld [vmem:[#allocation17 + $0x798] sm:$0xff]
    %v3706 = vld [vmem:[#allocation17 + $0x7a0] sm:$0xff]
    %v3707 = vld [vmem:[#allocation17 + $0x7a8] sm:$0xff]
    %v3708 = vld [vmem:[#allocation17 + $0x7b0] sm:$0xff]
    %v3709 = vld [vmem:[#allocation17 + $0x7b8] sm:$0xff]
    %v3710 = vld [vmem:[#allocation17 + $0x7c0] sm:$0xff]
    %v3711 = vld [vmem:[#allocation17 + $0x7c8] sm:$0xff]
    %v3712 = vld [vmem:[#allocation17 + $0x7d0] sm:$0xff]
    %v3713 = vld [vmem:[#allocation17 + $0x7d8] sm:$0xff]
    %v3714 = vld [vmem:[#allocation17 + $0x7e0] sm:$0xff]
    %v3715 = vld [vmem:[#allocation17 + $0x7e8] sm:$0xff]
    %v3716 = vld [vmem:[#allocation17 + $0x7f0] sm:$0xff]
    %v3717 = vld [vmem:[#allocation17 + $0x7f8] sm:$0xff]
    %v3718 = vld [vmem:[#allocation17 + $0x800] sm:$0xff]
    %v3719 = vld [vmem:[#allocation17 + $0x808] sm:$0xff]
    %v3720 = vld [vmem:[#allocation17 + $0x810] sm:$0xff]
    %v3721 = vld [vmem:[#allocation17 + $0x818] sm:$0xff]
    %v3722 = vld [vmem:[#allocation17 + $0x820] sm:$0xff]
    %v3723 = vld [vmem:[#allocation17 + $0x828] sm:$0xff]
    %v3724 = vld [vmem:[#allocation17 + $0x830] sm:$0xff]
    %v3725 = vld [vmem:[#allocation17 + $0x838] sm:$0xff]
    %v3726 = vld [vmem:[#allocation17 + $0x840] sm:$0xff]
    %v3727 = vld [vmem:[#allocation17 + $0x848] sm:$0xff]
    %v3728 = vld [vmem:[#allocation17 + $0x850] sm:$0xff]
    %v3729 = vld [vmem:[#allocation17 + $0x858] sm:$0xff]
    %v3730 = vld [vmem:[#allocation17 + $0x860] sm:$0xff]
    %v3731 = vld [vmem:[#allocation17 + $0x868] sm:$0xff]
    %v3732 = vld [vmem:[#allocation17 + $0x870] sm:$0xff]
    %v3733 = vld [vmem:[#allocation17 + $0x878] sm:$0xff]
    %v3734 = vld [vmem:[#allocation17 + $0x880] sm:$0xff]
    %v3735 = vld [vmem:[#allocation17 + $0x888] sm:$0xff]
    %v3736 = vld [vmem:[#allocation17 + $0x890] sm:$0xff]
    %v3737 = vld [vmem:[#allocation17 + $0x898] sm:$0xff]
    %v3738 = vld [vmem:[#allocation17 + $0x8a0] sm:$0xff]
    %v3739 = vld [vmem:[#allocation17 + $0x8a8] sm:$0xff]
    %v3740 = vld [vmem:[#allocation17 + $0x8b0] sm:$0xff]
    %v3741 = vld [vmem:[#allocation17 + $0x8b8] sm:$0xff]
    %v3742 = vld [vmem:[#allocation17 + $0x8c0] sm:$0xff]
    %v3743 = vld [vmem:[#allocation17 + $0x8c8] sm:$0xff]
    %v3744 = vld [vmem:[#allocation17 + $0x8d0] sm:$0xff]
    %v3745 = vld [vmem:[#allocation17 + $0x8d8] sm:$0xff]
    %v3746 = vld [vmem:[#allocation17 + $0x8e0] sm:$0xff]
    %v3747 = vld [vmem:[#allocation17 + $0x8e8] sm:$0xff]
    %v3748 = vld [vmem:[#allocation17 + $0x8f0] sm:$0xff]
    %v3749 = vld [vmem:[#allocation17 + $0x8f8] sm:$0xff]
    %v3750 = vld [vmem:[#allocation19] sm:$0x3f]
    %v3752 = vlaneseq
    %v3753 = vshrl.u32 %v3752, 7
    %v3754 = vsub.s32 0, %v3753
    %v3755 = vrot.slane %v3750, %v3754
    %v3756 = vlaneseq
    %v3757 = vshrl.u32 %v3756, 7
    %v3758 = vsub.s32 1, %v3757
    %v3759 = vrot.slane %v3750, %v3758
    %v3760 = vlaneseq
    %v3761 = vshrl.u32 %v3760, 7
    %v3762 = vsub.s32 2, %v3761
    %v3763 = vrot.slane %v3750, %v3762
    %v3764 = vlaneseq
    %v3765 = vshrl.u32 %v3764, 7
    %v3766 = vsub.s32 3, %v3765
    %v3767 = vrot.slane %v3750, %v3766
    %v3768 = vlaneseq
    %v3769 = vshrl.u32 %v3768, 7
    %v3770 = vsub.s32 4, %v3769
    %v3771 = vrot.slane %v3750, %v3770
    %v3772 = vlaneseq
    %v3773 = vshrl.u32 %v3772, 7
    %v3774 = vsub.s32 5, %v3773
    %v3775 = vrot.slane %v3750, %v3774
    %v4070 = vunpack.c.l.b16 %v3462
    %v4071 = vunpack.c.h.b16 %v3462
    %v4072 = vunpack.c.l.b16 %v3463
    %v4073 = vunpack.c.h.b16 %v3463
    %v4074 = vunpack.c.l.b16 %v3464
    %v4075 = vunpack.c.h.b16 %v3464
    %v4076 = vunpack.c.l.b16 %v3465
    %v4077 = vunpack.c.h.b16 %v3465
    %v4078 = vunpack.c.l.b16 %v3466
    %v4079 = vunpack.c.h.b16 %v3466
    %v4080 = vunpack.c.l.b16 %v3467
    %v4081 = vunpack.c.h.b16 %v3467
    %v4082 = vunpack.c.l.b16 %v3468
    %v4083 = vunpack.c.h.b16 %v3468
    %v4084 = vunpack.c.l.b16 %v3469
    %v4085 = vunpack.c.h.b16 %v3469
    %v4086 = vunpack.c.l.b16 %v3470
    %v4087 = vunpack.c.h.b16 %v3470
    %v4088 = vunpack.c.l.b16 %v3471
    %v4089 = vunpack.c.h.b16 %v3471
    %v4090 = vunpack.c.l.b16 %v3472
    %v4091 = vunpack.c.h.b16 %v3472
    %v4092 = vunpack.c.l.b16 %v3473
    %v4093 = vunpack.c.h.b16 %v3473
    %v4094 = vunpack.c.l.b16 %v3474
    %v4095 = vunpack.c.h.b16 %v3474
    %v4096 = vunpack.c.l.b16 %v3475
    %v4097 = vunpack.c.h.b16 %v3475
    %v4098 = vunpack.c.l.b16 %v3476
    %v4099 = vunpack.c.h.b16 %v3476
    %v4100 = vunpack.c.l.b16 %v3477
    %v4101 = vunpack.c.h.b16 %v3477
    %v4102 = vunpack.c.l.b16 %v3478
    %v4103 = vunpack.c.h.b16 %v3478
    %v4104 = vunpack.c.l.b16 %v3479
    %v4105 = vunpack.c.h.b16 %v3479
    %v4106 = vunpack.c.l.b16 %v3480
    %v4107 = vunpack.c.h.b16 %v3480
    %v4108 = vunpack.c.l.b16 %v3481
    %v4109 = vunpack.c.h.b16 %v3481
    %v4110 = vunpack.c.l.b16 %v3482
    %v4111 = vunpack.c.h.b16 %v3482
    %v4112 = vunpack.c.l.b16 %v3483
    %v4113 = vunpack.c.h.b16 %v3483
    %v4114 = vunpack.c.l.b16 %v3484
    %v4115 = vunpack.c.h.b16 %v3484
    %v4116 = vunpack.c.l.b16 %v3485
    %v4117 = vunpack.c.h.b16 %v3485
    %v4118 = vunpack.c.l.b16 %v3486
    %v4119 = vunpack.c.h.b16 %v3486
    %v4120 = vunpack.c.l.b16 %v3487
    %v4121 = vunpack.c.h.b16 %v3487
    %v4122 = vunpack.c.l.b16 %v3488
    %v4123 = vunpack.c.h.b16 %v3488
    %v4124 = vunpack.c.l.b16 %v3489
    %v4125 = vunpack.c.h.b16 %v3489
    %v4126 = vunpack.c.l.b16 %v3490
    %v4127 = vunpack.c.h.b16 %v3490
    %v4128 = vunpack.c.l.b16 %v3491
    %v4129 = vunpack.c.h.b16 %v3491
    %v4130 = vunpack.c.l.b16 %v3492
    %v4131 = vunpack.c.h.b16 %v3492
    %v4132 = vunpack.c.l.b16 %v3493
    %v4133 = vunpack.c.h.b16 %v3493
    %v4134 = vunpack.c.l.b16 %v3494
    %v4135 = vunpack.c.h.b16 %v3494
    %v4136 = vunpack.c.l.b16 %v3495
    %v4137 = vunpack.c.h.b16 %v3495
    %v4138 = vunpack.c.l.b16 %v3496
    %v4139 = vunpack.c.h.b16 %v3496
    %v4140 = vunpack.c.l.b16 %v3497
    %v4141 = vunpack.c.h.b16 %v3497
    %v4142 = vunpack.c.l.b16 %v3498
    %v4143 = vunpack.c.h.b16 %v3498
    %v4144 = vunpack.c.l.b16 %v3499
    %v4145 = vunpack.c.h.b16 %v3499
    %v4146 = vunpack.c.l.b16 %v3500
    %v4147 = vunpack.c.h.b16 %v3500
    %v4148 = vunpack.c.l.b16 %v3501
    %v4149 = vunpack.c.h.b16 %v3501
    %v4150 = vunpack.c.l.b16 %v3502
    %v4151 = vunpack.c.h.b16 %v3502
    %v4152 = vunpack.c.l.b16 %v3503
    %v4153 = vunpack.c.h.b16 %v3503
    %v4154 = vunpack.c.l.b16 %v3504
    %v4155 = vunpack.c.h.b16 %v3504
    %v4156 = vunpack.c.l.b16 %v3505
    %v4157 = vunpack.c.h.b16 %v3505
    %v4158 = vunpack.c.l.b16 %v3506
    %v4159 = vunpack.c.h.b16 %v3506
    %v4160 = vunpack.c.l.b16 %v3507
    %v4161 = vunpack.c.h.b16 %v3507
    %v4162 = vunpack.c.l.b16 %v3508
    %v4163 = vunpack.c.h.b16 %v3508
    %v4164 = vunpack.c.l.b16 %v3509
    %v4165 = vunpack.c.h.b16 %v3509
    %v4166 = vunpack.c.l.b16 %v3510
    %v4167 = vunpack.c.h.b16 %v3510
    %v4168 = vunpack.c.l.b16 %v3511
    %v4169 = vunpack.c.h.b16 %v3511
    %v4170 = vunpack.c.l.b16 %v3512
    %v4171 = vunpack.c.h.b16 %v3512
    %v4172 = vunpack.c.l.b16 %v3513
    %v4173 = vunpack.c.h.b16 %v3513
    %v4174 = vunpack.c.l.b16 %v3514
    %v4175 = vunpack.c.h.b16 %v3514
    %v4176 = vunpack.c.l.b16 %v3515
    %v4177 = vunpack.c.h.b16 %v3515
    %v4178 = vunpack.c.l.b16 %v3516
    %v4179 = vunpack.c.h.b16 %v3516
    %v4180 = vunpack.c.l.b16 %v3517
    %v4181 = vunpack.c.h.b16 %v3517
    %v4182 = vunpack.c.l.b16 %v3518
    %v4183 = vunpack.c.h.b16 %v3518
    %v4184 = vunpack.c.l.b16 %v3519
    %v4185 = vunpack.c.h.b16 %v3519
    %v4186 = vunpack.c.l.b16 %v3520
    %v4187 = vunpack.c.h.b16 %v3520
    %v4188 = vunpack.c.l.b16 %v3521
    %v4189 = vunpack.c.h.b16 %v3521
    %v4190 = vunpack.c.l.b16 %v3522
    %v4191 = vunpack.c.h.b16 %v3522
    %v4192 = vunpack.c.l.b16 %v3523
    %v4193 = vunpack.c.h.b16 %v3523
    %v4194 = vunpack.c.l.b16 %v3524
    %v4195 = vunpack.c.h.b16 %v3524
    %v4196 = vunpack.c.l.b16 %v3525
    %v4197 = vunpack.c.h.b16 %v3525
    %v4198 = vunpack.c.l.b16 %v3526
    %v4199 = vunpack.c.h.b16 %v3526
    %v4200 = vunpack.c.l.b16 %v3527
    %v4201 = vunpack.c.h.b16 %v3527
    %v4202 = vunpack.c.l.b16 %v3528
    %v4203 = vunpack.c.h.b16 %v3528
    %v4204 = vunpack.c.l.b16 %v3529
    %v4205 = vunpack.c.h.b16 %v3529
    %v4206 = vunpack.c.l.b16 %v3530
    %v4207 = vunpack.c.h.b16 %v3530
    %v4208 = vunpack.c.l.b16 %v3531
    %v4209 = vunpack.c.h.b16 %v3531
    %v4210 = vunpack.c.l.b16 %v3532
    %v4211 = vunpack.c.h.b16 %v3532
    %v4212 = vunpack.c.l.b16 %v3533
    %v4213 = vunpack.c.h.b16 %v3533
    %v4214 = vunpack.c.l.b16 %v3534
    %v4215 = vunpack.c.h.b16 %v3534
    %v4216 = vunpack.c.l.b16 %v3535
    %v4217 = vunpack.c.h.b16 %v3535
    %v4218 = vunpack.c.l.b16 %v3536
    %v4219 = vunpack.c.h.b16 %v3536
    %v4220 = vunpack.c.l.b16 %v3537
    %v4221 = vunpack.c.h.b16 %v3537
    %v4222 = vunpack.c.l.b16 %v3538
    %v4223 = vunpack.c.h.b16 %v3538
    %v4224 = vunpack.c.l.b16 %v3539
    %v4225 = vunpack.c.h.b16 %v3539
    %v4226 = vunpack.c.l.b16 %v3540
    %v4227 = vunpack.c.h.b16 %v3540
    %v4228 = vunpack.c.l.b16 %v3541
    %v4229 = vunpack.c.h.b16 %v3541
    %v4230 = vunpack.c.l.b16 %v3542
    %v4231 = vunpack.c.h.b16 %v3542
    %v4232 = vunpack.c.l.b16 %v3543
    %v4233 = vunpack.c.h.b16 %v3543
    %v4234 = vunpack.c.l.b16 %v3544
    %v4235 = vunpack.c.h.b16 %v3544
    %v4236 = vunpack.c.l.b16 %v3545
    %v4237 = vunpack.c.h.b16 %v3545
    %v4238 = vunpack.c.l.b16 %v3546
    %v4239 = vunpack.c.h.b16 %v3546
    %v4240 = vunpack.c.l.b16 %v3547
    %v4241 = vunpack.c.h.b16 %v3547
    %v4242 = vunpack.c.l.b16 %v3548
    %v4243 = vunpack.c.h.b16 %v3548
    %v4244 = vunpack.c.l.b16 %v3549
    %v4245 = vunpack.c.h.b16 %v3549
    %v4246 = vunpack.c.l.b16 %v3550
    %v4247 = vunpack.c.h.b16 %v3550
    %v4248 = vunpack.c.l.b16 %v3551
    %v4249 = vunpack.c.h.b16 %v3551
    %v4250 = vunpack.c.l.b16 %v3552
    %v4251 = vunpack.c.h.b16 %v3552
    %v4252 = vunpack.c.l.b16 %v3553
    %v4253 = vunpack.c.h.b16 %v3553
    %v4254 = vunpack.c.l.b16 %v3554
    %v4255 = vunpack.c.h.b16 %v3554
    %v4256 = vunpack.c.l.b16 %v3555
    %v4257 = vunpack.c.h.b16 %v3555
    %v4258 = vunpack.c.l.b16 %v3556
    %v4259 = vunpack.c.h.b16 %v3556
    %v4260 = vunpack.c.l.b16 %v3557
    %v4261 = vunpack.c.h.b16 %v3557
    %v4262 = vunpack.c.l.b16 %v3558
    %v4263 = vunpack.c.h.b16 %v3558
    %v4264 = vunpack.c.l.b16 %v3559
    %v4265 = vunpack.c.h.b16 %v3559
    %v4266 = vunpack.c.l.b16 %v3560
    %v4267 = vunpack.c.h.b16 %v3560
    %v4268 = vunpack.c.l.b16 %v3561
    %v4269 = vunpack.c.h.b16 %v3561
    %v4270 = vunpack.c.l.b16 %v3562
    %v4271 = vunpack.c.h.b16 %v3562
    %v4272 = vunpack.c.l.b16 %v3563
    %v4273 = vunpack.c.h.b16 %v3563
    %v4274 = vunpack.c.l.b16 %v3564
    %v4275 = vunpack.c.h.b16 %v3564
    %v4276 = vunpack.c.l.b16 %v3565
    %v4277 = vunpack.c.h.b16 %v3565
    %v4278 = vunpack.c.l.b16 %v3566
    %v4279 = vunpack.c.h.b16 %v3566
    %v4280 = vunpack.c.l.b16 %v3567
    %v4281 = vunpack.c.h.b16 %v3567
    %v4282 = vunpack.c.l.b16 %v3568
    %v4283 = vunpack.c.h.b16 %v3568
    %v4284 = vunpack.c.l.b16 %v3569
    %v4285 = vunpack.c.h.b16 %v3569
    %v4286 = vunpack.c.l.b16 %v3570
    %v4287 = vunpack.c.h.b16 %v3570
    %v4288 = vunpack.c.l.b16 %v3571
    %v4289 = vunpack.c.h.b16 %v3571
    %v4290 = vunpack.c.l.b16 %v3572
    %v4291 = vunpack.c.h.b16 %v3572
    %v4292 = vunpack.c.l.b16 %v3573
    %v4293 = vunpack.c.h.b16 %v3573
    %v4294 = vunpack.c.l.b16 %v3574
    %v4295 = vunpack.c.h.b16 %v3574
    %v4296 = vunpack.c.l.b16 %v3575
    %v4297 = vunpack.c.h.b16 %v3575
    %v4298 = vunpack.c.l.b16 %v3576
    %v4299 = vunpack.c.h.b16 %v3576
    %v4300 = vunpack.c.l.b16 %v3577
    %v4301 = vunpack.c.h.b16 %v3577
    %v4302 = vunpack.c.l.b16 %v3578
    %v4303 = vunpack.c.h.b16 %v3578
    %v4304 = vunpack.c.l.b16 %v3579
    %v4305 = vunpack.c.h.b16 %v3579
    %v4306 = vunpack.c.l.b16 %v3580
    %v4307 = vunpack.c.h.b16 %v3580
    %v4308 = vunpack.c.l.b16 %v3581
    %v4309 = vunpack.c.h.b16 %v3581
    %v4310 = vunpack.c.l.b16 %v3582
    %v4311 = vunpack.c.h.b16 %v3582
    %v4312 = vunpack.c.l.b16 %v3583
    %v4313 = vunpack.c.h.b16 %v3583
    %v4314 = vunpack.c.l.b16 %v3584
    %v4315 = vunpack.c.h.b16 %v3584
    %v4316 = vunpack.c.l.b16 %v3585
    %v4317 = vunpack.c.h.b16 %v3585
    %v4318 = vunpack.c.l.b16 %v3586
    %v4319 = vunpack.c.h.b16 %v3586
    %v4320 = vunpack.c.l.b16 %v3587
    %v4321 = vunpack.c.h.b16 %v3587
    %v4322 = vunpack.c.l.b16 %v3588
    %v4323 = vunpack.c.h.b16 %v3588
    %v4324 = vunpack.c.l.b16 %v3589
    %v4325 = vunpack.c.h.b16 %v3589
    %v4326 = vunpack.c.l.b16 %v3590
    %v4327 = vunpack.c.h.b16 %v3590
    %v4328 = vunpack.c.l.b16 %v3591
    %v4329 = vunpack.c.h.b16 %v3591
    %v4330 = vunpack.c.l.b16 %v3592
    %v4331 = vunpack.c.h.b16 %v3592
    %v4332 = vunpack.c.l.b16 %v3593
    %v4333 = vunpack.c.h.b16 %v3593
    %v4334 = vunpack.c.l.b16 %v3594
    %v4335 = vunpack.c.h.b16 %v3594
    %v4336 = vunpack.c.l.b16 %v3595
    %v4337 = vunpack.c.h.b16 %v3595
    %v4338 = vunpack.c.l.b16 %v3596
    %v4339 = vunpack.c.h.b16 %v3596
    %v4340 = vunpack.c.l.b16 %v3597
    %v4341 = vunpack.c.h.b16 %v3597
    %v4342 = vunpack.c.l.b16 %v3598
    %v4343 = vunpack.c.h.b16 %v3598
    %v4344 = vunpack.c.l.b16 %v3599
    %v4345 = vunpack.c.h.b16 %v3599
    %v4346 = vunpack.c.l.b16 %v3600
    %v4347 = vunpack.c.h.b16 %v3600
    %v4348 = vunpack.c.l.b16 %v3601
    %v4349 = vunpack.c.h.b16 %v3601
    %v4350 = vunpack.c.l.b16 %v3602
    %v4351 = vunpack.c.h.b16 %v3602
    %v4352 = vunpack.c.l.b16 %v3603
    %v4353 = vunpack.c.h.b16 %v3603
    %v4354 = vunpack.c.l.b16 %v3604
    %v4355 = vunpack.c.h.b16 %v3604
    %v4356 = vunpack.c.l.b16 %v3605
    %v4357 = vunpack.c.h.b16 %v3605
    %v4358 = vunpack.c.l.b16 %v3606
    %v4359 = vunpack.c.h.b16 %v3606
    %v4360 = vunpack.c.l.b16 %v3607
    %v4361 = vunpack.c.h.b16 %v3607
    %v4362 = vunpack.c.l.b16 %v3608
    %v4363 = vunpack.c.h.b16 %v3608
    %v4364 = vunpack.c.l.b16 %v3609
    %v4365 = vunpack.c.h.b16 %v3609
    %v4366 = vunpack.c.l.b16 %v3610
    %v4367 = vunpack.c.h.b16 %v3610
    %v4368 = vunpack.c.l.b16 %v3611
    %v4369 = vunpack.c.h.b16 %v3611
    %v4370 = vunpack.c.l.b16 %v3612
    %v4371 = vunpack.c.h.b16 %v3612
    %v4372 = vunpack.c.l.b16 %v3613
    %v4373 = vunpack.c.h.b16 %v3613
    %v4374 = vunpack.c.l.b16 %v3614
    %v4375 = vunpack.c.h.b16 %v3614
    %v4376 = vunpack.c.l.b16 %v3615
    %v4377 = vunpack.c.h.b16 %v3615
    %v4378 = vunpack.c.l.b16 %v3616
    %v4379 = vunpack.c.h.b16 %v3616
    %v4380 = vunpack.c.l.b16 %v3617
    %v4381 = vunpack.c.h.b16 %v3617
    %v4382 = vunpack.c.l.b16 %v3618
    %v4383 = vunpack.c.h.b16 %v3618
    %v4384 = vunpack.c.l.b16 %v3619
    %v4385 = vunpack.c.h.b16 %v3619
    %v4386 = vunpack.c.l.b16 %v3620
    %v4387 = vunpack.c.h.b16 %v3620
    %v4388 = vunpack.c.l.b16 %v3621
    %v4389 = vunpack.c.h.b16 %v3621
    %v4390 = vunpack.c.l.b16 %v3622
    %v4391 = vunpack.c.h.b16 %v3622
    %v4392 = vunpack.c.l.b16 %v3623
    %v4393 = vunpack.c.h.b16 %v3623
    %v4394 = vunpack.c.l.b16 %v3624
    %v4395 = vunpack.c.h.b16 %v3624
    %v4396 = vunpack.c.l.b16 %v3625
    %v4397 = vunpack.c.h.b16 %v3625
    %v4398 = vunpack.c.l.b16 %v3626
    %v4399 = vunpack.c.h.b16 %v3626
    %v4400 = vunpack.c.l.b16 %v3627
    %v4401 = vunpack.c.h.b16 %v3627
    %v4402 = vunpack.c.l.b16 %v3628
    %v4403 = vunpack.c.h.b16 %v3628
    %v4404 = vunpack.c.l.b16 %v3629
    %v4405 = vunpack.c.h.b16 %v3629
    %v4406 = vunpack.c.l.b16 %v3630
    %v4407 = vunpack.c.h.b16 %v3630
    %v4408 = vunpack.c.l.b16 %v3631
    %v4409 = vunpack.c.h.b16 %v3631
    %v4410 = vunpack.c.l.b16 %v3632
    %v4411 = vunpack.c.h.b16 %v3632
    %v4412 = vunpack.c.l.b16 %v3633
    %v4413 = vunpack.c.h.b16 %v3633
    %v4414 = vunpack.c.l.b16 %v3634
    %v4415 = vunpack.c.h.b16 %v3634
    %v4416 = vunpack.c.l.b16 %v3635
    %v4417 = vunpack.c.h.b16 %v3635
    %v4418 = vunpack.c.l.b16 %v3636
    %v4419 = vunpack.c.h.b16 %v3636
    %v4420 = vunpack.c.l.b16 %v3637
    %v4421 = vunpack.c.h.b16 %v3637
    %v4422 = vunpack.c.l.b16 %v3638
    %v4423 = vunpack.c.h.b16 %v3638
    %v4424 = vunpack.c.l.b16 %v3639
    %v4425 = vunpack.c.h.b16 %v3639
    %v4426 = vunpack.c.l.b16 %v3640
    %v4427 = vunpack.c.h.b16 %v3640
    %v4428 = vunpack.c.l.b16 %v3641
    %v4429 = vunpack.c.h.b16 %v3641
    %v4430 = vunpack.c.l.b16 %v3642
    %v4431 = vunpack.c.h.b16 %v3642
    %v4432 = vunpack.c.l.b16 %v3643
    %v4433 = vunpack.c.h.b16 %v3643
    %v4434 = vunpack.c.l.b16 %v3644
    %v4435 = vunpack.c.h.b16 %v3644
    %v4436 = vunpack.c.l.b16 %v3645
    %v4437 = vunpack.c.h.b16 %v3645
    %v4438 = vunpack.c.l.b16 %v3646
    %v4439 = vunpack.c.h.b16 %v3646
    %v4440 = vunpack.c.l.b16 %v3647
    %v4441 = vunpack.c.h.b16 %v3647
    %v4442 = vunpack.c.l.b16 %v3648
    %v4443 = vunpack.c.h.b16 %v3648
    %v4444 = vunpack.c.l.b16 %v3649
    %v4445 = vunpack.c.h.b16 %v3649
    %v4446 = vunpack.c.l.b16 %v3650
    %v4447 = vunpack.c.h.b16 %v3650
    %v4448 = vunpack.c.l.b16 %v3651
    %v4449 = vunpack.c.h.b16 %v3651
    %v4450 = vunpack.c.l.b16 %v3652
    %v4451 = vunpack.c.h.b16 %v3652
    %v4452 = vunpack.c.l.b16 %v3653
    %v4453 = vunpack.c.h.b16 %v3653
    %v4454 = vunpack.c.l.b16 %v3654
    %v4455 = vunpack.c.h.b16 %v3654
    %v4456 = vunpack.c.l.b16 %v3655
    %v4457 = vunpack.c.h.b16 %v3655
    %v4458 = vunpack.c.l.b16 %v3656
    %v4459 = vunpack.c.h.b16 %v3656
    %v4460 = vunpack.c.l.b16 %v3657
    %v4461 = vunpack.c.h.b16 %v3657
    %v4462 = vunpack.c.l.b16 %v3658
    %v4463 = vunpack.c.h.b16 %v3658
    %v4464 = vunpack.c.l.b16 %v3659
    %v4465 = vunpack.c.h.b16 %v3659
    %v4466 = vunpack.c.l.b16 %v3660
    %v4467 = vunpack.c.h.b16 %v3660
    %v4468 = vunpack.c.l.b16 %v3661
    %v4469 = vunpack.c.h.b16 %v3661
    %v4470 = vunpack.c.l.b16 %v3662
    %v4471 = vunpack.c.h.b16 %v3662
    %v4472 = vunpack.c.l.b16 %v3663
    %v4473 = vunpack.c.h.b16 %v3663
    %v4474 = vunpack.c.l.b16 %v3664
    %v4475 = vunpack.c.h.b16 %v3664
    %v4476 = vunpack.c.l.b16 %v3665
    %v4477 = vunpack.c.h.b16 %v3665
    %v4478 = vunpack.c.l.b16 %v3666
    %v4479 = vunpack.c.h.b16 %v3666
    %v4480 = vunpack.c.l.b16 %v3667
    %v4481 = vunpack.c.h.b16 %v3667
    %v4482 = vunpack.c.l.b16 %v3668
    %v4483 = vunpack.c.h.b16 %v3668
    %v4484 = vunpack.c.l.b16 %v3669
    %v4485 = vunpack.c.h.b16 %v3669
    %v4486 = vunpack.c.l.b16 %v3670
    %v4487 = vunpack.c.h.b16 %v3670
    %v4488 = vunpack.c.l.b16 %v3671
    %v4489 = vunpack.c.h.b16 %v3671
    %v4490 = vunpack.c.l.b16 %v3672
    %v4491 = vunpack.c.h.b16 %v3672
    %v4492 = vunpack.c.l.b16 %v3673
    %v4493 = vunpack.c.h.b16 %v3673
    %v4494 = vunpack.c.l.b16 %v3674
    %v4495 = vunpack.c.h.b16 %v3674
    %v4496 = vunpack.c.l.b16 %v3675
    %v4497 = vunpack.c.h.b16 %v3675
    %v4498 = vunpack.c.l.b16 %v3676
    %v4499 = vunpack.c.h.b16 %v3676
    %v4500 = vunpack.c.l.b16 %v3677
    %v4501 = vunpack.c.h.b16 %v3677
    %v4502 = vunpack.c.l.b16 %v3678
    %v4503 = vunpack.c.h.b16 %v3678
    %v4504 = vunpack.c.l.b16 %v3679
    %v4505 = vunpack.c.h.b16 %v3679
    %v4506 = vunpack.c.l.b16 %v3680
    %v4507 = vunpack.c.h.b16 %v3680
    %v4508 = vunpack.c.l.b16 %v3681
    %v4509 = vunpack.c.h.b16 %v3681
    %v4510 = vunpack.c.l.b16 %v3682
    %v4511 = vunpack.c.h.b16 %v3682
    %v4512 = vunpack.c.l.b16 %v3683
    %v4513 = vunpack.c.h.b16 %v3683
    %v4514 = vunpack.c.l.b16 %v3684
    %v4515 = vunpack.c.h.b16 %v3684
    %v4516 = vunpack.c.l.b16 %v3685
    %v4517 = vunpack.c.h.b16 %v3685
    %v4518 = vunpack.c.l.b16 %v3686
    %v4519 = vunpack.c.h.b16 %v3686
    %v4520 = vunpack.c.l.b16 %v3687
    %v4521 = vunpack.c.h.b16 %v3687
    %v4522 = vunpack.c.l.b16 %v3688
    %v4523 = vunpack.c.h.b16 %v3688
    %v4524 = vunpack.c.l.b16 %v3689
    %v4525 = vunpack.c.h.b16 %v3689
    %v4526 = vunpack.c.l.b16 %v3690
    %v4527 = vunpack.c.h.b16 %v3690
    %v4528 = vunpack.c.l.b16 %v3691
    %v4529 = vunpack.c.h.b16 %v3691
    %v4530 = vunpack.c.l.b16 %v3692
    %v4531 = vunpack.c.h.b16 %v3692
    %v4532 = vunpack.c.l.b16 %v3693
    %v4533 = vunpack.c.h.b16 %v3693
    %v4534 = vunpack.c.l.b16 %v3694
    %v4535 = vunpack.c.h.b16 %v3694
    %v4536 = vunpack.c.l.b16 %v3695
    %v4537 = vunpack.c.h.b16 %v3695
    %v4538 = vunpack.c.l.b16 %v3696
    %v4539 = vunpack.c.h.b16 %v3696
    %v4540 = vunpack.c.l.b16 %v3697
    %v4541 = vunpack.c.h.b16 %v3697
    %v4542 = vunpack.c.l.b16 %v3698
    %v4543 = vunpack.c.h.b16 %v3698
    %v4544 = vunpack.c.l.b16 %v3699
    %v4545 = vunpack.c.h.b16 %v3699
    %v4546 = vunpack.c.l.b16 %v3700
    %v4547 = vunpack.c.h.b16 %v3700
    %v4548 = vunpack.c.l.b16 %v3701
    %v4549 = vunpack.c.h.b16 %v3701
    %v4550 = vunpack.c.l.b16 %v3702
    %v4551 = vunpack.c.h.b16 %v3702
    %v4552 = vunpack.c.l.b16 %v3703
    %v4553 = vunpack.c.h.b16 %v3703
    %v4554 = vunpack.c.l.b16 %v3704
    %v4555 = vunpack.c.h.b16 %v3704
    %v4556 = vunpack.c.l.b16 %v3705
    %v4557 = vunpack.c.h.b16 %v3705
    %v4558 = vunpack.c.l.b16 %v3706
    %v4559 = vunpack.c.h.b16 %v3706
    %v4560 = vunpack.c.l.b16 %v3707
    %v4561 = vunpack.c.h.b16 %v3707
    %v4562 = vunpack.c.l.b16 %v3708
    %v4563 = vunpack.c.h.b16 %v3708
    %v4564 = vunpack.c.l.b16 %v3709
    %v4565 = vunpack.c.h.b16 %v3709
    %v4566 = vunpack.c.l.b16 %v3710
    %v4567 = vunpack.c.h.b16 %v3710
    %v4568 = vunpack.c.l.b16 %v3711
    %v4569 = vunpack.c.h.b16 %v3711
    %v4570 = vunpack.c.l.b16 %v3712
    %v4571 = vunpack.c.h.b16 %v3712
    %v4572 = vunpack.c.l.b16 %v3713
    %v4573 = vunpack.c.h.b16 %v3713
    %v4574 = vunpack.c.l.b16 %v3714
    %v4575 = vunpack.c.h.b16 %v3714
    %v4576 = vunpack.c.l.b16 %v3715
    %v4577 = vunpack.c.h.b16 %v3715
    %v4578 = vunpack.c.l.b16 %v3716
    %v4579 = vunpack.c.h.b16 %v3716
    %v4580 = vunpack.c.l.b16 %v3717
    %v4581 = vunpack.c.h.b16 %v3717
    %v4582 = vunpack.c.l.b16 %v3718
    %v4583 = vunpack.c.h.b16 %v3718
    %v4584 = vunpack.c.l.b16 %v3719
    %v4585 = vunpack.c.h.b16 %v3719
    %v4586 = vunpack.c.l.b16 %v3720
    %v4587 = vunpack.c.h.b16 %v3720
    %v4588 = vunpack.c.l.b16 %v3721
    %v4589 = vunpack.c.h.b16 %v3721
    %v4590 = vunpack.c.l.b16 %v3722
    %v4591 = vunpack.c.h.b16 %v3722
    %v4592 = vunpack.c.l.b16 %v3723
    %v4593 = vunpack.c.h.b16 %v3723
    %v4594 = vunpack.c.l.b16 %v3724
    %v4595 = vunpack.c.h.b16 %v3724
    %v4596 = vunpack.c.l.b16 %v3725
    %v4597 = vunpack.c.h.b16 %v3725
    %v4598 = vunpack.c.l.b16 %v3726
    %v4599 = vunpack.c.h.b16 %v3726
    %v4600 = vunpack.c.l.b16 %v3727
    %v4601 = vunpack.c.h.b16 %v3727
    %v4602 = vunpack.c.l.b16 %v3728
    %v4603 = vunpack.c.h.b16 %v3728
    %v4604 = vunpack.c.l.b16 %v3729
    %v4605 = vunpack.c.h.b16 %v3729
    %v4606 = vunpack.c.l.b16 %v3730
    %v4607 = vunpack.c.h.b16 %v3730
    %v4608 = vunpack.c.l.b16 %v3731
    %v4609 = vunpack.c.h.b16 %v3731
    %v4610 = vunpack.c.l.b16 %v3732
    %v4611 = vunpack.c.h.b16 %v3732
    %v4612 = vunpack.c.l.b16 %v3733
    %v4613 = vunpack.c.h.b16 %v3733
    %v4614 = vunpack.c.l.b16 %v3734
    %v4615 = vunpack.c.h.b16 %v3734
    %v4616 = vunpack.c.l.b16 %v3735
    %v4617 = vunpack.c.h.b16 %v3735
    %v4618 = vunpack.c.l.b16 %v3736
    %v4619 = vunpack.c.h.b16 %v3736
    %v4620 = vunpack.c.l.b16 %v3737
    %v4621 = vunpack.c.h.b16 %v3737
    %v4622 = vunpack.c.l.b16 %v3738
    %v4623 = vunpack.c.h.b16 %v3738
    %v4624 = vunpack.c.l.b16 %v3739
    %v4625 = vunpack.c.h.b16 %v3739
    %v4626 = vunpack.c.l.b16 %v3740
    %v4627 = vunpack.c.h.b16 %v3740
    %v4628 = vunpack.c.l.b16 %v3741
    %v4629 = vunpack.c.h.b16 %v3741
    %v4630 = vunpack.c.l.b16 %v3742
    %v4631 = vunpack.c.h.b16 %v3742
    %v4632 = vunpack.c.l.b16 %v3743
    %v4633 = vunpack.c.h.b16 %v3743
    %v4634 = vunpack.c.l.b16 %v3744
    %v4635 = vunpack.c.h.b16 %v3744
    %v4636 = vunpack.c.l.b16 %v3745
    %v4637 = vunpack.c.h.b16 %v3745
    %v4638 = vunpack.c.l.b16 %v3746
    %v4639 = vunpack.c.h.b16 %v3746
    %v4640 = vunpack.c.l.b16 %v3747
    %v4641 = vunpack.c.h.b16 %v3747
    %v4642 = vunpack.c.l.b16 %v3748
    %v4643 = vunpack.c.h.b16 %v3748
    %v4644 = vunpack.c.l.b16 %v3749
    %v4645 = vunpack.c.h.b16 %v3749
    %v4646 = vpack.c.b16 %v4076, %v4070
    %v4647 = vpack.c.b16 %v4077, %v4071
    %v4648 = vpack.c.b16 %v4078, %v4072
    %v4649 = vpack.c.b16 %v4079, %v4073
    %v4650 = vpack.c.b16 %v4080, %v4074
    %v4651 = vpack.c.b16 %v4081, %v4075
    %v4652 = vpack.c.b16 %v4088, %v4082
    %v4653 = vpack.c.b16 %v4089, %v4083
    %v4654 = vpack.c.b16 %v4090, %v4084
    %v4655 = vpack.c.b16 %v4091, %v4085
    %v4656 = vpack.c.b16 %v4092, %v4086
    %v4657 = vpack.c.b16 %v4093, %v4087
    %v4658 = vpack.c.b16 %v4100, %v4094
    %v4659 = vpack.c.b16 %v4101, %v4095
    %v4660 = vpack.c.b16 %v4102, %v4096
    %v4661 = vpack.c.b16 %v4103, %v4097
    %v4662 = vpack.c.b16 %v4104, %v4098
    %v4663 = vpack.c.b16 %v4105, %v4099
    %v4664 = vpack.c.b16 %v4112, %v4106
    %v4665 = vpack.c.b16 %v4113, %v4107
    %v4666 = vpack.c.b16 %v4114, %v4108
    %v4667 = vpack.c.b16 %v4115, %v4109
    %v4668 = vpack.c.b16 %v4116, %v4110
    %v4669 = vpack.c.b16 %v4117, %v4111
    %v4670 = vpack.c.b16 %v4124, %v4118
    %v4671 = vpack.c.b16 %v4125, %v4119
    %v4672 = vpack.c.b16 %v4126, %v4120
    %v4673 = vpack.c.b16 %v4127, %v4121
    %v4674 = vpack.c.b16 %v4128, %v4122
    %v4675 = vpack.c.b16 %v4129, %v4123
    %v4676 = vpack.c.b16 %v4136, %v4130
    %v4677 = vpack.c.b16 %v4137, %v4131
    %v4678 = vpack.c.b16 %v4138, %v4132
    %v4679 = vpack.c.b16 %v4139, %v4133
    %v4680 = vpack.c.b16 %v4140, %v4134
    %v4681 = vpack.c.b16 %v4141, %v4135
    %v4682 = vpack.c.b16 %v4148, %v4142
    %v4683 = vpack.c.b16 %v4149, %v4143
    %v4684 = vpack.c.b16 %v4150, %v4144
    %v4685 = vpack.c.b16 %v4151, %v4145
    %v4686 = vpack.c.b16 %v4152, %v4146
    %v4687 = vpack.c.b16 %v4153, %v4147
    %v4688 = vpack.c.b16 %v4160, %v4154
    %v4689 = vpack.c.b16 %v4161, %v4155
    %v4690 = vpack.c.b16 %v4162, %v4156
    %v4691 = vpack.c.b16 %v4163, %v4157
    %v4692 = vpack.c.b16 %v4164, %v4158
    %v4693 = vpack.c.b16 %v4165, %v4159
    %v4694 = vpack.c.b16 %v4172, %v4166
    %v4695 = vpack.c.b16 %v4173, %v4167
    %v4696 = vpack.c.b16 %v4174, %v4168
    %v4697 = vpack.c.b16 %v4175, %v4169
    %v4698 = vpack.c.b16 %v4176, %v4170
    %v4699 = vpack.c.b16 %v4177, %v4171
    %v4700 = vpack.c.b16 %v4184, %v4178
    %v4701 = vpack.c.b16 %v4185, %v4179
    %v4702 = vpack.c.b16 %v4186, %v4180
    %v4703 = vpack.c.b16 %v4187, %v4181
    %v4704 = vpack.c.b16 %v4188, %v4182
    %v4705 = vpack.c.b16 %v4189, %v4183
    %v4706 = vpack.c.b16 %v4196, %v4190
    %v4707 = vpack.c.b16 %v4197, %v4191
    %v4708 = vpack.c.b16 %v4198, %v4192
    %v4709 = vpack.c.b16 %v4199, %v4193
    %v4710 = vpack.c.b16 %v4200, %v4194
    %v4711 = vpack.c.b16 %v4201, %v4195
    %v4712 = vpack.c.b16 %v4208, %v4202
    %v4713 = vpack.c.b16 %v4209, %v4203
    %v4714 = vpack.c.b16 %v4210, %v4204
    %v4715 = vpack.c.b16 %v4211, %v4205
    %v4716 = vpack.c.b16 %v4212, %v4206
    %v4717 = vpack.c.b16 %v4213, %v4207
    %v4718 = vpack.c.b16 %v4220, %v4214
    %v4719 = vpack.c.b16 %v4221, %v4215
    %v4720 = vpack.c.b16 %v4222, %v4216
    %v4721 = vpack.c.b16 %v4223, %v4217
    %v4722 = vpack.c.b16 %v4224, %v4218
    %v4723 = vpack.c.b16 %v4225, %v4219
    %v4724 = vpack.c.b16 %v4232, %v4226
    %v4725 = vpack.c.b16 %v4233, %v4227
    %v4726 = vpack.c.b16 %v4234, %v4228
    %v4727 = vpack.c.b16 %v4235, %v4229
    %v4728 = vpack.c.b16 %v4236, %v4230
    %v4729 = vpack.c.b16 %v4237, %v4231
    %v4730 = vpack.c.b16 %v4244, %v4238
    %v4731 = vpack.c.b16 %v4245, %v4239
    %v4732 = vpack.c.b16 %v4246, %v4240
    %v4733 = vpack.c.b16 %v4247, %v4241
    %v4734 = vpack.c.b16 %v4248, %v4242
    %v4735 = vpack.c.b16 %v4249, %v4243
    %v4736 = vpack.c.b16 %v4256, %v4250
    %v4737 = vpack.c.b16 %v4257, %v4251
    %v4738 = vpack.c.b16 %v4258, %v4252
    %v4739 = vpack.c.b16 %v4259, %v4253
    %v4740 = vpack.c.b16 %v4260, %v4254
    %v4741 = vpack.c.b16 %v4261, %v4255
    %v4742 = vpack.c.b16 %v4268, %v4262
    %v4743 = vpack.c.b16 %v4269, %v4263
    %v4744 = vpack.c.b16 %v4270, %v4264
    %v4745 = vpack.c.b16 %v4271, %v4265
    %v4746 = vpack.c.b16 %v4272, %v4266
    %v4747 = vpack.c.b16 %v4273, %v4267
    %v4748 = vpack.c.b16 %v4280, %v4274
    %v4749 = vpack.c.b16 %v4281, %v4275
    %v4750 = vpack.c.b16 %v4282, %v4276
    %v4751 = vpack.c.b16 %v4283, %v4277
    %v4752 = vpack.c.b16 %v4284, %v4278
    %v4753 = vpack.c.b16 %v4285, %v4279
    %v4754 = vpack.c.b16 %v4292, %v4286
    %v4755 = vpack.c.b16 %v4293, %v4287
    %v4756 = vpack.c.b16 %v4294, %v4288
    %v4757 = vpack.c.b16 %v4295, %v4289
    %v4758 = vpack.c.b16 %v4296, %v4290
    %v4759 = vpack.c.b16 %v4297, %v4291
    %v4760 = vpack.c.b16 %v4304, %v4298
    %v4761 = vpack.c.b16 %v4305, %v4299
    %v4762 = vpack.c.b16 %v4306, %v4300
    %v4763 = vpack.c.b16 %v4307, %v4301
    %v4764 = vpack.c.b16 %v4308, %v4302
    %v4765 = vpack.c.b16 %v4309, %v4303
    %v4766 = vpack.c.b16 %v4316, %v4310
    %v4767 = vpack.c.b16 %v4317, %v4311
    %v4768 = vpack.c.b16 %v4318, %v4312
    %v4769 = vpack.c.b16 %v4319, %v4313
    %v4770 = vpack.c.b16 %v4320, %v4314
    %v4771 = vpack.c.b16 %v4321, %v4315
    %v4772 = vpack.c.b16 %v4328, %v4322
    %v4773 = vpack.c.b16 %v4329, %v4323
    %v4774 = vpack.c.b16 %v4330, %v4324
    %v4775 = vpack.c.b16 %v4331, %v4325
    %v4776 = vpack.c.b16 %v4332, %v4326
    %v4777 = vpack.c.b16 %v4333, %v4327
    %v4778 = vpack.c.b16 %v4340, %v4334
    %v4779 = vpack.c.b16 %v4341, %v4335
    %v4780 = vpack.c.b16 %v4342, %v4336
    %v4781 = vpack.c.b16 %v4343, %v4337
    %v4782 = vpack.c.b16 %v4344, %v4338
    %v4783 = vpack.c.b16 %v4345, %v4339
    %v4784 = vpack.c.b16 %v4352, %v4346
    %v4785 = vpack.c.b16 %v4353, %v4347
    %v4786 = vpack.c.b16 %v4354, %v4348
    %v4787 = vpack.c.b16 %v4355, %v4349
    %v4788 = vpack.c.b16 %v4356, %v4350
    %v4789 = vpack.c.b16 %v4357, %v4351
    %v4790 = vpack.c.b16 %v4364, %v4358
    %v4791 = vpack.c.b16 %v4365, %v4359
    %v4792 = vpack.c.b16 %v4366, %v4360
    %v4793 = vpack.c.b16 %v4367, %v4361
    %v4794 = vpack.c.b16 %v4368, %v4362
    %v4795 = vpack.c.b16 %v4369, %v4363
    %v4796 = vpack.c.b16 %v4376, %v4370
    %v4797 = vpack.c.b16 %v4377, %v4371
    %v4798 = vpack.c.b16 %v4378, %v4372
    %v4799 = vpack.c.b16 %v4379, %v4373
    %v4800 = vpack.c.b16 %v4380, %v4374
    %v4801 = vpack.c.b16 %v4381, %v4375
    %v4802 = vpack.c.b16 %v4388, %v4382
    %v4803 = vpack.c.b16 %v4389, %v4383
    %v4804 = vpack.c.b16 %v4390, %v4384
    %v4805 = vpack.c.b16 %v4391, %v4385
    %v4806 = vpack.c.b16 %v4392, %v4386
    %v4807 = vpack.c.b16 %v4393, %v4387
    %v4808 = vpack.c.b16 %v4400, %v4394
    %v4809 = vpack.c.b16 %v4401, %v4395
    %v4810 = vpack.c.b16 %v4402, %v4396
    %v4811 = vpack.c.b16 %v4403, %v4397
    %v4812 = vpack.c.b16 %v4404, %v4398
    %v4813 = vpack.c.b16 %v4405, %v4399
    %v4814 = vpack.c.b16 %v4412, %v4406
    %v4815 = vpack.c.b16 %v4413, %v4407
    %v4816 = vpack.c.b16 %v4414, %v4408
    %v4817 = vpack.c.b16 %v4415, %v4409
    %v4818 = vpack.c.b16 %v4416, %v4410
    %v4819 = vpack.c.b16 %v4417, %v4411
    %v4820 = vpack.c.b16 %v4424, %v4418
    %v4821 = vpack.c.b16 %v4425, %v4419
    %v4822 = vpack.c.b16 %v4426, %v4420
    %v4823 = vpack.c.b16 %v4427, %v4421
    %v4824 = vpack.c.b16 %v4428, %v4422
    %v4825 = vpack.c.b16 %v4429, %v4423
    %v4826 = vpack.c.b16 %v4436, %v4430
    %v4827 = vpack.c.b16 %v4437, %v4431
    %v4828 = vpack.c.b16 %v4438, %v4432
    %v4829 = vpack.c.b16 %v4439, %v4433
    %v4830 = vpack.c.b16 %v4440, %v4434
    %v4831 = vpack.c.b16 %v4441, %v4435
    %v4832 = vpack.c.b16 %v4448, %v4442
    %v4833 = vpack.c.b16 %v4449, %v4443
    %v4834 = vpack.c.b16 %v4450, %v4444
    %v4835 = vpack.c.b16 %v4451, %v4445
    %v4836 = vpack.c.b16 %v4452, %v4446
    %v4837 = vpack.c.b16 %v4453, %v4447
    %v4838 = vpack.c.b16 %v4460, %v4454
    %v4839 = vpack.c.b16 %v4461, %v4455
    %v4840 = vpack.c.b16 %v4462, %v4456
    %v4841 = vpack.c.b16 %v4463, %v4457
    %v4842 = vpack.c.b16 %v4464, %v4458
    %v4843 = vpack.c.b16 %v4465, %v4459
    %v4844 = vpack.c.b16 %v4472, %v4466
    %v4845 = vpack.c.b16 %v4473, %v4467
    %v4846 = vpack.c.b16 %v4474, %v4468
    %v4847 = vpack.c.b16 %v4475, %v4469
    %v4848 = vpack.c.b16 %v4476, %v4470
    %v4849 = vpack.c.b16 %v4477, %v4471
    %v4850 = vpack.c.b16 %v4484, %v4478
    %v4851 = vpack.c.b16 %v4485, %v4479
    %v4852 = vpack.c.b16 %v4486, %v4480
    %v4853 = vpack.c.b16 %v4487, %v4481
    %v4854 = vpack.c.b16 %v4488, %v4482
    %v4855 = vpack.c.b16 %v4489, %v4483
    %v4856 = vpack.c.b16 %v4496, %v4490
    %v4857 = vpack.c.b16 %v4497, %v4491
    %v4858 = vpack.c.b16 %v4498, %v4492
    %v4859 = vpack.c.b16 %v4499, %v4493
    %v4860 = vpack.c.b16 %v4500, %v4494
    %v4861 = vpack.c.b16 %v4501, %v4495
    %v4862 = vpack.c.b16 %v4508, %v4502
    %v4863 = vpack.c.b16 %v4509, %v4503
    %v4864 = vpack.c.b16 %v4510, %v4504
    %v4865 = vpack.c.b16 %v4511, %v4505
    %v4866 = vpack.c.b16 %v4512, %v4506
    %v4867 = vpack.c.b16 %v4513, %v4507
    %v4868 = vpack.c.b16 %v4520, %v4514
    %v4869 = vpack.c.b16 %v4521, %v4515
    %v4870 = vpack.c.b16 %v4522, %v4516
    %v4871 = vpack.c.b16 %v4523, %v4517
    %v4872 = vpack.c.b16 %v4524, %v4518
    %v4873 = vpack.c.b16 %v4525, %v4519
    %v4874 = vpack.c.b16 %v4532, %v4526
    %v4875 = vpack.c.b16 %v4533, %v4527
    %v4876 = vpack.c.b16 %v4534, %v4528
    %v4877 = vpack.c.b16 %v4535, %v4529
    %v4878 = vpack.c.b16 %v4536, %v4530
    %v4879 = vpack.c.b16 %v4537, %v4531
    %v4880 = vpack.c.b16 %v4544, %v4538
    %v4881 = vpack.c.b16 %v4545, %v4539
    %v4882 = vpack.c.b16 %v4546, %v4540
    %v4883 = vpack.c.b16 %v4547, %v4541
    %v4884 = vpack.c.b16 %v4548, %v4542
    %v4885 = vpack.c.b16 %v4549, %v4543
    %v4886 = vpack.c.b16 %v4556, %v4550
    %v4887 = vpack.c.b16 %v4557, %v4551
    %v4888 = vpack.c.b16 %v4558, %v4552
    %v4889 = vpack.c.b16 %v4559, %v4553
    %v4890 = vpack.c.b16 %v4560, %v4554
    %v4891 = vpack.c.b16 %v4561, %v4555
    %v4892 = vpack.c.b16 %v4568, %v4562
    %v4893 = vpack.c.b16 %v4569, %v4563
    %v4894 = vpack.c.b16 %v4570, %v4564
    %v4895 = vpack.c.b16 %v4571, %v4565
    %v4896 = vpack.c.b16 %v4572, %v4566
    %v4897 = vpack.c.b16 %v4573, %v4567
    %v4898 = vpack.c.b16 %v4580, %v4574
    %v4899 = vpack.c.b16 %v4581, %v4575
    %v4900 = vpack.c.b16 %v4582, %v4576
    %v4901 = vpack.c.b16 %v4583, %v4577
    %v4902 = vpack.c.b16 %v4584, %v4578
    %v4903 = vpack.c.b16 %v4585, %v4579
    %v4904 = vpack.c.b16 %v4592, %v4586
    %v4905 = vpack.c.b16 %v4593, %v4587
    %v4906 = vpack.c.b16 %v4594, %v4588
    %v4907 = vpack.c.b16 %v4595, %v4589
    %v4908 = vpack.c.b16 %v4596, %v4590
    %v4909 = vpack.c.b16 %v4597, %v4591
    %v4910 = vpack.c.b16 %v4604, %v4598
    %v4911 = vpack.c.b16 %v4605, %v4599
    %v4912 = vpack.c.b16 %v4606, %v4600
    %v4913 = vpack.c.b16 %v4607, %v4601
    %v4914 = vpack.c.b16 %v4608, %v4602
    %v4915 = vpack.c.b16 %v4609, %v4603
    %v4916 = vpack.c.b16 %v4616, %v4610
    %v4917 = vpack.c.b16 %v4617, %v4611
    %v4918 = vpack.c.b16 %v4618, %v4612
    %v4919 = vpack.c.b16 %v4619, %v4613
    %v4920 = vpack.c.b16 %v4620, %v4614
    %v4921 = vpack.c.b16 %v4621, %v4615
    %v4922 = vpack.c.b16 %v4628, %v4622
    %v4923 = vpack.c.b16 %v4629, %v4623
    %v4924 = vpack.c.b16 %v4630, %v4624
    %v4925 = vpack.c.b16 %v4631, %v4625
    %v4926 = vpack.c.b16 %v4632, %v4626
    %v4927 = vpack.c.b16 %v4633, %v4627
    %v4928 = vpack.c.b16 %v4640, %v4634
    %v4929 = vpack.c.b16 %v4641, %v4635
    %v4930 = vpack.c.b16 %v4642, %v4636
    %v4931 = vpack.c.b16 %v4643, %v4637
    %v4932 = vpack.c.b16 %v4644, %v4638
    %v4933 = vpack.c.b16 %v4645, %v4639
    %5222 = vmatprep.subr.bf16.mxu0 %v4689
    %5223 = vmatpush1.bf16.msra.mxu0 %v4688
    %5224 = vmatprep.subr.bf16.mxu0 %v4683
    %5225 = vmatpush1.bf16.msra.mxu0 %v4682
    %5226 = vmatprep.subr.bf16.mxu0 %v4677
    %5227 = vmatpush1.bf16.msra.mxu0 %v4676
    %5228 = vmatprep.subr.bf16.mxu0 %v4671
    %5229 = vmatpush1.bf16.msra.mxu0 %v4670
    %5230 = vmatprep.subr.bf16.mxu0 %v4665
    %5231 = vmatpush1.bf16.msra.mxu0 %v4664
    %5232 = vmatprep.subr.bf16.mxu0 %v4659
    %5233 = vmatpush1.bf16.msra.mxu0 %v4658
    %5234 = vmatprep.subr.bf16.mxu0 %v4653
    %5235 = vmatpush1.bf16.msra.mxu0 %v4652
    %5236 = vmatprep.subr.bf16.mxu0 %v4647
    %5237 = vmatpush1.bf16.msra.mxu0 %v4646
    %5238 = vmatprep.subr.bf16.mxu0 %v4737
    %5239 = vmatpush2.bf16.msra.mxu0 %v4736
    %5240 = vmatprep.subr.bf16.mxu0 %v4731
    %5241 = vmatpush2.bf16.msra.mxu0 %v4730
    %5242 = vmatprep.subr.bf16.mxu0 %v4725
    %5243 = vmatpush2.bf16.msra.mxu0 %v4724
    %5244 = vmatprep.subr.bf16.mxu0 %v4719
    %5245 = vmatpush2.bf16.msra.mxu0 %v4718
    %5246 = vmatprep.subr.bf16.mxu0 %v4713
    %5247 = vmatpush2.bf16.msra.mxu0 %v4712
    %5248 = vmatprep.subr.bf16.mxu0 %v4707
    %5249 = vmatpush2.bf16.msra.mxu0 %v4706
    %5250 = vmatprep.subr.bf16.mxu0 %v4701
    %5251 = vmatpush2.bf16.msra.mxu0 %v4700
    %5252 = vmatprep.subr.bf16.mxu0 %v4695
    %5253 = vmatpush2.bf16.msra.mxu0 %v4694
    %5254 = vmatprep.mubr.bf16.mxu0 %v3457
    %5255 = vmatmul.mubr.bf16.gmra.mxu0 %v3456
    %v5256 = vpop.f32.mrf.mxu0
    %v5257 = vadd.f32 %v3755, %v5256
    %v5258 = vpop.f32.mrf.mxu0
    %v5259 = vadd.f32 %v3759, %v5258
    %v5260 = vpop.f32.mrf.mxu0
    %v5261 = vpop.f32.mrf.mxu0
    %5262 = vdwg.mxu0
    %5263 = vmatprep.subr.bf16.mxu0 %v4785
    %5264 = vmatpush1.bf16.msra.mxu0 %v4784
    %5265 = vmatprep.subr.bf16.mxu0 %v4779
    %5266 = vmatpush1.bf16.msra.mxu0 %v4778
    %5267 = vmatprep.subr.bf16.mxu0 %v4773
    %5268 = vmatpush1.bf16.msra.mxu0 %v4772
    %5269 = vmatprep.subr.bf16.mxu0 %v4767
    %5270 = vmatpush1.bf16.msra.mxu0 %v4766
    %5271 = vmatprep.subr.bf16.mxu0 %v4761
    %5272 = vmatpush1.bf16.msra.mxu0 %v4760
    %5273 = vmatprep.subr.bf16.mxu0 %v4755
    %5274 = vmatpush1.bf16.msra.mxu0 %v4754
    %5275 = vmatprep.subr.bf16.mxu0 %v4749
    %5276 = vmatpush1.bf16.msra.mxu0 %v4748
    %5277 = vmatprep.subr.bf16.mxu0 %v4743
    %5278 = vmatpush1.bf16.msra.mxu0 %v4742
    %5279 = vmatprep.subr.bf16.mxu0 %v4833
    %5280 = vmatpush2.bf16.msra.mxu0 %v4832
    %5281 = vmatprep.subr.bf16.mxu0 %v4827
    %5282 = vmatpush2.bf16.msra.mxu0 %v4826
    %5283 = vmatprep.subr.bf16.mxu0 %v4821
    %5284 = vmatpush2.bf16.msra.mxu0 %v4820
    %5285 = vmatprep.subr.bf16.mxu0 %v4815
    %5286 = vmatpush2.bf16.msra.mxu0 %v4814
    %5287 = vmatprep.subr.bf16.mxu0 %v4809
    %5288 = vmatpush2.bf16.msra.mxu0 %v4808
    %5289 = vmatprep.subr.bf16.mxu0 %v4803
    %5290 = vmatpush2.bf16.msra.mxu0 %v4802
    %5291 = vmatprep.subr.bf16.mxu0 %v4797
    %5292 = vmatpush2.bf16.msra.mxu0 %v4796
    %5293 = vmatprep.subr.bf16.mxu0 %v4791
    %5294 = vmatpush2.bf16.msra.mxu0 %v4790
    %5295 = vmatprep.mubr.bf16.mxu0 %v3459
    %5296 = vmatmul.mubr.bf16.gmra.mxu0 %v3458
    %v5297 = vpop.f32.mrf.mxu0
    %v5298 = vadd.f32 %v5257, %v5297
    %v5299 = vpop.f32.mrf.mxu0
    %v5300 = vadd.f32 %v5259, %v5299
    %v5301 = vpop.f32.mrf.mxu0
    %v5302 = vpop.f32.mrf.mxu0
    %5303 = vdwg.mxu0
    %5304 = vmatprep.subr.bf16.mxu0 %v4881
    %5305 = vmatpush1.bf16.msra.mxu0 %v4880
    %5306 = vmatprep.subr.bf16.mxu0 %v4875
    %5307 = vmatpush1.bf16.msra.mxu0 %v4874
    %5308 = vmatprep.subr.bf16.mxu0 %v4869
    %5309 = vmatpush1.bf16.msra.mxu0 %v4868
    %5310 = vmatprep.subr.bf16.mxu0 %v4863
    %5311 = vmatpush1.bf16.msra.mxu0 %v4862
    %5312 = vmatprep.subr.bf16.mxu0 %v4857
    %5313 = vmatpush1.bf16.msra.mxu0 %v4856
    %5314 = vmatprep.subr.bf16.mxu0 %v4851
    %5315 = vmatpush1.bf16.msra.mxu0 %v4850
    %5316 = vmatprep.subr.bf16.mxu0 %v4845
    %5317 = vmatpush1.bf16.msra.mxu0 %v4844
    %5318 = vmatprep.subr.bf16.mxu0 %v4839
    %5319 = vmatpush1.bf16.msra.mxu0 %v4838
    %5320 = vmatprep.subr.bf16.mxu0 %v4929
    %5321 = vmatpush2.bf16.msra.mxu0 %v4928
    %5322 = vmatprep.subr.bf16.mxu0 %v4923
    %5323 = vmatpush2.bf16.msra.mxu0 %v4922
    %5324 = vmatprep.subr.bf16.mxu0 %v4917
    %5325 = vmatpush2.bf16.msra.mxu0 %v4916
    %5326 = vmatprep.subr.bf16.mxu0 %v4911
    %5327 = vmatpush2.bf16.msra.mxu0 %v4910
    %5328 = vmatprep.subr.bf16.mxu0 %v4905
    %5329 = vmatpush2.bf16.msra.mxu0 %v4904
    %5330 = vmatprep.subr.bf16.mxu0 %v4899
    %5331 = vmatpush2.bf16.msra.mxu0 %v4898
    %5332 = vmatprep.subr.bf16.mxu0 %v4893
    %5333 = vmatpush2.bf16.msra.mxu0 %v4892
    %5334 = vmatprep.subr.bf16.mxu0 %v4887
    %5335 = vmatpush2.bf16.msra.mxu0 %v4886
    %5336 = vmatprep.mubr.bf16.mxu0 %v3461
    %5337 = vmatmul.mubr.bf16.gmra.mxu0 %v3460
    %v5338 = vpop.f32.mrf.mxu0
    %v5339 = vadd.f32 %v5298, %v5338
    %v5340 = vpop.f32.mrf.mxu0
    %v5341 = vadd.f32 %v5300, %v5340
    %v5342 = vpop.f32.mrf.mxu0
    %v5343 = vpop.f32.mrf.mxu0
    %5344 = vdwg.mxu0
    %5345 = vmatprep.subr.bf16.mxu0 %v4691
    %5346 = vmatpush1.bf16.msra.mxu0 %v4690
    %5347 = vmatprep.subr.bf16.mxu0 %v4685
    %5348 = vmatpush1.bf16.msra.mxu0 %v4684
    %5349 = vmatprep.subr.bf16.mxu0 %v4679
    %5350 = vmatpush1.bf16.msra.mxu0 %v4678
    %5351 = vmatprep.subr.bf16.mxu0 %v4673
    %5352 = vmatpush1.bf16.msra.mxu0 %v4672
    %5353 = vmatprep.subr.bf16.mxu0 %v4667
    %5354 = vmatpush1.bf16.msra.mxu0 %v4666
    %5355 = vmatprep.subr.bf16.mxu0 %v4661
    %5356 = vmatpush1.bf16.msra.mxu0 %v4660
    %5357 = vmatprep.subr.bf16.mxu0 %v4655
    %5358 = vmatpush1.bf16.msra.mxu0 %v4654
    %5359 = vmatprep.subr.bf16.mxu0 %v4649
    %5360 = vmatpush1.bf16.msra.mxu0 %v4648
    %5361 = vmatprep.subr.bf16.mxu0 %v4739
    %5362 = vmatpush2.bf16.msra.mxu0 %v4738
    %5363 = vmatprep.subr.bf16.mxu0 %v4733
    %5364 = vmatpush2.bf16.msra.mxu0 %v4732
    %5365 = vmatprep.subr.bf16.mxu0 %v4727
    %5366 = vmatpush2.bf16.msra.mxu0 %v4726
    %5367 = vmatprep.subr.bf16.mxu0 %v4721
    %5368 = vmatpush2.bf16.msra.mxu0 %v4720
    %5369 = vmatprep.subr.bf16.mxu0 %v4715
    %5370 = vmatpush2.bf16.msra.mxu0 %v4714
    %5371 = vmatprep.subr.bf16.mxu0 %v4709
    %5372 = vmatpush2.bf16.msra.mxu0 %v4708
    %5373 = vmatprep.subr.bf16.mxu0 %v4703
    %5374 = vmatpush2.bf16.msra.mxu0 %v4702
    %5375 = vmatprep.subr.bf16.mxu0 %v4697
    %5376 = vmatpush2.bf16.msra.mxu0 %v4696
    %5377 = vmatprep.mubr.bf16.mxu0 %v3457
    %5378 = vmatmul.mubr.bf16.gmra.mxu0 %v3456
    %v5379 = vpop.f32.mrf.mxu0
    %v5380 = vadd.f32 %v3763, %v5379
    %v5381 = vpop.f32.mrf.mxu0
    %v5382 = vadd.f32 %v3767, %v5381
    %v5383 = vpop.f32.mrf.mxu0
    %v5384 = vpop.f32.mrf.mxu0
    %5385 = vdwg.mxu0
    %5386 = vmatprep.subr.bf16.mxu0 %v4787
    %5387 = vmatpush1.bf16.msra.mxu0 %v4786
    %5388 = vmatprep.subr.bf16.mxu0 %v4781
    %5389 = vmatpush1.bf16.msra.mxu0 %v4780
    %5390 = vmatprep.subr.bf16.mxu0 %v4775
    %5391 = vmatpush1.bf16.msra.mxu0 %v4774
    %5392 = vmatprep.subr.bf16.mxu0 %v4769
    %5393 = vmatpush1.bf16.msra.mxu0 %v4768
    %5394 = vmatprep.subr.bf16.mxu0 %v4763
    %5395 = vmatpush1.bf16.msra.mxu0 %v4762
    %5396 = vmatprep.subr.bf16.mxu0 %v4757
    %5397 = vmatpush1.bf16.msra.mxu0 %v4756
    %5398 = vmatprep.subr.bf16.mxu0 %v4751
    %5399 = vmatpush1.bf16.msra.mxu0 %v4750
    %5400 = vmatprep.subr.bf16.mxu0 %v4745
    %5401 = vmatpush1.bf16.msra.mxu0 %v4744
    %5402 = vmatprep.subr.bf16.mxu0 %v4835
    %5403 = vmatpush2.bf16.msra.mxu0 %v4834
    %5404 = vmatprep.subr.bf16.mxu0 %v4829
    %5405 = vmatpush2.bf16.msra.mxu0 %v4828
    %5406 = vmatprep.subr.bf16.mxu0 %v4823
    %5407 = vmatpush2.bf16.msra.mxu0 %v4822
    %5408 = vmatprep.subr.bf16.mxu0 %v4817
    %5409 = vmatpush2.bf16.msra.mxu0 %v4816
    %5410 = vmatprep.subr.bf16.mxu0 %v4811
    %5411 = vmatpush2.bf16.msra.mxu0 %v4810
    %5412 = vmatprep.subr.bf16.mxu0 %v4805
    %5413 = vmatpush2.bf16.msra.mxu0 %v4804
    %5414 = vmatprep.subr.bf16.mxu0 %v4799
    %5415 = vmatpush2.bf16.msra.mxu0 %v4798
    %5416 = vmatprep.subr.bf16.mxu0 %v4793
    %5417 = vmatpush2.bf16.msra.mxu0 %v4792
    %5418 = vmatprep.mubr.bf16.mxu0 %v3459
    %5419 = vmatmul.mubr.bf16.gmra.mxu0 %v3458
    %v5420 = vpop.f32.mrf.mxu0
    %v5421 = vadd.f32 %v5380, %v5420
    %v5422 = vpop.f32.mrf.mxu0
    %v5423 = vadd.f32 %v5382, %v5422
    %v5424 = vpop.f32.mrf.mxu0
    %v5425 = vpop.f32.mrf.mxu0
    %5426 = vdwg.mxu0
    %5427 = vmatprep.subr.bf16.mxu0 %v4883
    %5428 = vmatpush1.bf16.msra.mxu0 %v4882
    %5429 = vmatprep.subr.bf16.mxu0 %v4877
    %5430 = vmatpush1.bf16.msra.mxu0 %v4876
    %5431 = vmatprep.subr.bf16.mxu0 %v4871
    %5432 = vmatpush1.bf16.msra.mxu0 %v4870
    %5433 = vmatprep.subr.bf16.mxu0 %v4865
    %5434 = vmatpush1.bf16.msra.mxu0 %v4864
    %5435 = vmatprep.subr.bf16.mxu0 %v4859
    %5436 = vmatpush1.bf16.msra.mxu0 %v4858
    %5437 = vmatprep.subr.bf16.mxu0 %v4853
    %5438 = vmatpush1.bf16.msra.mxu0 %v4852
    %5439 = vmatprep.subr.bf16.mxu0 %v4847
    %5440 = vmatpush1.bf16.msra.mxu0 %v4846
    %5441 = vmatprep.subr.bf16.mxu0 %v4841
    %5442 = vmatpush1.bf16.msra.mxu0 %v4840
    %5443 = vmatprep.subr.bf16.mxu0 %v4931
    %5444 = vmatpush2.bf16.msra.mxu0 %v4930
    %5445 = vmatprep.subr.bf16.mxu0 %v4925
    %5446 = vmatpush2.bf16.msra.mxu0 %v4924
    %5447 = vmatprep.subr.bf16.mxu0 %v4919
    %5448 = vmatpush2.bf16.msra.mxu0 %v4918
    %5449 = vmatprep.subr.bf16.mxu0 %v4913
    %5450 = vmatpush2.bf16.msra.mxu0 %v4912
    %5451 = vmatprep.subr.bf16.mxu0 %v4907
    %5452 = vmatpush2.bf16.msra.mxu0 %v4906
    %5453 = vmatprep.subr.bf16.mxu0 %v4901
    %5454 = vmatpush2.bf16.msra.mxu0 %v4900
    %5455 = vmatprep.subr.bf16.mxu0 %v4895
    %5456 = vmatpush2.bf16.msra.mxu0 %v4894
    %5457 = vmatprep.subr.bf16.mxu0 %v4889
    %5458 = vmatpush2.bf16.msra.mxu0 %v4888
    %5459 = vmatprep.mubr.bf16.mxu0 %v3461
    %5460 = vmatmul.mubr.bf16.gmra.mxu0 %v3460
    %v5461 = vpop.f32.mrf.mxu0
    %v5462 = vadd.f32 %v5421, %v5461
    %v5463 = vpop.f32.mrf.mxu0
    %v5464 = vadd.f32 %v5423, %v5463
    %v5465 = vpop.f32.mrf.mxu0
    %v5466 = vpop.f32.mrf.mxu0
    %5467 = vdwg.mxu0
    %5468 = vmatprep.subr.bf16.mxu0 %v4693
    %5469 = vmatpush1.bf16.msra.mxu0 %v4692
    %5470 = vmatprep.subr.bf16.mxu0 %v4687
    %5471 = vmatpush1.bf16.msra.mxu0 %v4686
    %5472 = vmatprep.subr.bf16.mxu0 %v4681
    %5473 = vmatpush1.bf16.msra.mxu0 %v4680
    %5474 = vmatprep.subr.bf16.mxu0 %v4675
    %5475 = vmatpush1.bf16.msra.mxu0 %v4674
    %5476 = vmatprep.subr.bf16.mxu0 %v4669
    %5477 = vmatpush1.bf16.msra.mxu0 %v4668
    %5478 = vmatprep.subr.bf16.mxu0 %v4663
    %5479 = vmatpush1.bf16.msra.mxu0 %v4662
    %5480 = vmatprep.subr.bf16.mxu0 %v4657
    %5481 = vmatpush1.bf16.msra.mxu0 %v4656
    %5482 = vmatprep.subr.bf16.mxu0 %v4651
    %5483 = vmatpush1.bf16.msra.mxu0 %v4650
    %5484 = vmatprep.subr.bf16.mxu0 %v4741
    %5485 = vmatpush2.bf16.msra.mxu0 %v4740
    %5486 = vmatprep.subr.bf16.mxu0 %v4735
    %5487 = vmatpush2.bf16.msra.mxu0 %v4734
    %5488 = vmatprep.subr.bf16.mxu0 %v4729
    %5489 = vmatpush2.bf16.msra.mxu0 %v4728
    %5490 = vmatprep.subr.bf16.mxu0 %v4723
    %5491 = vmatpush2.bf16.msra.mxu0 %v4722
    %5492 = vmatprep.subr.bf16.mxu0 %v4717
    %5493 = vmatpush2.bf16.msra.mxu0 %v4716
    %5494 = vmatprep.subr.bf16.mxu0 %v4711
    %5495 = vmatpush2.bf16.msra.mxu0 %v4710
    %5496 = vmatprep.subr.bf16.mxu0 %v4705
    %5497 = vmatpush2.bf16.msra.mxu0 %v4704
    %5498 = vmatprep.subr.bf16.mxu0 %v4699
    %5499 = vmatpush2.bf16.msra.mxu0 %v4698
    %5500 = vmatprep.mubr.bf16.mxu0 %v3457
    %5501 = vmatmul.mubr.bf16.gmra.mxu0 %v3456
    %v5502 = vpop.f32.mrf.mxu0
    %v5503 = vadd.f32 %v3771, %v5502
    %v5504 = vpop.f32.mrf.mxu0
    %v5505 = vadd.f32 %v3775, %v5504
    %v5506 = vpop.f32.mrf.mxu0
    %v5507 = vpop.f32.mrf.mxu0
    %5508 = vdwg.mxu0
    %5509 = vmatprep.subr.bf16.mxu0 %v4789
    %5510 = vmatpush1.bf16.msra.mxu0 %v4788
    %5511 = vmatprep.subr.bf16.mxu0 %v4783
    %5512 = vmatpush1.bf16.msra.mxu0 %v4782
    %5513 = vmatprep.subr.bf16.mxu0 %v4777
    %5514 = vmatpush1.bf16.msra.mxu0 %v4776
    %5515 = vmatprep.subr.bf16.mxu0 %v4771
    %5516 = vmatpush1.bf16.msra.mxu0 %v4770
    %5517 = vmatprep.subr.bf16.mxu0 %v4765
    %5518 = vmatpush1.bf16.msra.mxu0 %v4764
    %5519 = vmatprep.subr.bf16.mxu0 %v4759
    %5520 = vmatpush1.bf16.msra.mxu0 %v4758
    %5521 = vmatprep.subr.bf16.mxu0 %v4753
    %5522 = vmatpush1.bf16.msra.mxu0 %v4752
    %5523 = vmatprep.subr.bf16.mxu0 %v4747
    %5524 = vmatpush1.bf16.msra.mxu0 %v4746
    %5525 = vmatprep.subr.bf16.mxu0 %v4837
    %5526 = vmatpush2.bf16.msra.mxu0 %v4836
    %5527 = vmatprep.subr.bf16.mxu0 %v4831
    %5528 = vmatpush2.bf16.msra.mxu0 %v4830
    %5529 = vmatprep.subr.bf16.mxu0 %v4825
    %5530 = vmatpush2.bf16.msra.mxu0 %v4824
    %5531 = vmatprep.subr.bf16.mxu0 %v4819
    %5532 = vmatpush2.bf16.msra.mxu0 %v4818
    %5533 = vmatprep.subr.bf16.mxu0 %v4813
    %5534 = vmatpush2.bf16.msra.mxu0 %v4812
    %5535 = vmatprep.subr.bf16.mxu0 %v4807
    %5536 = vmatpush2.bf16.msra.mxu0 %v4806
    %5537 = vmatprep.subr.bf16.mxu0 %v4801
    %5538 = vmatpush2.bf16.msra.mxu0 %v4800
    %5539 = vmatprep.subr.bf16.mxu0 %v4795
    %5540 = vmatpush2.bf16.msra.mxu0 %v4794
    %5541 = vmatprep.mubr.bf16.mxu0 %v3459
    %5542 = vmatmul.mubr.bf16.gmra.mxu0 %v3458
    %v5543 = vpop.f32.mrf.mxu0
    %v5544 = vadd.f32 %v5503, %v5543
    %v5545 = vpop.f32.mrf.mxu0
    %v5546 = vadd.f32 %v5505, %v5545
    %v5547 = vpop.f32.mrf.mxu0
    %v5548 = vpop.f32.mrf.mxu0
    %5549 = vdwg.mxu0
    %5550 = vmatprep.subr.bf16.mxu0 %v4885
    %5551 = vmatpush1.bf16.msra.mxu0 %v4884
    %5552 = vmatprep.subr.bf16.mxu0 %v4879
    %5553 = vmatpush1.bf16.msra.mxu0 %v4878
    %5554 = vmatprep.subr.bf16.mxu0 %v4873
    %5555 = vmatpush1.bf16.msra.mxu0 %v4872
    %5556 = vmatprep.subr.bf16.mxu0 %v4867
    %5557 = vmatpush1.bf16.msra.mxu0 %v4866
    %5558 = vmatprep.subr.bf16.mxu0 %v4861
    %5559 = vmatpush1.bf16.msra.mxu0 %v4860
    %5560 = vmatprep.subr.bf16.mxu0 %v4855
    %5561 = vmatpush1.bf16.msra.mxu0 %v4854
    %5562 = vmatprep.subr.bf16.mxu0 %v4849
    %5563 = vmatpush1.bf16.msra.mxu0 %v4848
    %5564 = vmatprep.subr.bf16.mxu0 %v4843
    %5565 = vmatpush1.bf16.msra.mxu0 %v4842
    %5566 = vmatprep.subr.bf16.mxu0 %v4933
    %5567 = vmatpush2.bf16.msra.mxu0 %v4932
    %5568 = vmatprep.subr.bf16.mxu0 %v4927
    %5569 = vmatpush2.bf16.msra.mxu0 %v4926
    %5570 = vmatprep.subr.bf16.mxu0 %v4921
    %5571 = vmatpush2.bf16.msra.mxu0 %v4920
    %5572 = vmatprep.subr.bf16.mxu0 %v4915
    %5573 = vmatpush2.bf16.msra.mxu0 %v4914
    %5574 = vmatprep.subr.bf16.mxu0 %v4909
    %5575 = vmatpush2.bf16.msra.mxu0 %v4908
    %5576 = vmatprep.subr.bf16.mxu0 %v4903
    %5577 = vmatpush2.bf16.msra.mxu0 %v4902
    %5578 = vmatprep.subr.bf16.mxu0 %v4897
    %5579 = vmatpush2.bf16.msra.mxu0 %v4896
    %5580 = vmatprep.subr.bf16.mxu0 %v4891
    %5581 = vmatpush2.bf16.msra.mxu0 %v4890
    %5582 = vmatprep.mubr.bf16.mxu0 %v3461
    %5583 = vmatmul.mubr.bf16.gmra.mxu0 %v3460
    %v5584 = vpop.f32.mrf.mxu0
    %v5585 = vadd.f32 %v5544, %v5584
    %v5586 = vpop.f32.mrf.mxu0
    %v5587 = vadd.f32 %v5546, %v5586
    %v5588 = vpop.f32.mrf.mxu0
    %v5589 = vpop.f32.mrf.mxu0
    %5590 = vdwg.mxu0
    %v5591 = vmax.f32 %v5339, 0.0
    %v5592 = vmax.f32 %v5341, 0.0
    %v5593 = vmax.f32 %v5462, 0.0
    %v5594 = vmax.f32 %v5464, 0.0
    %v5595 = vmax.f32 %v5585, 0.0
    %v5596 = vmax.f32 %v5587, 0.0
    %v5597 = vpack.c.bf16 %v5591, %v5591
    %v5598 = vpack.c.bf16 %v5592, %v5592
    %v5599 = vpack.c.bf16 %v5593, %v5593
    %v5600 = vpack.c.bf16 %v5594, %v5594
    %v5601 = vpack.c.bf16 %v5595, %v5595
    %v5602 = vpack.c.bf16 %v5596, %v5596
    %v5603 = vld [vmem:[%s12] sm:$0xf]
    %v5604 = vld [vmem:[%s12 + $0x4] sm:$0xf]
    %v5605 = vld [vmem:[%s12 + $0x8] sm:$0xf]
    %v5606 = vld [vmem:[%s12 + $0xc] sm:$0xf]
    %v5607 = vld [vmem:[%s12 + $0x10] sm:$0xf]
    %v5608 = vld [vmem:[%s12 + $0x14] sm:$0xf]
    %v5609 = vld [vmem:[%s12 + $0x18] sm:$0xf]
    %v5610 = vld [vmem:[%s12 + $0x1c] sm:$0xf]
    %v5611 = vld [vmem:[%s12 + $0x20] sm:$0xf]
    %v5612 = vld [vmem:[%s12 + $0x24] sm:$0xf]
    %v5613 = vld [vmem:[%s12 + $0x28] sm:$0xf]
    %v5614 = vld [vmem:[%s12 + $0x2c] sm:$0xf]
    %v5615 = vld [vmem:[%s12 + $0x30] sm:$0xf]
    %v5616 = vld [vmem:[%s12 + $0x34] sm:$0xf]
    %v5617 = vld [vmem:[%s12 + $0x38] sm:$0xf]
    %v5618 = vld [vmem:[%s12 + $0x3c] sm:$0xf]
    %v5619 = vld [vmem:[%s12 + $0x40] sm:$0xf]
    %v5620 = vld [vmem:[%s12 + $0x44] sm:$0xf]
    %v5621 = vld [vmem:[%s12 + $0x48] sm:$0xf]
    %v5622 = vld [vmem:[%s12 + $0x4c] sm:$0xf]
    %v5623 = vld [vmem:[%s12 + $0x50] sm:$0xf]
    %v5624 = vld [vmem:[%s12 + $0x54] sm:$0xf]
    %v5625 = vld [vmem:[%s12 + $0x58] sm:$0xf]
    %v5626 = vld [vmem:[%s12 + $0x5c] sm:$0xf]
    %v5627 = vld [vmem:[%s12 + $0x60] sm:$0xf]
    %v5628 = vld [vmem:[%s12 + $0x64] sm:$0xf]
    %v5629 = vld [vmem:[%s12 + $0x68] sm:$0xf]
    %v5630 = vld [vmem:[%s12 + $0x6c] sm:$0xf]
    %v5631 = vld [vmem:[%s12 + $0x70] sm:$0xf]
    %v5632 = vld [vmem:[%s12 + $0x74] sm:$0xf]
    %v5633 = vld [vmem:[%s12 + $0x78] sm:$0xf]
    %v5634 = vld [vmem:[%s12 + $0x7c] sm:$0xf]
    %v5635 = vld [vmem:[%s12 + $0x80] sm:$0xf]
    %v5636 = vld [vmem:[%s12 + $0x84] sm:$0xf]
    %v5637 = vld [vmem:[%s12 + $0x88] sm:$0xf]
    %v5638 = vld [vmem:[%s12 + $0x8c] sm:$0xf]
    %v5639 = vld [vmem:[%s12 + $0x90] sm:$0xf]
    %v5640 = vld [vmem:[%s12 + $0x94] sm:$0xf]
    %v5641 = vld [vmem:[%s12 + $0x98] sm:$0xf]
    %v5642 = vld [vmem:[%s12 + $0x9c] sm:$0xf]
    %v5643 = vld [vmem:[%s12 + $0xa0] sm:$0xf]
    %v5644 = vld [vmem:[%s12 + $0xa4] sm:$0xf]
    %v5645 = vld [vmem:[%s12 + $0xa8] sm:$0xf]
    %v5646 = vld [vmem:[%s12 + $0xac] sm:$0xf]
    %v5647 = vld [vmem:[%s12 + $0xb0] sm:$0xf]
    %v5648 = vld [vmem:[%s12 + $0xb4] sm:$0xf]
    %v5649 = vld [vmem:[%s12 + $0xb8] sm:$0xf]
    %v5650 = vld [vmem:[%s12 + $0xbc] sm:$0xf]
    %v5651 = vld [vmem:[%s12 + $0xc0] sm:$0xf]
    %v5652 = vld [vmem:[%s12 + $0xc4] sm:$0xf]
    %v5653 = vld [vmem:[%s12 + $0xc8] sm:$0xf]
    %v5654 = vld [vmem:[%s12 + $0xcc] sm:$0xf]
    %v5655 = vld [vmem:[%s12 + $0xd0] sm:$0xf]
    %v5656 = vld [vmem:[%s12 + $0xd4] sm:$0xf]
    %v5657 = vld [vmem:[%s12 + $0xd8] sm:$0xf]
    %v5658 = vld [vmem:[%s12 + $0xdc] sm:$0xf]
    %v5659 = vld [vmem:[%s12 + $0xe0] sm:$0xf]
    %v5660 = vld [vmem:[%s12 + $0xe4] sm:$0xf]
    %v5661 = vld [vmem:[%s12 + $0xe8] sm:$0xf]
    %v5662 = vld [vmem:[%s12 + $0xec] sm:$0xf]
    %v5663 = vld [vmem:[%s12 + $0xf0] sm:$0xf]
    %v5664 = vld [vmem:[%s12 + $0xf4] sm:$0xf]
    %v5665 = vld [vmem:[%s12 + $0xf8] sm:$0xf]
    %v5666 = vld [vmem:[%s12 + $0xfc] sm:$0xf]
    %v5667 = vld [vmem:[%s12 + $0x100] sm:$0xf]
    %v5668 = vld [vmem:[%s12 + $0x104] sm:$0xf]
    %v5669 = vld [vmem:[%s12 + $0x108] sm:$0xf]
    %v5670 = vld [vmem:[%s12 + $0x10c] sm:$0xf]
    %v5671 = vld [vmem:[%s12 + $0x110] sm:$0xf]
    %v5672 = vld [vmem:[%s12 + $0x114] sm:$0xf]
    %v5673 = vld [vmem:[%s12 + $0x118] sm:$0xf]
    %v5674 = vld [vmem:[%s12 + $0x11c] sm:$0xf]
    %v5675 = vld [vmem:[%s12 + $0x120] sm:$0xf]
    %v5676 = vld [vmem:[%s12 + $0x124] sm:$0xf]
    %v5677 = vld [vmem:[%s12 + $0x128] sm:$0xf]
    %v5678 = vld [vmem:[%s12 + $0x12c] sm:$0xf]
    %v5679 = vld [vmem:[%s12 + $0x130] sm:$0xf]
    %v5680 = vld [vmem:[%s12 + $0x134] sm:$0xf]
    %v5681 = vld [vmem:[%s12 + $0x138] sm:$0xf]
    %v5682 = vld [vmem:[%s12 + $0x13c] sm:$0xf]
    %v5683 = vld [vmem:[%s12 + $0x140] sm:$0xf]
    %v5684 = vld [vmem:[%s12 + $0x144] sm:$0xf]
    %v5685 = vld [vmem:[%s12 + $0x148] sm:$0xf]
    %v5686 = vld [vmem:[%s12 + $0x14c] sm:$0xf]
    %v5687 = vld [vmem:[%s12 + $0x150] sm:$0xf]
    %v5688 = vld [vmem:[%s12 + $0x154] sm:$0xf]
    %v5689 = vld [vmem:[%s12 + $0x158] sm:$0xf]
    %v5690 = vld [vmem:[%s12 + $0x15c] sm:$0xf]
    %v5691 = vld [vmem:[%s12 + $0x160] sm:$0xf]
    %v5692 = vld [vmem:[%s12 + $0x164] sm:$0xf]
    %v5693 = vld [vmem:[%s12 + $0x168] sm:$0xf]
    %v5694 = vld [vmem:[%s12 + $0x16c] sm:$0xf]
    %v5695 = vld [vmem:[%s12 + $0x170] sm:$0xf]
    %v5696 = vld [vmem:[%s12 + $0x174] sm:$0xf]
    %v5697 = vld [vmem:[%s12 + $0x178] sm:$0xf]
    %v5698 = vld [vmem:[%s12 + $0x17c] sm:$0xf]
    %v5699 = vld [vmem:[#allocation20] sm:$0x1]
    %v5701 = vlaneseq
    %v5702 = vshrl.u32 %v5701, 7
    %v5703 = vsub.s32 0, %v5702
    %v5704 = vrot.slane %v5699, %v5703
    %v5802 = vunpack.c.l.b16 %v5603
    %v5803 = vunpack.c.l.b16 %v5604
    %v5804 = vunpack.c.l.b16 %v5605
    %v5805 = vunpack.c.l.b16 %v5606
    %v5806 = vunpack.c.l.b16 %v5607
    %v5807 = vunpack.c.l.b16 %v5608
    %v5808 = vunpack.c.l.b16 %v5609
    %v5809 = vunpack.c.l.b16 %v5610
    %v5810 = vunpack.c.l.b16 %v5611
    %v5811 = vunpack.c.l.b16 %v5612
    %v5812 = vunpack.c.l.b16 %v5613
    %v5813 = vunpack.c.l.b16 %v5614
    %v5814 = vunpack.c.l.b16 %v5615
    %v5815 = vunpack.c.l.b16 %v5616
    %v5816 = vunpack.c.l.b16 %v5617
    %v5817 = vunpack.c.l.b16 %v5618
    %v5818 = vunpack.c.l.b16 %v5619
    %v5819 = vunpack.c.l.b16 %v5620
    %v5820 = vunpack.c.l.b16 %v5621
    %v5821 = vunpack.c.l.b16 %v5622
    %v5822 = vunpack.c.l.b16 %v5623
    %v5823 = vunpack.c.l.b16 %v5624
    %v5824 = vunpack.c.l.b16 %v5625
    %v5825 = vunpack.c.l.b16 %v5626
    %v5826 = vunpack.c.l.b16 %v5627
    %v5827 = vunpack.c.l.b16 %v5628
    %v5828 = vunpack.c.l.b16 %v5629
    %v5829 = vunpack.c.l.b16 %v5630
    %v5830 = vunpack.c.l.b16 %v5631
    %v5831 = vunpack.c.l.b16 %v5632
    %v5832 = vunpack.c.l.b16 %v5633
    %v5833 = vunpack.c.l.b16 %v5634
    %v5834 = vunpack.c.l.b16 %v5635
    %v5835 = vunpack.c.l.b16 %v5636
    %v5836 = vunpack.c.l.b16 %v5637
    %v5837 = vunpack.c.l.b16 %v5638
    %v5838 = vunpack.c.l.b16 %v5639
    %v5839 = vunpack.c.l.b16 %v5640
    %v5840 = vunpack.c.l.b16 %v5641
    %v5841 = vunpack.c.l.b16 %v5642
    %v5842 = vunpack.c.l.b16 %v5643
    %v5843 = vunpack.c.l.b16 %v5644
    %v5844 = vunpack.c.l.b16 %v5645
    %v5845 = vunpack.c.l.b16 %v5646
    %v5846 = vunpack.c.l.b16 %v5647
    %v5847 = vunpack.c.l.b16 %v5648
    %v5848 = vunpack.c.l.b16 %v5649
    %v5849 = vunpack.c.l.b16 %v5650
    %v5850 = vunpack.c.l.b16 %v5651
    %v5851 = vunpack.c.l.b16 %v5652
    %v5852 = vunpack.c.l.b16 %v5653
    %v5853 = vunpack.c.l.b16 %v5654
    %v5854 = vunpack.c.l.b16 %v5655
    %v5855 = vunpack.c.l.b16 %v5656
    %v5856 = vunpack.c.l.b16 %v5657
    %v5857 = vunpack.c.l.b16 %v5658
    %v5858 = vunpack.c.l.b16 %v5659
    %v5859 = vunpack.c.l.b16 %v5660
    %v5860 = vunpack.c.l.b16 %v5661
    %v5861 = vunpack.c.l.b16 %v5662
    %v5862 = vunpack.c.l.b16 %v5663
    %v5863 = vunpack.c.l.b16 %v5664
    %v5864 = vunpack.c.l.b16 %v5665
    %v5865 = vunpack.c.l.b16 %v5666
    %v5866 = vunpack.c.l.b16 %v5667
    %v5867 = vunpack.c.l.b16 %v5668
    %v5868 = vunpack.c.l.b16 %v5669
    %v5869 = vunpack.c.l.b16 %v5670
    %v5870 = vunpack.c.l.b16 %v5671
    %v5871 = vunpack.c.l.b16 %v5672
    %v5872 = vunpack.c.l.b16 %v5673
    %v5873 = vunpack.c.l.b16 %v5674
    %v5874 = vunpack.c.l.b16 %v5675
    %v5875 = vunpack.c.l.b16 %v5676
    %v5876 = vunpack.c.l.b16 %v5677
    %v5877 = vunpack.c.l.b16 %v5678
    %v5878 = vunpack.c.l.b16 %v5679
    %v5879 = vunpack.c.l.b16 %v5680
    %v5880 = vunpack.c.l.b16 %v5681
    %v5881 = vunpack.c.l.b16 %v5682
    %v5882 = vunpack.c.l.b16 %v5683
    %v5883 = vunpack.c.l.b16 %v5684
    %v5884 = vunpack.c.l.b16 %v5685
    %v5885 = vunpack.c.l.b16 %v5686
    %v5886 = vunpack.c.l.b16 %v5687
    %v5887 = vunpack.c.l.b16 %v5688
    %v5888 = vunpack.c.l.b16 %v5689
    %v5889 = vunpack.c.l.b16 %v5690
    %v5890 = vunpack.c.l.b16 %v5691
    %v5891 = vunpack.c.l.b16 %v5692
    %v5892 = vunpack.c.l.b16 %v5693
    %v5893 = vunpack.c.l.b16 %v5694
    %v5894 = vunpack.c.l.b16 %v5695
    %v5895 = vunpack.c.l.b16 %v5696
    %v5896 = vunpack.c.l.b16 %v5697
    %v5897 = vunpack.c.l.b16 %v5698
    %v5898 = vpack.c.b16 %v5803, %v5802
    %v5899 = vpack.c.b16 %v5805, %v5804
    %v5900 = vpack.c.b16 %v5807, %v5806
    %v5901 = vpack.c.b16 %v5809, %v5808
    %v5902 = vpack.c.b16 %v5811, %v5810
    %v5903 = vpack.c.b16 %v5813, %v5812
    %v5904 = vpack.c.b16 %v5815, %v5814
    %v5905 = vpack.c.b16 %v5817, %v5816
    %v5906 = vpack.c.b16 %v5819, %v5818
    %v5907 = vpack.c.b16 %v5821, %v5820
    %v5908 = vpack.c.b16 %v5823, %v5822
    %v5909 = vpack.c.b16 %v5825, %v5824
    %v5910 = vpack.c.b16 %v5827, %v5826
    %v5911 = vpack.c.b16 %v5829, %v5828
    %v5912 = vpack.c.b16 %v5831, %v5830
    %v5913 = vpack.c.b16 %v5833, %v5832
    %v5914 = vpack.c.b16 %v5835, %v5834
    %v5915 = vpack.c.b16 %v5837, %v5836
    %v5916 = vpack.c.b16 %v5839, %v5838
    %v5917 = vpack.c.b16 %v5841, %v5840
    %v5918 = vpack.c.b16 %v5843, %v5842
    %v5919 = vpack.c.b16 %v5845, %v5844
    %v5920 = vpack.c.b16 %v5847, %v5846
    %v5921 = vpack.c.b16 %v5849, %v5848
    %v5922 = vpack.c.b16 %v5851, %v5850
    %v5923 = vpack.c.b16 %v5853, %v5852
    %v5924 = vpack.c.b16 %v5855, %v5854
    %v5925 = vpack.c.b16 %v5857, %v5856
    %v5926 = vpack.c.b16 %v5859, %v5858
    %v5927 = vpack.c.b16 %v5861, %v5860
    %v5928 = vpack.c.b16 %v5863, %v5862
    %v5929 = vpack.c.b16 %v5865, %v5864
    %v5930 = vpack.c.b16 %v5867, %v5866
    %v5931 = vpack.c.b16 %v5869, %v5868
    %v5932 = vpack.c.b16 %v5871, %v5870
    %v5933 = vpack.c.b16 %v5873, %v5872
    %v5934 = vpack.c.b16 %v5875, %v5874
    %v5935 = vpack.c.b16 %v5877, %v5876
    %v5936 = vpack.c.b16 %v5879, %v5878
    %v5937 = vpack.c.b16 %v5881, %v5880
    %v5938 = vpack.c.b16 %v5883, %v5882
    %v5939 = vpack.c.b16 %v5885, %v5884
    %v5940 = vpack.c.b16 %v5887, %v5886
    %v5941 = vpack.c.b16 %v5889, %v5888
    %v5942 = vpack.c.b16 %v5891, %v5890
    %v5943 = vpack.c.b16 %v5893, %v5892
    %v5944 = vpack.c.b16 %v5895, %v5894
    %v5945 = vpack.c.b16 %v5897, %v5896
    %5994 = vmatprep.subr.bf16.mxu0 0
    %5995 = vmatpush1.bf16.msra.mxu0 %v5905
    %5996 = vmatprep.subr.bf16.mxu0 0
    %5997 = vmatpush1.bf16.msra.mxu0 %v5904
    %5998 = vmatprep.subr.bf16.mxu0 0
    %5999 = vmatpush1.bf16.msra.mxu0 %v5903
    %6000 = vmatprep.subr.bf16.mxu0 0
    %6001 = vmatpush1.bf16.msra.mxu0 %v5902
    %6002 = vmatprep.subr.bf16.mxu0 0
    %6003 = vmatpush1.bf16.msra.mxu0 %v5901
    %6004 = vmatprep.subr.bf16.mxu0 0
    %6005 = vmatpush1.bf16.msra.mxu0 %v5900
    %6006 = vmatprep.subr.bf16.mxu0 0
    %6007 = vmatpush1.bf16.msra.mxu0 %v5899
    %6008 = vmatprep.subr.bf16.mxu0 0
    %6009 = vmatpush1.bf16.msra.mxu0 %v5898
    %6010 = vmatprep.subr.bf16.mxu0 0
    %6011 = vmatpush2.bf16.msra.mxu0 %v5913
    %6012 = vmatprep.subr.bf16.mxu0 0
    %6013 = vmatpush2.bf16.msra.mxu0 %v5912
    %6014 = vmatprep.subr.bf16.mxu0 0
    %6015 = vmatpush2.bf16.msra.mxu0 %v5911
    %6016 = vmatprep.subr.bf16.mxu0 0
    %6017 = vmatpush2.bf16.msra.mxu0 %v5910
    %6018 = vmatprep.subr.bf16.mxu0 0
    %6019 = vmatpush2.bf16.msra.mxu0 %v5909
    %6020 = vmatprep.subr.bf16.mxu0 0
    %6021 = vmatpush2.bf16.msra.mxu0 %v5908
    %6022 = vmatprep.subr.bf16.mxu0 0
    %6023 = vmatpush2.bf16.msra.mxu0 %v5907
    %6024 = vmatprep.subr.bf16.mxu0 0
    %6025 = vmatpush2.bf16.msra.mxu0 %v5906
    %6026 = vmatprep.mubr.bf16.mxu0 %v5598
    %6027 = vmatmul.mubr.bf16.gmra.mxu0 %v5597
    %v6028 = vpop.f32.mrf.mxu0
    %v6029 = vadd.f32 %v5704, %v6028
    %v6030 = vpop.f32.mrf.mxu0
    %v6031 = vpop.f32.mrf.mxu0
    %v6032 = vpop.f32.mrf.mxu0
    %6033 = vdwg.mxu0
    %6034 = vmatprep.subr.bf16.mxu0 0
    %6035 = vmatpush1.bf16.msra.mxu0 %v5921
    %6036 = vmatprep.subr.bf16.mxu0 0
    %6037 = vmatpush1.bf16.msra.mxu0 %v5920
    %6038 = vmatprep.subr.bf16.mxu0 0
    %6039 = vmatpush1.bf16.msra.mxu0 %v5919
    %6040 = vmatprep.subr.bf16.mxu0 0
    %6041 = vmatpush1.bf16.msra.mxu0 %v5918
    %6042 = vmatprep.subr.bf16.mxu0 0
    %6043 = vmatpush1.bf16.msra.mxu0 %v5917
    %6044 = vmatprep.subr.bf16.mxu0 0
    %6045 = vmatpush1.bf16.msra.mxu0 %v5916
    %6046 = vmatprep.subr.bf16.mxu0 0
    %6047 = vmatpush1.bf16.msra.mxu0 %v5915
    %6048 = vmatprep.subr.bf16.mxu0 0
    %6049 = vmatpush1.bf16.msra.mxu0 %v5914
    %6050 = vmatprep.subr.bf16.mxu0 0
    %6051 = vmatpush2.bf16.msra.mxu0 %v5929
    %6052 = vmatprep.subr.bf16.mxu0 0
    %6053 = vmatpush2.bf16.msra.mxu0 %v5928
    %6054 = vmatprep.subr.bf16.mxu0 0
    %6055 = vmatpush2.bf16.msra.mxu0 %v5927
    %6056 = vmatprep.subr.bf16.mxu0 0
    %6057 = vmatpush2.bf16.msra.mxu0 %v5926
    %6058 = vmatprep.subr.bf16.mxu0 0
    %6059 = vmatpush2.bf16.msra.mxu0 %v5925
    %6060 = vmatprep.subr.bf16.mxu0 0
    %6061 = vmatpush2.bf16.msra.mxu0 %v5924
    %6062 = vmatprep.subr.bf16.mxu0 0
    %6063 = vmatpush2.bf16.msra.mxu0 %v5923
    %6064 = vmatprep.subr.bf16.mxu0 0
    %6065 = vmatpush2.bf16.msra.mxu0 %v5922
    %6066 = vmatprep.mubr.bf16.mxu0 %v5600
    %6067 = vmatmul.mubr.bf16.gmra.mxu0 %v5599
    %v6068 = vpop.f32.mrf.mxu0
    %v6069 = vadd.f32 %v6029, %v6068
    %v6070 = vpop.f32.mrf.mxu0
    %v6071 = vpop.f32.mrf.mxu0
    %v6072 = vpop.f32.mrf.mxu0
    %6073 = vdwg.mxu0
    %6074 = vmatprep.subr.bf16.mxu0 0
    %6075 = vmatpush1.bf16.msra.mxu0 %v5937
    %6076 = vmatprep.subr.bf16.mxu0 0
    %6077 = vmatpush1.bf16.msra.mxu0 %v5936
    %6078 = vmatprep.subr.bf16.mxu0 0
    %6079 = vmatpush1.bf16.msra.mxu0 %v5935
    %6080 = vmatprep.subr.bf16.mxu0 0
    %6081 = vmatpush1.bf16.msra.mxu0 %v5934
    %6082 = vmatprep.subr.bf16.mxu0 0
    %6083 = vmatpush1.bf16.msra.mxu0 %v5933
    %6084 = vmatprep.subr.bf16.mxu0 0
    %6085 = vmatpush1.bf16.msra.mxu0 %v5932
    %6086 = vmatprep.subr.bf16.mxu0 0
    %6087 = vmatpush1.bf16.msra.mxu0 %v5931
    %6088 = vmatprep.subr.bf16.mxu0 0
    %6089 = vmatpush1.bf16.msra.mxu0 %v5930
    %6090 = vmatprep.subr.bf16.mxu0 0
    %6091 = vmatpush2.bf16.msra.mxu0 %v5945
    %6092 = vmatprep.subr.bf16.mxu0 0
    %6093 = vmatpush2.bf16.msra.mxu0 %v5944
    %6094 = vmatprep.subr.bf16.mxu0 0
    %6095 = vmatpush2.bf16.msra.mxu0 %v5943
    %6096 = vmatprep.subr.bf16.mxu0 0
    %6097 = vmatpush2.bf16.msra.mxu0 %v5942
    %6098 = vmatprep.subr.bf16.mxu0 0
    %6099 = vmatpush2.bf16.msra.mxu0 %v5941
    %6100 = vmatprep.subr.bf16.mxu0 0
    %6101 = vmatpush2.bf16.msra.mxu0 %v5940
    %6102 = vmatprep.subr.bf16.mxu0 0
    %6103 = vmatpush2.bf16.msra.mxu0 %v5939
    %6104 = vmatprep.subr.bf16.mxu0 0
    %6105 = vmatpush2.bf16.msra.mxu0 %v5938
    %6106 = vmatprep.mubr.bf16.mxu0 %v5602
    %6107 = vmatmul.mubr.bf16.gmra.mxu0 %v5601
    %v6108 = vpop.f32.mrf.mxu0
    %v6109 = vadd.f32 %v6069, %v6108
    %v6110 = vpop.f32.mrf.mxu0
    %v6111 = vpop.f32.mrf.mxu0
    %v6112 = vpop.f32.mrf.mxu0
    %6113 = vdwg.mxu0
    %6114 = vst.msk [vmem:[#allocation22] sm:$0xff] %vm300, %v6109
    %6115 = vst.msk [vmem:[#allocation23] sm:$0xff] %vm300, %v3108
    %6117 = vrot.lane.b32.xlu0 %v3116, 99
    %v6118 = vpop.permute.xlu0 %6117
    %6120 = vst.msk [vmem:[#allocation25] sm:$0xff] %vm300, %v6118
    // Predicated region
    $region106: #{tpu_custom_call.1} parent=1 // pred_check
      _
    $region107: #{tpu_custom_call.1} parent=1 // pred_check_branch
      %6122 = sbr.rel (0) target = $region109
    $region108: #{tpu_custom_call.1} parent=1 // pred_region
      %s6124 = ssub.s32 128, 128
      %6125 = vsyncadd [#allocation4], %s6124
      %s6127 = sshll.u32 [#allocation22], 4
      %s6128 = int_to_ptr.vmem [resolvable:$true] %s6127
      %6130 = dma.vmem_to_hbm [thread:$0]  %s6128, 128, %s14, [#allocation4]
    $region109: #{tpu_custom_call.1} parent=1 // pred_fallthru
      _
    // Predicated region
    $region110: #{tpu_custom_call.1} parent=1 // pred_check
      _
    $region111: #{tpu_custom_call.1} parent=1 // pred_check_branch
      %6132 = sbr.rel (0) target = $region113
    $region112: #{tpu_custom_call.1} parent=1 // pred_region
      %s6134 = ssub.s32 128, 128
      %6135 = vsyncadd [#allocation24], %s6134
      %s6137 = sshll.u32 [#allocation23], 4
      %s6138 = int_to_ptr.vmem [resolvable:$true] %s6137
      %6140 = dma.vmem_to_hbm [thread:$0]  %s6138, 128, %s15, [#allocation24]
    $region113: #{tpu_custom_call.1} parent=1 // pred_fallthru
      _
    // Predicated region
    $region114: #{tpu_custom_call.1} parent=1 // pred_check
      _
    $region115: #{tpu_custom_call.1} parent=1 // pred_check_branch
      %6142 = sbr.rel (0) target = $region117
    $region116: #{tpu_custom_call.1} parent=1 // pred_region
      %s6144 = ssub.s32 128, 128
      %6145 = vsyncadd [#allocation24], %s6144
      %s6147 = sshll.u32 [#allocation25], 4
      %s6148 = int_to_ptr.vmem [resolvable:$true] %s6147
      %6150 = dma.vmem_to_hbm [thread:$0]  %s6148, 128, %s16, [#allocation24]
    $region117: #{tpu_custom_call.1} parent=1 // pred_fallthru
      _
    // Predicated region
    $region118: #{tpu_custom_call.1} parent=1 // pred_check
      _
    $region119: #{tpu_custom_call.1} parent=1 // pred_check_branch
      %6152 = sbr.rel (0) target = $region121
    $region120: #{tpu_custom_call.1} parent=1 // pred_region
      %6153 = dma.done [#allocation4], 128
    $region121: #{tpu_custom_call.1} parent=1 // pred_fallthru
      _
    // Predicated region
    $region122: #{tpu_custom_call.1} parent=1 // pred_check
      _
    $region123: #{tpu_custom_call.1} parent=1 // pred_check_branch
      %6155 = sbr.rel (0) target = $region125
    $region124: #{tpu_custom_call.1} parent=1 // pred_region
      %6156 = dma.done [#allocation24], 128
    $region125: #{tpu_custom_call.1} parent=1 // pred_fallthru
      _
    // Predicated region
    $region126: #{tpu_custom_call.1} parent=1 // pred_check
      _
    $region127: #{tpu_custom_call.1} parent=1 // pred_check_branch
      %6158 = sbr.rel (0) target = $region129
    $region128: #{tpu_custom_call.1} parent=1 // pred_region
      %6159 = dma.done [#allocation24], 128
    $region129: #{tpu_custom_call.1} parent=1 // pred_fallthru
      _
    %6160 = vsyncpa [#allocation3], 1
    %6161 = vsyncpa [#allocation6], 1
    %6162 = vsyncpa [#allocation9], 1
    %6163 = vsyncpa [#allocation12], 1
    %6164 = vsyncpa [#allocation15], 1
    %6165 = vsyncpa [#allocation18], 1
    %6166 = vsyncpa [#allocation21], 1
    %6167 = vsyncpa [#allocation4], 1
    %6168 = vsyncpa [#allocation24], 1

</llo_original>
